<compile_context>
chip_gen: v7x
topology: tpu7x:2x2x1
jax: 0.10.0
libtpu: 0.0.40
codegen_flags: <defaults>
</compile_context>

<pallas_src>
import jax
import jax.numpy as jnp
from jax.experimental import pallas as pl
from jax.experimental.pallas import tpu as pltpu


def _sam_kernel(xp_ref, w_ref, b_ref, o_ref):
    # xp_ref: (1, H+2, W+2, Cin) zero-padded input tile (native dtype)
    # w_ref : (3, 3, Cin, Cout) conv weights (resident across the grid)
    # b_ref : (1, Cout) conv bias
    # o_ref : (1, H, W, Cout) output tile
    _, H, W, c_out = o_ref.shape
    c_in = xp_ref.shape[-1]

    xp = xp_ref[0]                                   # (H+2, W+2, Cin), native dtype
    w = w_ref[...]                                   # (3, 3, Cin, Cout)
    b = b_ref[...].astype(jnp.float32)               # (1, Cout)

    # 3x3 conv (stride 1, pad 1) as 9 shifted matmuls, f32 accumulation on MXU.
    acc = jnp.zeros((H * W, c_out), jnp.float32)
    for dy in range(3):
        for dx in range(3):
            patch = xp[dy:dy + H, dx:dx + W, :].reshape(H * W, c_in)
            acc = acc + jnp.dot(patch, w[dy, dx],
                                preferred_element_type=jnp.float32)
    acc = acc + b

    # Gate: sigmoid(conv(x)) cast to the activation dtype, then rescale x.
    gate = jax.nn.sigmoid(acc).astype(o_ref.dtype).reshape(H, W, c_out)
    x_center = xp[1:1 + H, 1:1 + W, :]               # the original (unpadded) x
    o_ref[0] = gate * x_center


def sam_forward(x, w, b):
    """SAM forward.  x: (B, C, H, W); w: (C, C, 3, 3) (PyTorch OIHW); b: (C,)."""
    B, C, H, W = x.shape
    assert w.shape == (C, C, 3, 3), "SAM conv must be in_planes -> in_planes, 3x3"

    # Layout plumbing in XLA glue: NCHW -> NHWC (channels last = lane dim),
    # zero-pad spatial dims by 1 (conv padding), OIHW -> (kh, kw, Cin, Cout).
    x_nhwc = jnp.transpose(x, (0, 2, 3, 1))
    x_pad = jnp.pad(x_nhwc, ((0, 0), (1, 1), (1, 1), (0, 0)))
    w_k = jnp.transpose(w, (2, 3, 1, 0))
    b_2d = b.reshape(1, C)

    out_nhwc = pl.pallas_call(
        _sam_kernel,
        out_shape=jax.ShapeDtypeStruct((B, H, W, C), x.dtype),
        grid=(B,),
        in_specs=[
            # one padded batch element per grid step (double-buffered by Pallas)
            pl.BlockSpec((1, H + 2, W + 2, C), lambda bb: (bb, 0, 0, 0)),
            # weights / bias: constant index_map -> stay VMEM-resident
            pl.BlockSpec((3, 3, C, C), lambda bb: (0, 0, 0, 0)),
            pl.BlockSpec((1, C), lambda bb: (0, 0)),
        ],
        out_specs=pl.BlockSpec((1, H, W, C), lambda bb: (bb, 0, 0, 0)),
        compiler_params=pltpu.CompilerParams(
            dimension_semantics=("parallel",)),
    )(x_pad, w_k, b_2d)

    return jnp.transpose(out_nhwc, (0, 3, 1, 2))     # back to NCHW


def _reference(x, w, b):
    out = jax.lax.conv_general_dilated(
        x, w, window_strides=(1, 1), padding=((1, 1), (1, 1)),
        dimension_numbers=("NCHW", "OIHW", "NCHW"))
    out = out + b[None, :, None, None]
    return jax.nn.sigmoid(out) * x


if __name__ == "__main__":
    B, C, H, W = 2, 4, 16, 16

    key = jax.random.PRNGKey(0)
    kx, kw, kb = jax.random.split(key, 3)
    x = jax.random.normal(kx, (B, C, H, W), dtype=jnp.float32)
    w = jax.random.normal(kw, (C, C, 3, 3), dtype=jnp.float32) * 0.1
    b = jax.random.normal(kb, (C,), dtype=jnp.float32) * 0.1

    y = sam_forward(x, w, b)
    y = jax.block_until_ready(y)

    y_ref = _reference(x, w, b)
    assert y.shape == (B, C, H, W)
    assert jnp.allclose(y, y_ref, atol=1e-5, rtol=1e-5), (
        float(jnp.max(jnp.abs(y - y_ref))))
    print("KERNEL_OK")
</pallas_src>

<mosaic_0001>
module attributes {stable_mosaic.version = 11 : i64} {
  func.func @_sam_kernel(%arg0: i32, %arg1: memref<1x18x18x4xf32, #tpu.memory_space<vmem>>, %arg2: memref<3x3x4x4xf32, #tpu.memory_space<vmem>>, %arg3: memref<1x4xf32, #tpu.memory_space<vmem>>, %arg4: memref<1x16x16x4xf32, #tpu.memory_space<vmem>>) attributes {dimension_semantics = [#tpu.dimension_semantics<parallel>], iteration_bounds = array<i64: 2>, scalar_prefetch = 0 : i64, scratch_operands = 0 : i64, tpu.core_type = #tpu.core_type<tc>, window_params = [{transform_indices = @transform_0, window_bounds = array<i64: 1, 18, 18, 4>}, {pipeline_mode = #tpu.pipeline_mode<synchronous>, transform_indices = @transform_1, window_bounds = array<i64: 3, 3, 4, 4>}, {pipeline_mode = #tpu.pipeline_mode<synchronous>, transform_indices = @transform_2, window_bounds = array<i64: 1, 4>}, {transform_indices = @transform_3, window_bounds = array<i64: 1, 16, 16, 4>}]} {
    %c0 = arith.constant 0 : index
    %c0_0 = arith.constant 0 : index
    %c0_1 = arith.constant 0 : index
    %c0_2 = arith.constant 0 : index
    %0 = vector.load %arg1[%c0, %c0_0, %c0_1, %c0_2] : memref<1x18x18x4xf32, #tpu.memory_space<vmem>>, vector<1x18x18x4xf32>
    %1 = vector.shape_cast %0 : vector<1x18x18x4xf32> to vector<18x18x4xf32>
    %c0_3 = arith.constant 0 : index
    %c0_4 = arith.constant 0 : index
    %c0_5 = arith.constant 0 : index
    %c0_6 = arith.constant 0 : index
    %2 = vector.load %arg2[%c0_3, %c0_4, %c0_5, %c0_6] : memref<3x3x4x4xf32, #tpu.memory_space<vmem>>, vector<3x3x4x4xf32>
    %c0_7 = arith.constant 0 : index
    %c0_8 = arith.constant 0 : index
    %3 = vector.load %arg3[%c0_7, %c0_8] : memref<1x4xf32, #tpu.memory_space<vmem>>, vector<1x4xf32>
    %cst = arith.constant 0.000000e+00 : f32
    %4 = vector.broadcast %cst : f32 to vector<256x4xf32>
    %5 = vector.extract_strided_slice %1 {offsets = [0, 0, 0], sizes = [16, 16, 4], strides = [1, 1, 1]} : vector<18x18x4xf32> to vector<16x16x4xf32>
    %6 = vector.shape_cast %5 : vector<16x16x4xf32> to vector<256x4xf32>
    %7 = vector.extract_strided_slice %2 {offsets = [0, 0, 0, 0], sizes = [1, 1, 4, 4], strides = [1, 1, 1, 1]} : vector<3x3x4x4xf32> to vector<1x1x4x4xf32>
    %8 = vector.shape_cast %7 : vector<1x1x4x4xf32> to vector<4x4xf32>
    %cst_9 = arith.constant dense<0.000000e+00> : vector<256x4xf32>
    %9 = tpu.matmul %6, %8, %cst_9 {dimension_numbers = #tpu.dot_dimension_numbers<[1], [0], [0], [1], [0, 0, 1, 1], [], []>} : vector<256x4xf32>, vector<4x4xf32>, vector<256x4xf32> -> vector<256x4xf32>
    %10 = arith.addf %4, %9 : vector<256x4xf32>
    %11 = vector.extract_strided_slice %1 {offsets = [0, 1, 0], sizes = [16, 16, 4], strides = [1, 1, 1]} : vector<18x18x4xf32> to vector<16x16x4xf32>
    %12 = vector.shape_cast %11 : vector<16x16x4xf32> to vector<256x4xf32>
    %13 = vector.extract_strided_slice %2 {offsets = [0, 1, 0, 0], sizes = [1, 1, 4, 4], strides = [1, 1, 1, 1]} : vector<3x3x4x4xf32> to vector<1x1x4x4xf32>
    %14 = vector.shape_cast %13 : vector<1x1x4x4xf32> to vector<4x4xf32>
    %cst_10 = arith.constant dense<0.000000e+00> : vector<256x4xf32>
    %15 = tpu.matmul %12, %14, %cst_10 {dimension_numbers = #tpu.dot_dimension_numbers<[1], [0], [0], [1], [0, 0, 1, 1], [], []>} : vector<256x4xf32>, vector<4x4xf32>, vector<256x4xf32> -> vector<256x4xf32>
    %16 = arith.addf %10, %15 : vector<256x4xf32>
    %17 = vector.extract_strided_slice %1 {offsets = [0, 2, 0], sizes = [16, 16, 4], strides = [1, 1, 1]} : vector<18x18x4xf32> to vector<16x16x4xf32>
    %18 = vector.shape_cast %17 : vector<16x16x4xf32> to vector<256x4xf32>
    %19 = vector.extract_strided_slice %2 {offsets = [0, 2, 0, 0], sizes = [1, 1, 4, 4], strides = [1, 1, 1, 1]} : vector<3x3x4x4xf32> to vector<1x1x4x4xf32>
    %20 = vector.shape_cast %19 : vector<1x1x4x4xf32> to vector<4x4xf32>
    %cst_11 = arith.constant dense<0.000000e+00> : vector<256x4xf32>
    %21 = tpu.matmul %18, %20, %cst_11 {dimension_numbers = #tpu.dot_dimension_numbers<[1], [0], [0], [1], [0, 0, 1, 1], [], []>} : vector<256x4xf32>, vector<4x4xf32>, vector<256x4xf32> -> vector<256x4xf32>
    %22 = arith.addf %16, %21 : vector<256x4xf32>
    %23 = vector.extract_strided_slice %1 {offsets = [1, 0, 0], sizes = [16, 16, 4], strides = [1, 1, 1]} : vector<18x18x4xf32> to vector<16x16x4xf32>
    %24 = vector.shape_cast %23 : vector<16x16x4xf32> to vector<256x4xf32>
    %25 = vector.extract_strided_slice %2 {offsets = [1, 0, 0, 0], sizes = [1, 1, 4, 4], strides = [1, 1, 1, 1]} : vector<3x3x4x4xf32> to vector<1x1x4x4xf32>
    %26 = vector.shape_cast %25 : vector<1x1x4x4xf32> to vector<4x4xf32>
    %cst_12 = arith.constant dense<0.000000e+00> : vector<256x4xf32>
    %27 = tpu.matmul %24, %26, %cst_12 {dimension_numbers = #tpu.dot_dimension_numbers<[1], [0], [0], [1], [0, 0, 1, 1], [], []>} : vector<256x4xf32>, vector<4x4xf32>, vector<256x4xf32> -> vector<256x4xf32>
    %28 = arith.addf %22, %27 : vector<256x4xf32>
    %29 = vector.extract_strided_slice %1 {offsets = [1, 1, 0], sizes = [16, 16, 4], strides = [1, 1, 1]} : vector<18x18x4xf32> to vector<16x16x4xf32>
    %30 = vector.shape_cast %29 : vector<16x16x4xf32> to vector<256x4xf32>
    %31 = vector.extract_strided_slice %2 {offsets = [1, 1, 0, 0], sizes = [1, 1, 4, 4], strides = [1, 1, 1, 1]} : vector<3x3x4x4xf32> to vector<1x1x4x4xf32>
    %32 = vector.shape_cast %31 : vector<1x1x4x4xf32> to vector<4x4xf32>
    %cst_13 = arith.constant dense<0.000000e+00> : vector<256x4xf32>
    %33 = tpu.matmul %30, %32, %cst_13 {dimension_numbers = #tpu.dot_dimension_numbers<[1], [0], [0], [1], [0, 0, 1, 1], [], []>} : vector<256x4xf32>, vector<4x4xf32>, vector<256x4xf32> -> vector<256x4xf32>
    %34 = arith.addf %28, %33 : vector<256x4xf32>
    %35 = vector.extract_strided_slice %1 {offsets = [1, 2, 0], sizes = [16, 16, 4], strides = [1, 1, 1]} : vector<18x18x4xf32> to vector<16x16x4xf32>
    %36 = vector.shape_cast %35 : vector<16x16x4xf32> to vector<256x4xf32>
    %37 = vector.extract_strided_slice %2 {offsets = [1, 2, 0, 0], sizes = [1, 1, 4, 4], strides = [1, 1, 1, 1]} : vector<3x3x4x4xf32> to vector<1x1x4x4xf32>
    %38 = vector.shape_cast %37 : vector<1x1x4x4xf32> to vector<4x4xf32>
    %cst_14 = arith.constant dense<0.000000e+00> : vector<256x4xf32>
    %39 = tpu.matmul %36, %38, %cst_14 {dimension_numbers = #tpu.dot_dimension_numbers<[1], [0], [0], [1], [0, 0, 1, 1], [], []>} : vector<256x4xf32>, vector<4x4xf32>, vector<256x4xf32> -> vector<256x4xf32>
    %40 = arith.addf %34, %39 : vector<256x4xf32>
    %41 = vector.extract_strided_slice %1 {offsets = [2, 0, 0], sizes = [16, 16, 4], strides = [1, 1, 1]} : vector<18x18x4xf32> to vector<16x16x4xf32>
    %42 = vector.shape_cast %41 : vector<16x16x4xf32> to vector<256x4xf32>
    %43 = vector.extract_strided_slice %2 {offsets = [2, 0, 0, 0], sizes = [1, 1, 4, 4], strides = [1, 1, 1, 1]} : vector<3x3x4x4xf32> to vector<1x1x4x4xf32>
    %44 = vector.shape_cast %43 : vector<1x1x4x4xf32> to vector<4x4xf32>
    %cst_15 = arith.constant dense<0.000000e+00> : vector<256x4xf32>
    %45 = tpu.matmul %42, %44, %cst_15 {dimension_numbers = #tpu.dot_dimension_numbers<[1], [0], [0], [1], [0, 0, 1, 1], [], []>} : vector<256x4xf32>, vector<4x4xf32>, vector<256x4xf32> -> vector<256x4xf32>
    %46 = arith.addf %40, %45 : vector<256x4xf32>
    %47 = vector.extract_strided_slice %1 {offsets = [2, 1, 0], sizes = [16, 16, 4], strides = [1, 1, 1]} : vector<18x18x4xf32> to vector<16x16x4xf32>
    %48 = vector.shape_cast %47 : vector<16x16x4xf32> to vector<256x4xf32>
    %49 = vector.extract_strided_slice %2 {offsets = [2, 1, 0, 0], sizes = [1, 1, 4, 4], strides = [1, 1, 1, 1]} : vector<3x3x4x4xf32> to vector<1x1x4x4xf32>
    %50 = vector.shape_cast %49 : vector<1x1x4x4xf32> to vector<4x4xf32>
    %cst_16 = arith.constant dense<0.000000e+00> : vector<256x4xf32>
    %51 = tpu.matmul %48, %50, %cst_16 {dimension_numbers = #tpu.dot_dimension_numbers<[1], [0], [0], [1], [0, 0, 1, 1], [], []>} : vector<256x4xf32>, vector<4x4xf32>, vector<256x4xf32> -> vector<256x4xf32>
    %52 = arith.addf %46, %51 : vector<256x4xf32>
    %53 = vector.extract_strided_slice %1 {offsets = [2, 2, 0], sizes = [16, 16, 4], strides = [1, 1, 1]} : vector<18x18x4xf32> to vector<16x16x4xf32>
    %54 = vector.shape_cast %53 : vector<16x16x4xf32> to vector<256x4xf32>
    %55 = vector.extract_strided_slice %2 {offsets = [2, 2, 0, 0], sizes = [1, 1, 4, 4], strides = [1, 1, 1, 1]} : vector<3x3x4x4xf32> to vector<1x1x4x4xf32>
    %56 = vector.shape_cast %55 : vector<1x1x4x4xf32> to vector<4x4xf32>
    %cst_17 = arith.constant dense<0.000000e+00> : vector<256x4xf32>
    %57 = tpu.matmul %54, %56, %cst_17 {dimension_numbers = #tpu.dot_dimension_numbers<[1], [0], [0], [1], [0, 0, 1, 1], [], []>} : vector<256x4xf32>, vector<4x4xf32>, vector<256x4xf32> -> vector<256x4xf32>
    %58 = arith.addf %52, %57 : vector<256x4xf32>
    %59 = vector.broadcast %3 : vector<1x4xf32> to vector<256x4xf32>
    %60 = arith.addf %58, %59 : vector<256x4xf32>
    %61 = arith.negf %60 : vector<256x4xf32>
    %62 = math.exp %61 : vector<256x4xf32>
    %cst_18 = arith.constant 1.000000e+00 : f32
    %63 = vector.broadcast %cst_18 : f32 to vector<256x4xf32>
    %64 = arith.addf %63, %62 : vector<256x4xf32>
    %65 = arith.divf %63, %64 : vector<256x4xf32>
    %66 = vector.shape_cast %65 : vector<256x4xf32> to vector<16x16x4xf32>
    %67 = vector.extract_strided_slice %1 {offsets = [1, 1, 0], sizes = [16, 16, 4], strides = [1, 1, 1]} : vector<18x18x4xf32> to vector<16x16x4xf32>
    %68 = arith.mulf %66, %67 : vector<16x16x4xf32>
    %c0_19 = arith.constant 0 : index
    %c0_20 = arith.constant 0 : index
    %c0_21 = arith.constant 0 : index
    %c0_22 = arith.constant 0 : index
    %69 = vector.load %arg4[%c0_19, %c0_20, %c0_21, %c0_22] : memref<1x16x16x4xf32, #tpu.memory_space<vmem>>, vector<1x16x16x4xf32>
    %70 = vector.shape_cast %69 : vector<1x16x16x4xf32> to vector<16x16x4xf32>
    %71 = vector.shape_cast %68 : vector<16x16x4xf32> to vector<1x16x16x4xf32>
    tpu.vector_store %arg4[%c0_19, %c0_20, %c0_21, %c0_22], %71 {strides = array<i32>} : memref<1x16x16x4xf32, #tpu.memory_space<vmem>>, vector<1x16x16x4xf32>,
    return
  }
  func.func @transform_0(%arg0: i32) -> (i32, i32, i32, i32) {
    %c0_i32 = arith.constant 0 : i32
    %c0_i32_0 = arith.constant 0 : i32
    %c0_i32_1 = arith.constant 0 : i32
    %c0_i32_2 = arith.constant 0 : i32
    return %arg0, %c0_i32, %c0_i32_0, %c0_i32_1 : i32, i32, i32, i32
  }
  func.func @transform_1(%arg0: i32) -> (i32, i32, i32, i32) {
    %c0_i32 = arith.constant 0 : i32
    %c0_i32_0 = arith.constant 0 : i32
    %c0_i32_1 = arith.constant 0 : i32
    %c0_i32_2 = arith.constant 0 : i32
    %c0_i32_3 = arith.constant 0 : i32
    return %c0_i32, %c0_i32_0, %c0_i32_1, %c0_i32_2 : i32, i32, i32, i32
  }
  func.func @transform_2(%arg0: i32) -> (i32, i32) {
    %c0_i32 = arith.constant 0 : i32
    %c0_i32_0 = arith.constant 0 : i32
    %c0_i32_1 = arith.constant 0 : i32
    return %c0_i32, %c0_i32_0 : i32, i32
  }
  func.func @transform_3(%arg0: i32) -> (i32, i32, i32, i32) {
    %c0_i32 = arith.constant 0 : i32
    %c0_i32_0 = arith.constant 0 : i32
    %c0_i32_1 = arith.constant 0 : i32
    %c0_i32_2 = arith.constant 0 : i32
    return %arg0, %c0_i32, %c0_i32_0, %c0_i32_1 : i32, i32, i32, i32
  }
}

</mosaic_0001>

<llo_original>
// kernel: tpu_custom_call.1
$region0: #{tpu_custom_call.1}
  #allocation0 [shape = 'u32[]', space=smem, size = 0x4, offset = 0x4, fixed_abs, tag = 'smem constant byte address 0x4 - core index']
  #allocation1 [shape = 'u32[144,128]{1,0:T(1,128)}', space=vmem, size = 0x12000, scoped, tag = 'internal scratch']
  %s0 = inlined_call_operand.vmem [shape: f32[2,18,18,4], index: 0, kind: input, shape index: {}]
  %s1 = inlined_call_operand.vmem [shape: f32[3,3,4,4], index: 1, kind: input, shape index: {}]
  %s2 = inlined_call_operand.vmem [shape: f32[1,4], index: 2, kind: input, shape index: {}]
  %s3 = inlined_call_operand.vmem [shape: f32[2,16,16,4], index: 3, kind: output, shape index: {}]
  %s4 = sld [smem:[#allocation0]]
  $region45: #{tpu_custom_call.1} parent=0
    _
  %s6 = ssub.s32 1, %s4
  %s7 = scalar_select 0, %s6, %s4
  loop: start=0, step=1, limit=4
  $region2: #{tpu_custom_call.1} parent=0 // loop_pre_header
    _
  $region3: #{tpu_custom_call.1} parent=0 // loop_header
    %s9 = sphi 0, %s13
    %p10 = scmp.ge.s32.totalorder %s9, 4
    %s19 = sphi 0, %s21
    %s22 = sphi 0, %s19
    %s23 = sphi 0, %s22
    %s39 = sphi 0, %s23
    %s43 = sphi 0, %s43
    %s45 = sphi 0, %s43
    %s46 = sphi 0, %s45
    %s60 = sphi 0, %s46
    %s64 = sphi 0, %s64
    %s66 = sphi 0, %s64
    %s67 = sphi 0, %s66
    %s81 = sphi 0, %s67
    %s87 = sphi 0, %s89
    %s90 = sphi 0, %s87
    %s91 = sphi 0, %s90
    %s107 = sphi 0, %s91
  $region4: #{tpu_custom_call.1} parent=0 // loop_header_branch
    %12 = sbr.rel (%p10) target = $region8
  $region5: #{tpu_custom_call.1} parent=0 // loop_body
    %s14 = ssub.s32 %s9, 1
    %s15 = ssub.s32 %s9, 2
    %s16 = sadd.s32 %s9, 1
    %s17 = ssub.s32 %s9, %s16
    %p18 = scmp.eq.s32.totalorder %s17, 0
    %s20 = sadd.s32 %s19, 1
    %s21 = scalar_select %p18, %s19, %s20
    %p24 = pneg %p18
    %p25 = scmp.eq.s32.totalorder %s9, 1
    %p26 = por %p24, %p25
    %p27 = scmp.ne.s32.totalorder %s19, %s22
    %p28 = scmp.eq.s32.totalorder %s9, 0
    %p29 = por %p27, %p28
    %p30 = scmp.ne.s32.totalorder %s19, %s22
    %p31 = scmp.eq.s32.totalorder %s14, 1
    %p32 = por %p30, %p31
    %p33 = scmp.ne.s32.totalorder %s22, %s23
    %p34 = scmp.eq.s32.totalorder %s14, 0
    %p35 = por %p33, %p34
    %p36 = scmp.ne.s32.totalorder %s22, %s23
    %p37 = scmp.eq.s32.totalorder %s15, 1
    %p38 = por %p36, %p37
    %p40 = scmp.ne.s32.totalorder %s23, %s39
    %p41 = scmp.eq.s32.totalorder %s15, 0
    %p42 = por %p40, %p41
    %s44 = sadd.s32 %s43, 1
    %p47 = scmp.eq.s32.totalorder %s9, 1
    %p48 = scmp.ne.s32.totalorder %s43, %s45
    %p49 = scmp.eq.s32.totalorder %s9, 0
    %p50 = por %p48, %p49
    %p51 = scmp.ne.s32.totalorder %s43, %s45
    %p52 = scmp.eq.s32.totalorder %s14, 1
    %p53 = por %p51, %p52
    %p54 = scmp.ne.s32.totalorder %s45, %s46
    %p55 = scmp.eq.s32.totalorder %s14, 0
    %p56 = por %p54, %p55
    %p57 = scmp.ne.s32.totalorder %s45, %s46
    %p58 = scmp.eq.s32.totalorder %s15, 1
    %p59 = por %p57, %p58
    %p61 = scmp.ne.s32.totalorder %s46, %s60
    %p62 = scmp.eq.s32.totalorder %s15, 0
    %p63 = por %p61, %p62
    %s65 = sadd.s32 %s64, 1
    %p68 = scmp.eq.s32.totalorder %s9, 1
    %p69 = scmp.ne.s32.totalorder %s64, %s66
    %p70 = scmp.eq.s32.totalorder %s9, 0
    %p71 = por %p69, %p70
    %p72 = scmp.ne.s32.totalorder %s64, %s66
    %p73 = scmp.eq.s32.totalorder %s14, 1
    %p74 = por %p72, %p73
    %p75 = scmp.ne.s32.totalorder %s66, %s67
    %p76 = scmp.eq.s32.totalorder %s14, 0
    %p77 = por %p75, %p76
    %p78 = scmp.ne.s32.totalorder %s66, %s67
    %p79 = scmp.eq.s32.totalorder %s15, 1
    %p80 = por %p78, %p79
    %p82 = scmp.ne.s32.totalorder %s67, %s81
    %p83 = scmp.eq.s32.totalorder %s15, 0
    %p84 = por %p82, %p83
    %s85 = ssub.s32 %s9, %s16
    %p86 = scmp.eq.s32.totalorder %s85, 0
    %s88 = sadd.s32 %s87, 1
    %s89 = scalar_select %p86, %s87, %s88
    %p92 = pneg %p86
    %p93 = scmp.eq.s32.totalorder %s9, 1
    %p94 = por %p92, %p93
    %p95 = scmp.ne.s32.totalorder %s87, %s90
    %p96 = scmp.eq.s32.totalorder %s9, 0
    %p97 = por %p95, %p96
    %p98 = scmp.ne.s32.totalorder %s87, %s90
    %p99 = scmp.eq.s32.totalorder %s14, 1
    %p100 = por %p98, %p99
    %p101 = scmp.ne.s32.totalorder %s90, %s91
    %p102 = scmp.eq.s32.totalorder %s14, 0
    %p103 = por %p101, %p102
    %p104 = scmp.ne.s32.totalorder %s90, %s91
    %p105 = scmp.eq.s32.totalorder %s15, 1
    %p106 = por %p104, %p105
    %p108 = scmp.ne.s32.totalorder %s91, %s107
    %p109 = scmp.eq.s32.totalorder %s15, 0
    %p110 = por %p108, %p109
    %p111 = scmp.le.s32.totalorder 1, %s9
    %p112 = scmp.lt.s32.totalorder %s9, 3
    %p113 = pnand %p111, %p112
    %p114 = pneg %p113
    // Predicated region
    $region9: #{tpu_custom_call.1} parent=5 // pred_check
      _
    $region10: #{tpu_custom_call.1} parent=5 // pred_check_branch
      %116 = sbr.rel (%p113) target = $region12
    $region11: #{tpu_custom_call.1} parent=5 // pred_region
      %s117 = ssub.s32 %s9, 1
      // Predicated region
      $region13: #{tpu_custom_call.1} parent=11 // pred_check
        %p118 = pneg %p56
      $region14: #{tpu_custom_call.1} parent=11 // pred_check_branch
        %120 = sbr.rel (%p118) target = $region16
      $region15: #{tpu_custom_call.1} parent=11 // pred_region
        _
      $region16: #{tpu_custom_call.1} parent=11 // pred_fallthru
        _
      // Predicated region
      $region17: #{tpu_custom_call.1} parent=11 // pred_check
        %p121 = pneg %p77
      $region18: #{tpu_custom_call.1} parent=11 // pred_check_branch
        %123 = sbr.rel (%p121) target = $region20
      $region19: #{tpu_custom_call.1} parent=11 // pred_region
        _
      $region20: #{tpu_custom_call.1} parent=11 // pred_fallthru
        _
    $region12: #{tpu_custom_call.1} parent=5 // pred_fallthru
      _
    %p124 = scmp.lt.s32.totalorder %s9, 2
    // Predicated region
    $region21: #{tpu_custom_call.1} parent=5 // pred_check
      %p125 = pneg %p124
    $region22: #{tpu_custom_call.1} parent=5 // pred_check_branch
      %127 = sbr.rel (%p125) target = $region24
    $region23: #{tpu_custom_call.1} parent=5 // pred_region
      // Predicated region
      $region25: #{tpu_custom_call.1} parent=23 // pred_check
        %p128 = pneg %p29
      $region26: #{tpu_custom_call.1} parent=23 // pred_check_branch
        %130 = sbr.rel (%p128) target = $region28
      $region27: #{tpu_custom_call.1} parent=23 // pred_region
        %p131 = scmp.lt.s32.totalorder %s9, 1
        %s132 = scalar_select %p131, %s9, 1
        %s133 = smul.addr %s132, 54
        %s134 = smul.addr %s133, 8
        %s135 = scalar_lea.vmem %s0, %s134
      $region28: #{tpu_custom_call.1} parent=23 // pred_fallthru
        _
    $region24: #{tpu_custom_call.1} parent=5 // pred_fallthru
      _
    %p136 = scmp.le.s32.totalorder 1, %s9
    %p137 = scmp.lt.s32.totalorder %s9, 3
    %p138 = pnand %p136, %p137
    %p139 = pneg %p138
    // Predicated region
    $region29: #{tpu_custom_call.1} parent=5 // pred_check
      _
    $region30: #{tpu_custom_call.1} parent=5 // pred_check_branch
      %141 = sbr.rel (%p138) target = $region32
    $region31: #{tpu_custom_call.1} parent=5 // pred_region
      %s142 = ssub.s32 %s9, 1
      %p143 = scmp.lt.s32.totalorder %s14, 1
      %s144 = scalar_select %p143, %s14, 1
      %s145 = smul.addr %s144, 54
      %s146 = smul.addr %s145, 8
      %s147 = scalar_lea.vmem %s0, %s146
      %p148 = pneg %p35
      %p149 = pneg %p32
      %p150 = pneg %p56
      %p151 = pneg %p53
      %p152 = pneg %p77
      %p153 = pneg %p74
      %p154 = pneg %p103
      %p155 = pneg %p100
      %p156 = scmp.lt.s32.totalorder %s14, 1
      %s157 = scalar_select %p156, %s14, 1
      %s158 = smul.addr %s157, 32
      %s159 = smul.addr %s158, 8
      %s160 = scalar_lea.vmem %s3, %s159
      %p161 = scmp.lt.s32.totalorder %s14, 1
      %s162 = scalar_select %p161, %s14, 1
      %s163 = smul.addr %s162, 54
      %s164 = smul.addr %s163, 8
      %s165 = scalar_lea.vmem %s0, %s164
      %p166 = scmp.lt.s32.totalorder %s14, 1
      %s167 = scalar_select %p166, %s14, 1
      %s168 = smul.addr %s167, 32
      %s169 = smul.addr %s168, 8
      %s170 = scalar_lea.vmem %s3, %s169
      %v171 = vld [vmem:[%s165] sm:$0xff]
      %v172 = vld [vmem:[%s165 + $0x8] sm:$0xff]
      %v173 = vld [vmem:[%s165 + $0x10] sm:$0x3]
      %v174 = vld [vmem:[%s165 + $0x18] sm:$0xff]
      %v175 = vld [vmem:[%s165 + $0x20] sm:$0xff]
      %v176 = vld [vmem:[%s165 + $0x28] sm:$0x3]
      %v177 = vld [vmem:[%s165 + $0x30] sm:$0xff]
      %v178 = vld [vmem:[%s165 + $0x38] sm:$0xff]
      %v179 = vld [vmem:[%s165 + $0x40] sm:$0x3]
      %v180 = vld [vmem:[%s165 + $0x48] sm:$0xff]
      %v181 = vld [vmem:[%s165 + $0x50] sm:$0xff]
      %v182 = vld [vmem:[%s165 + $0x58] sm:$0x3]
      %v183 = vld [vmem:[%s165 + $0x60] sm:$0xff]
      %v184 = vld [vmem:[%s165 + $0x68] sm:$0xff]
      %v185 = vld [vmem:[%s165 + $0x70] sm:$0x3]
      %v186 = vld [vmem:[%s165 + $0x78] sm:$0xff]
      %v187 = vld [vmem:[%s165 + $0x80] sm:$0xff]
      %v188 = vld [vmem:[%s165 + $0x88] sm:$0x3]
      %v189 = vld [vmem:[%s165 + $0x90] sm:$0xff]
      %v190 = vld [vmem:[%s165 + $0x98] sm:$0xff]
      %v191 = vld [vmem:[%s165 + $0xa0] sm:$0x3]
      %v192 = vld [vmem:[%s165 + $0xa8] sm:$0xff]
      %v193 = vld [vmem:[%s165 + $0xb0] sm:$0xff]
      %v194 = vld [vmem:[%s165 + $0xb8] sm:$0x3]
      %v195 = vld [vmem:[%s165 + $0xc0] sm:$0xff]
      %v196 = vld [vmem:[%s165 + $0xc8] sm:$0xff]
      %v197 = vld [vmem:[%s165 + $0xd0] sm:$0x3]
      %v198 = vld [vmem:[%s165 + $0xd8] sm:$0xff]
      %v199 = vld [vmem:[%s165 + $0xe0] sm:$0xff]
      %v200 = vld [vmem:[%s165 + $0xe8] sm:$0x3]
      %v201 = vld [vmem:[%s165 + $0xf0] sm:$0xff]
      %v202 = vld [vmem:[%s165 + $0xf8] sm:$0xff]
      %v203 = vld [vmem:[%s165 + $0x100] sm:$0x3]
      %v204 = vld [vmem:[%s165 + $0x108] sm:$0xff]
      %v205 = vld [vmem:[%s165 + $0x110] sm:$0xff]
      %v206 = vld [vmem:[%s165 + $0x118] sm:$0x3]
      %v207 = vld [vmem:[%s165 + $0x120] sm:$0xff]
      %v208 = vld [vmem:[%s165 + $0x128] sm:$0xff]
      %v209 = vld [vmem:[%s165 + $0x130] sm:$0x3]
      %v210 = vld [vmem:[%s165 + $0x138] sm:$0xff]
      %v211 = vld [vmem:[%s165 + $0x140] sm:$0xff]
      %v212 = vld [vmem:[%s165 + $0x148] sm:$0x3]
      %v213 = vld [vmem:[%s165 + $0x150] sm:$0xff]
      %v214 = vld [vmem:[%s165 + $0x158] sm:$0xff]
      %v215 = vld [vmem:[%s165 + $0x160] sm:$0x3]
      %v216 = vld [vmem:[%s165 + $0x168] sm:$0xff]
      %v217 = vld [vmem:[%s165 + $0x170] sm:$0xff]
      %v218 = vld [vmem:[%s165 + $0x178] sm:$0x3]
      %v219 = vld [vmem:[%s165 + $0x180] sm:$0xff]
      %v220 = vld [vmem:[%s165 + $0x188] sm:$0xff]
      %v221 = vld [vmem:[%s165 + $0x190] sm:$0x3]
      %v222 = vld [vmem:[%s165 + $0x198] sm:$0xff]
      %v223 = vld [vmem:[%s165 + $0x1a0] sm:$0xff]
      %v224 = vld [vmem:[%s165 + $0x1a8] sm:$0x3]
      %v225 = vld [vmem:[%s1] sm:$0xf]
      %v226 = vld [vmem:[%s1 + $0x4] sm:$0xf]
      %v227 = vld [vmem:[%s1 + $0x8] sm:$0xf]
      %v228 = vld [vmem:[%s1 + $0xc] sm:$0xf]
      %v229 = vld [vmem:[%s1 + $0x10] sm:$0xf]
      %v230 = vld [vmem:[%s1 + $0x14] sm:$0xf]
      %v231 = vld [vmem:[%s1 + $0x18] sm:$0xf]
      %v232 = vld [vmem:[%s1 + $0x1c] sm:$0xf]
      %v233 = vld [vmem:[%s1 + $0x20] sm:$0xf]
      %v234 = vld [vmem:[%s2] sm:$0x1]
      %vm283 = vcmask 1046528
      %v284 = vrot.slane %v171, 1
      %v285 = vrot.slane %v172, 1
      %v286 = vsel %vm283, %v284, %v285
      %v287 = vrot.slane %v173, 1
      %v288 = vsel %vm283, %v285, %v287
      %v289 = vrot.slane %v174, 1
      %v290 = vrot.slane %v175, 1
      %v291 = vsel %vm283, %v289, %v290
      %v292 = vrot.slane %v176, 1
      %v293 = vsel %vm283, %v290, %v292
      %v294 = vrot.slane %v177, 1
      %v295 = vrot.slane %v178, 1
      %v296 = vsel %vm283, %v294, %v295
      %v297 = vrot.slane %v179, 1
      %v298 = vsel %vm283, %v295, %v297
      %v299 = vrot.slane %v180, 1
      %v300 = vrot.slane %v181, 1
      %v301 = vsel %vm283, %v299, %v300
      %v302 = vrot.slane %v182, 1
      %v303 = vsel %vm283, %v300, %v302
      %v304 = vrot.slane %v183, 1
      %v305 = vrot.slane %v184, 1
      %v306 = vsel %vm283, %v304, %v305
      %v307 = vrot.slane %v185, 1
      %v308 = vsel %vm283, %v305, %v307
      %v309 = vrot.slane %v186, 1
      %v310 = vrot.slane %v187, 1
      %v311 = vsel %vm283, %v309, %v310
      %v312 = vrot.slane %v188, 1
      %v313 = vsel %vm283, %v310, %v312
      %v314 = vrot.slane %v189, 1
      %v315 = vrot.slane %v190, 1
      %v316 = vsel %vm283, %v314, %v315
      %v317 = vrot.slane %v191, 1
      %v318 = vsel %vm283, %v315, %v317
      %v319 = vrot.slane %v192, 1
      %v320 = vrot.slane %v193, 1
      %v321 = vsel %vm283, %v319, %v320
      %v322 = vrot.slane %v194, 1
      %v323 = vsel %vm283, %v320, %v322
      %v324 = vrot.slane %v195, 1
      %v325 = vrot.slane %v196, 1
      %v326 = vsel %vm283, %v324, %v325
      %v327 = vrot.slane %v197, 1
      %v328 = vsel %vm283, %v325, %v327
      %v329 = vrot.slane %v198, 1
      %v330 = vrot.slane %v199, 1
      %v331 = vsel %vm283, %v329, %v330
      %v332 = vrot.slane %v200, 1
      %v333 = vsel %vm283, %v330, %v332
      %v334 = vrot.slane %v201, 1
      %v335 = vrot.slane %v202, 1
      %v336 = vsel %vm283, %v334, %v335
      %v337 = vrot.slane %v203, 1
      %v338 = vsel %vm283, %v335, %v337
      %v339 = vrot.slane %v204, 1
      %v340 = vrot.slane %v205, 1
      %v341 = vsel %vm283, %v339, %v340
      %v342 = vrot.slane %v206, 1
      %v343 = vsel %vm283, %v340, %v342
      %v344 = vrot.slane %v207, 1
      %v345 = vrot.slane %v208, 1
      %v346 = vsel %vm283, %v344, %v345
      %v347 = vrot.slane %v209, 1
      %v348 = vsel %vm283, %v345, %v347
      %v349 = vrot.slane %v210, 1
      %v350 = vrot.slane %v211, 1
      %v351 = vsel %vm283, %v349, %v350
      %v352 = vrot.slane %v212, 1
      %v353 = vsel %vm283, %v350, %v352
      %v354 = vrot.slane %v213, 1
      %v355 = vrot.slane %v214, 1
      %v356 = vsel %vm283, %v354, %v355
      %v357 = vrot.slane %v215, 1
      %v358 = vsel %vm283, %v355, %v357
      %v359 = vrot.slane %v216, 1
      %v360 = vrot.slane %v217, 1
      %v361 = vsel %vm283, %v359, %v360
      %v362 = vrot.slane %v218, 1
      %v363 = vsel %vm283, %v360, %v362
      %vm364 = vcmask 31744
      %v365 = vsel %vm364, %v286, 0
      %v367 = vsel %vm364, %v288, 0
      %v369 = vsel %vm364, %v291, 0
      %v371 = vsel %vm364, %v293, 0
      %v373 = vsel %vm364, %v296, 0
      %v375 = vsel %vm364, %v298, 0
      %v377 = vsel %vm364, %v301, 0
      %v379 = vsel %vm364, %v303, 0
      %v381 = vsel %vm364, %v306, 0
      %v383 = vsel %vm364, %v308, 0
      %v385 = vsel %vm364, %v311, 0
      %v387 = vsel %vm364, %v313, 0
      %v389 = vsel %vm364, %v316, 0
      %v391 = vsel %vm364, %v318, 0
      %v393 = vsel %vm364, %v321, 0
      %v395 = vsel %vm364, %v323, 0
      %v397 = vsel %vm364, %v326, 0
      %v399 = vsel %vm364, %v328, 0
      %v401 = vsel %vm364, %v331, 0
      %v403 = vsel %vm364, %v333, 0
      %v405 = vsel %vm364, %v336, 0
      %v407 = vsel %vm364, %v338, 0
      %v409 = vsel %vm364, %v341, 0
      %v411 = vsel %vm364, %v343, 0
      %v413 = vsel %vm364, %v346, 0
      %v415 = vsel %vm364, %v348, 0
      %v417 = vsel %vm364, %v351, 0
      %v419 = vsel %vm364, %v353, 0
      %v421 = vsel %vm364, %v356, 0
      %v423 = vsel %vm364, %v358, 0
      %v425 = vsel %vm364, %v361, 0
      %v427 = vsel %vm364, %v363, 0
      %vm429 = vcmask 1043456
      %v431 = vsel %vm429, %v226, 0
      %433 = vmatprep.subr.mxu0 0.0
      %434 = vmatpush1.msra.mxu0 %v431
      %435 = vmatprep.subr.mxu0 0.0
      %436 = vmatpush1.msra.mxu0 0.0
      %437 = vmatprep.subr.mxu0 0.0
      %438 = vmatpush1.msra.mxu0 0.0
      %439 = vmatprep.subr.mxu0 0.0
      %440 = vmatpush1.msra.mxu0 0.0
      %441 = vmatprep.subr.mxu0 0.0
      %442 = vmatpush1.msra.mxu0 0.0
      %443 = vmatprep.subr.mxu0 0.0
      %444 = vmatpush1.msra.mxu0 0.0
      %445 = vmatprep.subr.mxu0 0.0
      %446 = vmatpush1.msra.mxu0 0.0
      %447 = vmatprep.subr.mxu0 0.0
      %448 = vmatpush1.msra.mxu0 0.0
      %449 = vmatprep.subr.mxu0 0.0
      %450 = vmatpush1.msra.mxu0 0.0
      %451 = vmatprep.subr.mxu0 0.0
      %452 = vmatpush1.msra.mxu0 0.0
      %453 = vmatprep.subr.mxu0 0.0
      %454 = vmatpush1.msra.mxu0 0.0
      %455 = vmatprep.subr.mxu0 0.0
      %456 = vmatpush1.msra.mxu0 0.0
      %457 = vmatprep.subr.mxu0 0.0
      %458 = vmatpush1.msra.mxu0 0.0
      %459 = vmatprep.subr.mxu0 0.0
      %460 = vmatpush1.msra.mxu0 0.0
      %461 = vmatprep.subr.mxu0 0.0
      %462 = vmatpush1.msra.mxu0 0.0
      %463 = vmatprep.subr.mxu0 0.0
      %464 = vmatpush1.msra.mxu0 0.0
      %465 = vmatprep.subr.mxu0 0.0
      %466 = vmatpush1.msra.mxu0 0.0
      %467 = vmatprep.subr.mxu0 0.0
      %468 = vmatpush1.msra.mxu0 0.0
      %469 = vmatprep.subr.mxu0 0.0
      %470 = vmatpush1.msra.mxu0 0.0
      %471 = vmatprep.subr.mxu0 0.0
      %472 = vmatpush1.msra.mxu0 0.0
      %473 = vmatprep.subr.mxu0 0.0
      %474 = vmatpush1.msra.mxu0 0.0
      %475 = vmatprep.subr.mxu0 0.0
      %476 = vmatpush1.msra.mxu0 0.0
      %477 = vmatprep.subr.mxu0 0.0
      %478 = vmatpush1.msra.mxu0 0.0
      %479 = vmatprep.subr.mxu0 0.0
      %480 = vmatpush1.msra.mxu0 0.0
      %481 = vmatprep.subr.mxu0 0.0
      %482 = vmatpush1.msra.mxu0 0.0
      %483 = vmatprep.subr.mxu0 0.0
      %484 = vmatpush1.msra.mxu0 0.0
      %485 = vmatprep.subr.mxu0 0.0
      %486 = vmatpush1.msra.mxu0 0.0
      %487 = vmatprep.subr.mxu0 0.0
      %488 = vmatpush1.msra.mxu0 0.0
      %489 = vmatprep.subr.mxu0 0.0
      %490 = vmatpush1.msra.mxu0 0.0
      %491 = vmatprep.subr.mxu0 0.0
      %492 = vmatpush1.msra.mxu0 0.0
      %493 = vmatprep.subr.mxu0 0.0
      %494 = vmatpush1.msra.mxu0 0.0
      %495 = vmatprep.subr.mxu0 0.0
      %496 = vmatpush1.msra.mxu0 0.0
      %497 = vmatprep.mubr.f32.mxu0 0.0
      %498 = vmatmul.mubr.f32.gmra.mrb[0].mxu0 %v365
      %v499 = vpop.f32.mrb[0].mxu0
      %v500 = vadd.f32 0.0, %v499
      %v501 = vpop.f32.mrb[0].mxu0
      %502 = vmatprep.mubr.f32.mxu0 0.0
      %503 = vmatmul.mubr.f32.gmra.mrb[0].mxu0 %v367
      %v504 = vpop.f32.mrb[0].mxu0
      %v505 = vadd.f32 0.0, %v504
      %v506 = vpop.f32.mrb[0].mxu0
      %507 = vmatprep.mubr.f32.mxu0 0.0
      %508 = vmatmul.mubr.f32.gmra.mrb[0].mxu0 %v369
      %v509 = vpop.f32.mrb[0].mxu0
      %v510 = vadd.f32 0.0, %v509
      %v511 = vpop.f32.mrb[0].mxu0
      %512 = vmatprep.mubr.f32.mxu0 0.0
      %513 = vmatmul.mubr.f32.gmra.mrb[0].mxu0 %v371
      %v514 = vpop.f32.mrb[0].mxu0
      %v515 = vadd.f32 0.0, %v514
      %v516 = vpop.f32.mrb[0].mxu0
      %517 = vmatprep.mubr.f32.mxu0 0.0
      %518 = vmatmul.mubr.f32.gmra.mrb[0].mxu0 %v373
      %v519 = vpop.f32.mrb[0].mxu0
      %v520 = vadd.f32 0.0, %v519
      %v521 = vpop.f32.mrb[0].mxu0
      %522 = vmatprep.mubr.f32.mxu0 0.0
      %523 = vmatmul.mubr.f32.gmra.mrb[0].mxu0 %v375
      %v524 = vpop.f32.mrb[0].mxu0
      %v525 = vadd.f32 0.0, %v524
      %v526 = vpop.f32.mrb[0].mxu0
      %527 = vmatprep.mubr.f32.mxu0 0.0
      %528 = vmatmul.mubr.f32.gmra.mrb[0].mxu0 %v377
      %v529 = vpop.f32.mrb[0].mxu0
      %v530 = vadd.f32 0.0, %v529
      %v531 = vpop.f32.mrb[0].mxu0
      %532 = vmatprep.mubr.f32.mxu0 0.0
      %533 = vmatmul.mubr.f32.gmra.mrb[0].mxu0 %v379
      %v534 = vpop.f32.mrb[0].mxu0
      %v535 = vadd.f32 0.0, %v534
      %v536 = vpop.f32.mrb[0].mxu0
      %537 = vmatprep.mubr.f32.mxu0 0.0
      %538 = vmatmul.mubr.f32.gmra.mrb[0].mxu0 %v381
      %v539 = vpop.f32.mrb[0].mxu0
      %v540 = vadd.f32 0.0, %v539
      %v541 = vpop.f32.mrb[0].mxu0
      %542 = vmatprep.mubr.f32.mxu0 0.0
      %543 = vmatmul.mubr.f32.gmra.mrb[0].mxu0 %v383
      %v544 = vpop.f32.mrb[0].mxu0
      %v545 = vadd.f32 0.0, %v544
      %v546 = vpop.f32.mrb[0].mxu0
      %547 = vmatprep.mubr.f32.mxu0 0.0
      %548 = vmatmul.mubr.f32.gmra.mrb[0].mxu0 %v385
      %v549 = vpop.f32.mrb[0].mxu0
      %v550 = vadd.f32 0.0, %v549
      %v551 = vpop.f32.mrb[0].mxu0
      %552 = vmatprep.mubr.f32.mxu0 0.0
      %553 = vmatmul.mubr.f32.gmra.mrb[0].mxu0 %v387
      %v554 = vpop.f32.mrb[0].mxu0
      %v555 = vadd.f32 0.0, %v554
      %v556 = vpop.f32.mrb[0].mxu0
      %557 = vmatprep.mubr.f32.mxu0 0.0
      %558 = vmatmul.mubr.f32.gmra.mrb[0].mxu0 %v389
      %v559 = vpop.f32.mrb[0].mxu0
      %v560 = vadd.f32 0.0, %v559
      %v561 = vpop.f32.mrb[0].mxu0
      %562 = vmatprep.mubr.f32.mxu0 0.0
      %563 = vmatmul.mubr.f32.gmra.mrb[0].mxu0 %v391
      %v564 = vpop.f32.mrb[0].mxu0
      %v565 = vadd.f32 0.0, %v564
      %v566 = vpop.f32.mrb[0].mxu0
      %567 = vmatprep.mubr.f32.mxu0 0.0
      %568 = vmatmul.mubr.f32.gmra.mrb[0].mxu0 %v393
      %v569 = vpop.f32.mrb[0].mxu0
      %v570 = vadd.f32 0.0, %v569
      %v571 = vpop.f32.mrb[0].mxu0
      %572 = vmatprep.mubr.f32.mxu0 0.0
      %573 = vmatmul.mubr.f32.gmra.mrb[0].mxu0 %v395
      %v574 = vpop.f32.mrb[0].mxu0
      %v575 = vadd.f32 0.0, %v574
      %v576 = vpop.f32.mrb[0].mxu0
      %577 = vmatprep.mubr.f32.mxu0 0.0
      %578 = vmatmul.mubr.f32.gmra.mrb[0].mxu0 %v397
      %v579 = vpop.f32.mrb[0].mxu0
      %v580 = vadd.f32 0.0, %v579
      %v581 = vpop.f32.mrb[0].mxu0
      %582 = vmatprep.mubr.f32.mxu0 0.0
      %583 = vmatmul.mubr.f32.gmra.mrb[0].mxu0 %v399
      %v584 = vpop.f32.mrb[0].mxu0
      %v585 = vadd.f32 0.0, %v584
      %v586 = vpop.f32.mrb[0].mxu0
      %587 = vmatprep.mubr.f32.mxu0 0.0
      %588 = vmatmul.mubr.f32.gmra.mrb[0].mxu0 %v401
      %v589 = vpop.f32.mrb[0].mxu0
      %v590 = vadd.f32 0.0, %v589
      %v591 = vpop.f32.mrb[0].mxu0
      %592 = vmatprep.mubr.f32.mxu0 0.0
      %593 = vmatmul.mubr.f32.gmra.mrb[0].mxu0 %v403
      %v594 = vpop.f32.mrb[0].mxu0
      %v595 = vadd.f32 0.0, %v594
      %v596 = vpop.f32.mrb[0].mxu0
      %597 = vmatprep.mubr.f32.mxu0 0.0
      %598 = vmatmul.mubr.f32.gmra.mrb[0].mxu0 %v405
      %v599 = vpop.f32.mrb[0].mxu0
      %v600 = vadd.f32 0.0, %v599
      %v601 = vpop.f32.mrb[0].mxu0
      %602 = vmatprep.mubr.f32.mxu0 0.0
      %603 = vmatmul.mubr.f32.gmra.mrb[0].mxu0 %v407
      %v604 = vpop.f32.mrb[0].mxu0
      %v605 = vadd.f32 0.0, %v604
      %v606 = vpop.f32.mrb[0].mxu0
      %607 = vmatprep.mubr.f32.mxu0 0.0
      %608 = vmatmul.mubr.f32.gmra.mrb[0].mxu0 %v409
      %v609 = vpop.f32.mrb[0].mxu0
      %v610 = vadd.f32 0.0, %v609
      %v611 = vpop.f32.mrb[0].mxu0
      %612 = vmatprep.mubr.f32.mxu0 0.0
      %613 = vmatmul.mubr.f32.gmra.mrb[0].mxu0 %v411
      %v614 = vpop.f32.mrb[0].mxu0
      %v615 = vadd.f32 0.0, %v614
      %v616 = vpop.f32.mrb[0].mxu0
      %617 = vmatprep.mubr.f32.mxu0 0.0
      %618 = vmatmul.mubr.f32.gmra.mrb[0].mxu0 %v413
      %v619 = vpop.f32.mrb[0].mxu0
      %v620 = vadd.f32 0.0, %v619
      %v621 = vpop.f32.mrb[0].mxu0
      %622 = vmatprep.mubr.f32.mxu0 0.0
      %623 = vmatmul.mubr.f32.gmra.mrb[0].mxu0 %v415
      %v624 = vpop.f32.mrb[0].mxu0
      %v625 = vadd.f32 0.0, %v624
      %v626 = vpop.f32.mrb[0].mxu0
      %627 = vmatprep.mubr.f32.mxu0 0.0
      %628 = vmatmul.mubr.f32.gmra.mrb[0].mxu0 %v417
      %v629 = vpop.f32.mrb[0].mxu0
      %v630 = vadd.f32 0.0, %v629
      %v631 = vpop.f32.mrb[0].mxu0
      %632 = vmatprep.mubr.f32.mxu0 0.0
      %633 = vmatmul.mubr.f32.gmra.mrb[0].mxu0 %v419
      %v634 = vpop.f32.mrb[0].mxu0
      %v635 = vadd.f32 0.0, %v634
      %v636 = vpop.f32.mrb[0].mxu0
      %637 = vmatprep.mubr.f32.mxu0 0.0
      %638 = vmatmul.mubr.f32.gmra.mrb[0].mxu0 %v421
      %v639 = vpop.f32.mrb[0].mxu0
      %v640 = vadd.f32 0.0, %v639
      %v641 = vpop.f32.mrb[0].mxu0
      %642 = vmatprep.mubr.f32.mxu0 0.0
      %643 = vmatmul.mubr.f32.gmra.mrb[0].mxu0 %v423
      %v644 = vpop.f32.mrb[0].mxu0
      %v645 = vadd.f32 0.0, %v644
      %v646 = vpop.f32.mrb[0].mxu0
      %647 = vmatprep.mubr.f32.mxu0 0.0
      %648 = vmatmul.mubr.f32.gmra.mrb[0].mxu0 %v425
      %v649 = vpop.f32.mrb[0].mxu0
      %v650 = vadd.f32 0.0, %v649
      %v651 = vpop.f32.mrb[0].mxu0
      %652 = vmatprep.mubr.f32.mxu0 0.0
      %653 = vmatmul.mubr.f32.gmra.mrb[0].mxu0 %v427
      %v654 = vpop.f32.mrb[0].mxu0
      %v655 = vadd.f32 0.0, %v654
      %v656 = vpop.f32.mrb[0].mxu0
      %657 = vdwg.mxu0
      %v658 = vsel %vm364, %v171, 0
      %v660 = vsel %vm364, %v172, 0
      %v662 = vsel %vm364, %v174, 0
      %v664 = vsel %vm364, %v175, 0
      %v666 = vsel %vm364, %v177, 0
      %v668 = vsel %vm364, %v178, 0
      %v670 = vsel %vm364, %v180, 0
      %v672 = vsel %vm364, %v181, 0
      %v674 = vsel %vm364, %v183, 0
      %v676 = vsel %vm364, %v184, 0
      %v678 = vsel %vm364, %v186, 0
      %v680 = vsel %vm364, %v187, 0
      %v682 = vsel %vm364, %v189, 0
      %v684 = vsel %vm364, %v190, 0
      %v686 = vsel %vm364, %v192, 0
      %v688 = vsel %vm364, %v193, 0
      %v690 = vsel %vm364, %v195, 0
      %v692 = vsel %vm364, %v196, 0
      %v694 = vsel %vm364, %v198, 0
      %v696 = vsel %vm364, %v199, 0
      %v698 = vsel %vm364, %v201, 0
      %v700 = vsel %vm364, %v202, 0
      %v702 = vsel %vm364, %v204, 0
      %v704 = vsel %vm364, %v205, 0
      %v706 = vsel %vm364, %v207, 0
      %v708 = vsel %vm364, %v208, 0
      %v710 = vsel %vm364, %v210, 0
      %v712 = vsel %vm364, %v211, 0
      %v714 = vsel %vm364, %v213, 0
      %v716 = vsel %vm364, %v214, 0
      %v718 = vsel %vm364, %v216, 0
      %v720 = vsel %vm364, %v217, 0
      %v723 = vsel %vm429, %v225, 0
      %725 = vmatprep.subr.mxu0 0.0
      %726 = vmatpush1.msra.mxu0 %v723
      %727 = vmatprep.subr.mxu0 0.0
      %728 = vmatpush1.msra.mxu0 0.0
      %729 = vmatprep.subr.mxu0 0.0
      %730 = vmatpush1.msra.mxu0 0.0
      %731 = vmatprep.subr.mxu0 0.0
      %732 = vmatpush1.msra.mxu0 0.0
      %733 = vmatprep.subr.mxu0 0.0
      %734 = vmatpush1.msra.mxu0 0.0
      %735 = vmatprep.subr.mxu0 0.0
      %736 = vmatpush1.msra.mxu0 0.0
      %737 = vmatprep.subr.mxu0 0.0
      %738 = vmatpush1.msra.mxu0 0.0
      %739 = vmatprep.subr.mxu0 0.0
      %740 = vmatpush1.msra.mxu0 0.0
      %741 = vmatprep.subr.mxu0 0.0
      %742 = vmatpush1.msra.mxu0 0.0
      %743 = vmatprep.subr.mxu0 0.0
      %744 = vmatpush1.msra.mxu0 0.0
      %745 = vmatprep.subr.mxu0 0.0
      %746 = vmatpush1.msra.mxu0 0.0
      %747 = vmatprep.subr.mxu0 0.0
      %748 = vmatpush1.msra.mxu0 0.0
      %749 = vmatprep.subr.mxu0 0.0
      %750 = vmatpush1.msra.mxu0 0.0
      %751 = vmatprep.subr.mxu0 0.0
      %752 = vmatpush1.msra.mxu0 0.0
      %753 = vmatprep.subr.mxu0 0.0
      %754 = vmatpush1.msra.mxu0 0.0
      %755 = vmatprep.subr.mxu0 0.0
      %756 = vmatpush1.msra.mxu0 0.0
      %757 = vmatprep.subr.mxu0 0.0
      %758 = vmatpush1.msra.mxu0 0.0
      %759 = vmatprep.subr.mxu0 0.0
      %760 = vmatpush1.msra.mxu0 0.0
      %761 = vmatprep.subr.mxu0 0.0
      %762 = vmatpush1.msra.mxu0 0.0
      %763 = vmatprep.subr.mxu0 0.0
      %764 = vmatpush1.msra.mxu0 0.0
      %765 = vmatprep.subr.mxu0 0.0
      %766 = vmatpush1.msra.mxu0 0.0
      %767 = vmatprep.subr.mxu0 0.0
      %768 = vmatpush1.msra.mxu0 0.0
      %769 = vmatprep.subr.mxu0 0.0
      %770 = vmatpush1.msra.mxu0 0.0
      %771 = vmatprep.subr.mxu0 0.0
      %772 = vmatpush1.msra.mxu0 0.0
      %773 = vmatprep.subr.mxu0 0.0
      %774 = vmatpush1.msra.mxu0 0.0
      %775 = vmatprep.subr.mxu0 0.0
      %776 = vmatpush1.msra.mxu0 0.0
      %777 = vmatprep.subr.mxu0 0.0
      %778 = vmatpush1.msra.mxu0 0.0
      %779 = vmatprep.subr.mxu0 0.0
      %780 = vmatpush1.msra.mxu0 0.0
      %781 = vmatprep.subr.mxu0 0.0
      %782 = vmatpush1.msra.mxu0 0.0
      %783 = vmatprep.subr.mxu0 0.0
      %784 = vmatpush1.msra.mxu0 0.0
      %785 = vmatprep.subr.mxu0 0.0
      %786 = vmatpush1.msra.mxu0 0.0
      %787 = vmatprep.subr.mxu0 0.0
      %788 = vmatpush1.msra.mxu0 0.0
      %789 = vmatprep.mubr.f32.mxu0 0.0
      %790 = vmatmul.mubr.f32.gmra.mrb[0].mxu0 %v658
      %v791 = vpop.f32.mrb[0].mxu0
      %v792 = vadd.f32 %v500, %v791
      %v793 = vpop.f32.mrb[0].mxu0
      %794 = vmatprep.mubr.f32.mxu0 0.0
      %795 = vmatmul.mubr.f32.gmra.mrb[0].mxu0 %v660
      %v796 = vpop.f32.mrb[0].mxu0
      %v797 = vadd.f32 %v505, %v796
      %v798 = vpop.f32.mrb[0].mxu0
      %799 = vmatprep.mubr.f32.mxu0 0.0
      %800 = vmatmul.mubr.f32.gmra.mrb[0].mxu0 %v662
      %v801 = vpop.f32.mrb[0].mxu0
      %v802 = vadd.f32 %v510, %v801
      %v803 = vpop.f32.mrb[0].mxu0
      %804 = vmatprep.mubr.f32.mxu0 0.0
      %805 = vmatmul.mubr.f32.gmra.mrb[0].mxu0 %v664
      %v806 = vpop.f32.mrb[0].mxu0
      %v807 = vadd.f32 %v515, %v806
      %v808 = vpop.f32.mrb[0].mxu0
      %809 = vmatprep.mubr.f32.mxu0 0.0
      %810 = vmatmul.mubr.f32.gmra.mrb[0].mxu0 %v666
      %v811 = vpop.f32.mrb[0].mxu0
      %v812 = vadd.f32 %v520, %v811
      %v813 = vpop.f32.mrb[0].mxu0
      %814 = vmatprep.mubr.f32.mxu0 0.0
      %815 = vmatmul.mubr.f32.gmra.mrb[0].mxu0 %v668
      %v816 = vpop.f32.mrb[0].mxu0
      %v817 = vadd.f32 %v525, %v816
      %v818 = vpop.f32.mrb[0].mxu0
      %819 = vmatprep.mubr.f32.mxu0 0.0
      %820 = vmatmul.mubr.f32.gmra.mrb[0].mxu0 %v670
      %v821 = vpop.f32.mrb[0].mxu0
      %v822 = vadd.f32 %v530, %v821
      %v823 = vpop.f32.mrb[0].mxu0
      %824 = vmatprep.mubr.f32.mxu0 0.0
      %825 = vmatmul.mubr.f32.gmra.mrb[0].mxu0 %v672
      %v826 = vpop.f32.mrb[0].mxu0
      %v827 = vadd.f32 %v535, %v826
      %v828 = vpop.f32.mrb[0].mxu0
      %829 = vmatprep.mubr.f32.mxu0 0.0
      %830 = vmatmul.mubr.f32.gmra.mrb[0].mxu0 %v674
      %v831 = vpop.f32.mrb[0].mxu0
      %v832 = vadd.f32 %v540, %v831
      %v833 = vpop.f32.mrb[0].mxu0
      %834 = vmatprep.mubr.f32.mxu0 0.0
      %835 = vmatmul.mubr.f32.gmra.mrb[0].mxu0 %v676
      %v836 = vpop.f32.mrb[0].mxu0
      %v837 = vadd.f32 %v545, %v836
      %v838 = vpop.f32.mrb[0].mxu0
      %839 = vmatprep.mubr.f32.mxu0 0.0
      %840 = vmatmul.mubr.f32.gmra.mrb[0].mxu0 %v678
      %v841 = vpop.f32.mrb[0].mxu0
      %v842 = vadd.f32 %v550, %v841
      %v843 = vpop.f32.mrb[0].mxu0
      %844 = vmatprep.mubr.f32.mxu0 0.0
      %845 = vmatmul.mubr.f32.gmra.mrb[0].mxu0 %v680
      %v846 = vpop.f32.mrb[0].mxu0
      %v847 = vadd.f32 %v555, %v846
      %v848 = vpop.f32.mrb[0].mxu0
      %849 = vmatprep.mubr.f32.mxu0 0.0
      %850 = vmatmul.mubr.f32.gmra.mrb[0].mxu0 %v682
      %v851 = vpop.f32.mrb[0].mxu0
      %v852 = vadd.f32 %v560, %v851
      %v853 = vpop.f32.mrb[0].mxu0
      %854 = vmatprep.mubr.f32.mxu0 0.0
      %855 = vmatmul.mubr.f32.gmra.mrb[0].mxu0 %v684
      %v856 = vpop.f32.mrb[0].mxu0
      %v857 = vadd.f32 %v565, %v856
      %v858 = vpop.f32.mrb[0].mxu0
      %859 = vmatprep.mubr.f32.mxu0 0.0
      %860 = vmatmul.mubr.f32.gmra.mrb[0].mxu0 %v686
      %v861 = vpop.f32.mrb[0].mxu0
      %v862 = vadd.f32 %v570, %v861
      %v863 = vpop.f32.mrb[0].mxu0
      %864 = vmatprep.mubr.f32.mxu0 0.0
      %865 = vmatmul.mubr.f32.gmra.mrb[0].mxu0 %v688
      %v866 = vpop.f32.mrb[0].mxu0
      %v867 = vadd.f32 %v575, %v866
      %v868 = vpop.f32.mrb[0].mxu0
      %869 = vmatprep.mubr.f32.mxu0 0.0
      %870 = vmatmul.mubr.f32.gmra.mrb[0].mxu0 %v690
      %v871 = vpop.f32.mrb[0].mxu0
      %v872 = vadd.f32 %v580, %v871
      %v873 = vpop.f32.mrb[0].mxu0
      %874 = vmatprep.mubr.f32.mxu0 0.0
      %875 = vmatmul.mubr.f32.gmra.mrb[0].mxu0 %v692
      %v876 = vpop.f32.mrb[0].mxu0
      %v877 = vadd.f32 %v585, %v876
      %v878 = vpop.f32.mrb[0].mxu0
      %879 = vmatprep.mubr.f32.mxu0 0.0
      %880 = vmatmul.mubr.f32.gmra.mrb[0].mxu0 %v694
      %v881 = vpop.f32.mrb[0].mxu0
      %v882 = vadd.f32 %v590, %v881
      %v883 = vpop.f32.mrb[0].mxu0
      %884 = vmatprep.mubr.f32.mxu0 0.0
      %885 = vmatmul.mubr.f32.gmra.mrb[0].mxu0 %v696
      %v886 = vpop.f32.mrb[0].mxu0
      %v887 = vadd.f32 %v595, %v886
      %v888 = vpop.f32.mrb[0].mxu0
      %889 = vmatprep.mubr.f32.mxu0 0.0
      %890 = vmatmul.mubr.f32.gmra.mrb[0].mxu0 %v698
      %v891 = vpop.f32.mrb[0].mxu0
      %v892 = vadd.f32 %v600, %v891
      %v893 = vpop.f32.mrb[0].mxu0
      %894 = vmatprep.mubr.f32.mxu0 0.0
      %895 = vmatmul.mubr.f32.gmra.mrb[0].mxu0 %v700
      %v896 = vpop.f32.mrb[0].mxu0
      %v897 = vadd.f32 %v605, %v896
      %v898 = vpop.f32.mrb[0].mxu0
      %899 = vmatprep.mubr.f32.mxu0 0.0
      %900 = vmatmul.mubr.f32.gmra.mrb[0].mxu0 %v702
      %v901 = vpop.f32.mrb[0].mxu0
      %v902 = vadd.f32 %v610, %v901
      %v903 = vpop.f32.mrb[0].mxu0
      %904 = vmatprep.mubr.f32.mxu0 0.0
      %905 = vmatmul.mubr.f32.gmra.mrb[0].mxu0 %v704
      %v906 = vpop.f32.mrb[0].mxu0
      %v907 = vadd.f32 %v615, %v906
      %v908 = vpop.f32.mrb[0].mxu0
      %909 = vmatprep.mubr.f32.mxu0 0.0
      %910 = vmatmul.mubr.f32.gmra.mrb[0].mxu0 %v706
      %v911 = vpop.f32.mrb[0].mxu0
      %v912 = vadd.f32 %v620, %v911
      %v913 = vpop.f32.mrb[0].mxu0
      %914 = vmatprep.mubr.f32.mxu0 0.0
      %915 = vmatmul.mubr.f32.gmra.mrb[0].mxu0 %v708
      %v916 = vpop.f32.mrb[0].mxu0
      %v917 = vadd.f32 %v625, %v916
      %v918 = vpop.f32.mrb[0].mxu0
      %919 = vmatprep.mubr.f32.mxu0 0.0
      %920 = vmatmul.mubr.f32.gmra.mrb[0].mxu0 %v710
      %v921 = vpop.f32.mrb[0].mxu0
      %v922 = vadd.f32 %v630, %v921
      %v923 = vpop.f32.mrb[0].mxu0
      %924 = vmatprep.mubr.f32.mxu0 0.0
      %925 = vmatmul.mubr.f32.gmra.mrb[0].mxu0 %v712
      %v926 = vpop.f32.mrb[0].mxu0
      %v927 = vadd.f32 %v635, %v926
      %v928 = vpop.f32.mrb[0].mxu0
      %929 = vmatprep.mubr.f32.mxu0 0.0
      %930 = vmatmul.mubr.f32.gmra.mrb[0].mxu0 %v714
      %v931 = vpop.f32.mrb[0].mxu0
      %v932 = vadd.f32 %v640, %v931
      %v933 = vpop.f32.mrb[0].mxu0
      %934 = vmatprep.mubr.f32.mxu0 0.0
      %935 = vmatmul.mubr.f32.gmra.mrb[0].mxu0 %v716
      %v936 = vpop.f32.mrb[0].mxu0
      %v937 = vadd.f32 %v645, %v936
      %v938 = vpop.f32.mrb[0].mxu0
      %939 = vmatprep.mubr.f32.mxu0 0.0
      %940 = vmatmul.mubr.f32.gmra.mrb[0].mxu0 %v718
      %v941 = vpop.f32.mrb[0].mxu0
      %v942 = vadd.f32 %v650, %v941
      %v943 = vpop.f32.mrb[0].mxu0
      %944 = vmatprep.mubr.f32.mxu0 0.0
      %945 = vmatmul.mubr.f32.gmra.mrb[0].mxu0 %v720
      %v946 = vpop.f32.mrb[0].mxu0
      %v947 = vadd.f32 %v655, %v946
      %v948 = vpop.f32.mrb[0].mxu0
      %949 = vdwg.mxu0
      %vm950 = vcmask 1045504
      %v951 = vrot.slane %v171, 2
      %v952 = vrot.slane %v172, 2
      %v953 = vsel %vm950, %v951, %v952
      %v954 = vrot.slane %v173, 2
      %v955 = vsel %vm950, %v952, %v954
      %v956 = vrot.slane %v174, 2
      %v957 = vrot.slane %v175, 2
      %v958 = vsel %vm950, %v956, %v957
      %v959 = vrot.slane %v176, 2
      %v960 = vsel %vm950, %v957, %v959
      %v961 = vrot.slane %v177, 2
      %v962 = vrot.slane %v178, 2
      %v963 = vsel %vm950, %v961, %v962
      %v964 = vrot.slane %v179, 2
      %v965 = vsel %vm950, %v962, %v964
      %v966 = vrot.slane %v180, 2
      %v967 = vrot.slane %v181, 2
      %v968 = vsel %vm950, %v966, %v967
      %v969 = vrot.slane %v182, 2
      %v970 = vsel %vm950, %v967, %v969
      %v971 = vrot.slane %v183, 2
      %v972 = vrot.slane %v184, 2
      %v973 = vsel %vm950, %v971, %v972
      %v974 = vrot.slane %v185, 2
      %v975 = vsel %vm950, %v972, %v974
      %v976 = vrot.slane %v186, 2
      %v977 = vrot.slane %v187, 2
      %v978 = vsel %vm950, %v976, %v977
      %v979 = vrot.slane %v188, 2
      %v980 = vsel %vm950, %v977, %v979
      %v981 = vrot.slane %v189, 2
      %v982 = vrot.slane %v190, 2
      %v983 = vsel %vm950, %v981, %v982
      %v984 = vrot.slane %v191, 2
      %v985 = vsel %vm950, %v982, %v984
      %v986 = vrot.slane %v192, 2
      %v987 = vrot.slane %v193, 2
      %v988 = vsel %vm950, %v986, %v987
      %v989 = vrot.slane %v194, 2
      %v990 = vsel %vm950, %v987, %v989
      %v991 = vrot.slane %v195, 2
      %v992 = vrot.slane %v196, 2
      %v993 = vsel %vm950, %v991, %v992
      %v994 = vrot.slane %v197, 2
      %v995 = vsel %vm950, %v992, %v994
      %v996 = vrot.slane %v198, 2
      %v997 = vrot.slane %v199, 2
      %v998 = vsel %vm950, %v996, %v997
      %v999 = vrot.slane %v200, 2
      %v1000 = vsel %vm950, %v997, %v999
      %v1001 = vrot.slane %v201, 2
      %v1002 = vrot.slane %v202, 2
      %v1003 = vsel %vm950, %v1001, %v1002
      %v1004 = vrot.slane %v203, 2
      %v1005 = vsel %vm950, %v1002, %v1004
      %v1006 = vrot.slane %v204, 2
      %v1007 = vrot.slane %v205, 2
      %v1008 = vsel %vm950, %v1006, %v1007
      %v1009 = vrot.slane %v206, 2
      %v1010 = vsel %vm950, %v1007, %v1009
      %v1011 = vrot.slane %v207, 2
      %v1012 = vrot.slane %v208, 2
      %v1013 = vsel %vm950, %v1011, %v1012
      %v1014 = vrot.slane %v209, 2
      %v1015 = vsel %vm950, %v1012, %v1014
      %v1016 = vrot.slane %v210, 2
      %v1017 = vrot.slane %v211, 2
      %v1018 = vsel %vm950, %v1016, %v1017
      %v1019 = vrot.slane %v212, 2
      %v1020 = vsel %vm950, %v1017, %v1019
      %v1021 = vrot.slane %v213, 2
      %v1022 = vrot.slane %v214, 2
      %v1023 = vsel %vm950, %v1021, %v1022
      %v1024 = vrot.slane %v215, 2
      %v1025 = vsel %vm950, %v1022, %v1024
      %v1026 = vrot.slane %v216, 2
      %v1027 = vrot.slane %v217, 2
      %v1028 = vsel %vm950, %v1026, %v1027
      %v1029 = vrot.slane %v218, 2
      %v1030 = vsel %vm950, %v1027, %v1029
      %v1031 = vsel %vm364, %v953, 0
      %v1033 = vsel %vm364, %v955, 0
      %v1035 = vsel %vm364, %v958, 0
      %v1037 = vsel %vm364, %v960, 0
      %v1039 = vsel %vm364, %v963, 0
      %v1041 = vsel %vm364, %v965, 0
      %v1043 = vsel %vm364, %v968, 0
      %v1045 = vsel %vm364, %v970, 0
      %v1047 = vsel %vm364, %v973, 0
      %v1049 = vsel %vm364, %v975, 0
      %v1051 = vsel %vm364, %v978, 0
      %v1053 = vsel %vm364, %v980, 0
      %v1055 = vsel %vm364, %v983, 0
      %v1057 = vsel %vm364, %v985, 0
      %v1059 = vsel %vm364, %v988, 0
      %v1061 = vsel %vm364, %v990, 0
      %v1063 = vsel %vm364, %v993, 0
      %v1065 = vsel %vm364, %v995, 0
      %v1067 = vsel %vm364, %v998, 0
      %v1069 = vsel %vm364, %v1000, 0
      %v1071 = vsel %vm364, %v1003, 0
      %v1073 = vsel %vm364, %v1005, 0
      %v1075 = vsel %vm364, %v1008, 0
      %v1077 = vsel %vm364, %v1010, 0
      %v1079 = vsel %vm364, %v1013, 0
      %v1081 = vsel %vm364, %v1015, 0
      %v1083 = vsel %vm364, %v1018, 0
      %v1085 = vsel %vm364, %v1020, 0
      %v1087 = vsel %vm364, %v1023, 0
      %v1089 = vsel %vm364, %v1025, 0
      %v1091 = vsel %vm364, %v1028, 0
      %v1093 = vsel %vm364, %v1030, 0
      %v1096 = vsel %vm429, %v227, 0
      %1098 = vmatprep.subr.mxu0 0.0
      %1099 = vmatpush1.msra.mxu0 %v1096
      %1100 = vmatprep.subr.mxu0 0.0
      %1101 = vmatpush1.msra.mxu0 0.0
      %1102 = vmatprep.subr.mxu0 0.0
      %1103 = vmatpush1.msra.mxu0 0.0
      %1104 = vmatprep.subr.mxu0 0.0
      %1105 = vmatpush1.msra.mxu0 0.0
      %1106 = vmatprep.subr.mxu0 0.0
      %1107 = vmatpush1.msra.mxu0 0.0
      %1108 = vmatprep.subr.mxu0 0.0
      %1109 = vmatpush1.msra.mxu0 0.0
      %1110 = vmatprep.subr.mxu0 0.0
      %1111 = vmatpush1.msra.mxu0 0.0
      %1112 = vmatprep.subr.mxu0 0.0
      %1113 = vmatpush1.msra.mxu0 0.0
      %1114 = vmatprep.subr.mxu0 0.0
      %1115 = vmatpush1.msra.mxu0 0.0
      %1116 = vmatprep.subr.mxu0 0.0
      %1117 = vmatpush1.msra.mxu0 0.0
      %1118 = vmatprep.subr.mxu0 0.0
      %1119 = vmatpush1.msra.mxu0 0.0
      %1120 = vmatprep.subr.mxu0 0.0
      %1121 = vmatpush1.msra.mxu0 0.0
      %1122 = vmatprep.subr.mxu0 0.0
      %1123 = vmatpush1.msra.mxu0 0.0
      %1124 = vmatprep.subr.mxu0 0.0
      %1125 = vmatpush1.msra.mxu0 0.0
      %1126 = vmatprep.subr.mxu0 0.0
      %1127 = vmatpush1.msra.mxu0 0.0
      %1128 = vmatprep.subr.mxu0 0.0
      %1129 = vmatpush1.msra.mxu0 0.0
      %1130 = vmatprep.subr.mxu0 0.0
      %1131 = vmatpush1.msra.mxu0 0.0
      %1132 = vmatprep.subr.mxu0 0.0
      %1133 = vmatpush1.msra.mxu0 0.0
      %1134 = vmatprep.subr.mxu0 0.0
      %1135 = vmatpush1.msra.mxu0 0.0
      %1136 = vmatprep.subr.mxu0 0.0
      %1137 = vmatpush1.msra.mxu0 0.0
      %1138 = vmatprep.subr.mxu0 0.0
      %1139 = vmatpush1.msra.mxu0 0.0
      %1140 = vmatprep.subr.mxu0 0.0
      %1141 = vmatpush1.msra.mxu0 0.0
      %1142 = vmatprep.subr.mxu0 0.0
      %1143 = vmatpush1.msra.mxu0 0.0
      %1144 = vmatprep.subr.mxu0 0.0
      %1145 = vmatpush1.msra.mxu0 0.0
      %1146 = vmatprep.subr.mxu0 0.0
      %1147 = vmatpush1.msra.mxu0 0.0
      %1148 = vmatprep.subr.mxu0 0.0
      %1149 = vmatpush1.msra.mxu0 0.0
      %1150 = vmatprep.subr.mxu0 0.0
      %1151 = vmatpush1.msra.mxu0 0.0
      %1152 = vmatprep.subr.mxu0 0.0
      %1153 = vmatpush1.msra.mxu0 0.0
      %1154 = vmatprep.subr.mxu0 0.0
      %1155 = vmatpush1.msra.mxu0 0.0
      %1156 = vmatprep.subr.mxu0 0.0
      %1157 = vmatpush1.msra.mxu0 0.0
      %1158 = vmatprep.subr.mxu0 0.0
      %1159 = vmatpush1.msra.mxu0 0.0
      %1160 = vmatprep.subr.mxu0 0.0
      %1161 = vmatpush1.msra.mxu0 0.0
      %1162 = vmatprep.mubr.f32.mxu0 0.0
      %1163 = vmatmul.mubr.f32.gmra.mrb[0].mxu0 %v1031
      %v1164 = vpop.f32.mrb[0].mxu0
      %v1165 = vadd.f32 0.0, %v1164
      %v1166 = vpop.f32.mrb[0].mxu0
      %1167 = vmatprep.mubr.f32.mxu0 0.0
      %1168 = vmatmul.mubr.f32.gmra.mrb[0].mxu0 %v1033
      %v1169 = vpop.f32.mrb[0].mxu0
      %v1170 = vadd.f32 0.0, %v1169
      %v1171 = vpop.f32.mrb[0].mxu0
      %1172 = vmatprep.mubr.f32.mxu0 0.0
      %1173 = vmatmul.mubr.f32.gmra.mrb[0].mxu0 %v1035
      %v1174 = vpop.f32.mrb[0].mxu0
      %v1175 = vadd.f32 0.0, %v1174
      %v1176 = vpop.f32.mrb[0].mxu0
      %1177 = vmatprep.mubr.f32.mxu0 0.0
      %1178 = vmatmul.mubr.f32.gmra.mrb[0].mxu0 %v1037
      %v1179 = vpop.f32.mrb[0].mxu0
      %v1180 = vadd.f32 0.0, %v1179
      %v1181 = vpop.f32.mrb[0].mxu0
      %1182 = vmatprep.mubr.f32.mxu0 0.0
      %1183 = vmatmul.mubr.f32.gmra.mrb[0].mxu0 %v1039
      %v1184 = vpop.f32.mrb[0].mxu0
      %v1185 = vadd.f32 0.0, %v1184
      %v1186 = vpop.f32.mrb[0].mxu0
      %1187 = vmatprep.mubr.f32.mxu0 0.0
      %1188 = vmatmul.mubr.f32.gmra.mrb[0].mxu0 %v1041
      %v1189 = vpop.f32.mrb[0].mxu0
      %v1190 = vadd.f32 0.0, %v1189
      %v1191 = vpop.f32.mrb[0].mxu0
      %1192 = vmatprep.mubr.f32.mxu0 0.0
      %1193 = vmatmul.mubr.f32.gmra.mrb[0].mxu0 %v1043
      %v1194 = vpop.f32.mrb[0].mxu0
      %v1195 = vadd.f32 0.0, %v1194
      %v1196 = vpop.f32.mrb[0].mxu0
      %1197 = vmatprep.mubr.f32.mxu0 0.0
      %1198 = vmatmul.mubr.f32.gmra.mrb[0].mxu0 %v1045
      %v1199 = vpop.f32.mrb[0].mxu0
      %v1200 = vadd.f32 0.0, %v1199
      %v1201 = vpop.f32.mrb[0].mxu0
      %1202 = vmatprep.mubr.f32.mxu0 0.0
      %1203 = vmatmul.mubr.f32.gmra.mrb[0].mxu0 %v1047
      %v1204 = vpop.f32.mrb[0].mxu0
      %v1205 = vadd.f32 0.0, %v1204
      %v1206 = vpop.f32.mrb[0].mxu0
      %1207 = vmatprep.mubr.f32.mxu0 0.0
      %1208 = vmatmul.mubr.f32.gmra.mrb[0].mxu0 %v1049
      %v1209 = vpop.f32.mrb[0].mxu0
      %v1210 = vadd.f32 0.0, %v1209
      %v1211 = vpop.f32.mrb[0].mxu0
      %1212 = vmatprep.mubr.f32.mxu0 0.0
      %1213 = vmatmul.mubr.f32.gmra.mrb[0].mxu0 %v1051
      %v1214 = vpop.f32.mrb[0].mxu0
      %v1215 = vadd.f32 0.0, %v1214
      %v1216 = vpop.f32.mrb[0].mxu0
      %1217 = vmatprep.mubr.f32.mxu0 0.0
      %1218 = vmatmul.mubr.f32.gmra.mrb[0].mxu0 %v1053
      %v1219 = vpop.f32.mrb[0].mxu0
      %v1220 = vadd.f32 0.0, %v1219
      %v1221 = vpop.f32.mrb[0].mxu0
      %1222 = vmatprep.mubr.f32.mxu0 0.0
      %1223 = vmatmul.mubr.f32.gmra.mrb[0].mxu0 %v1055
      %v1224 = vpop.f32.mrb[0].mxu0
      %v1225 = vadd.f32 0.0, %v1224
      %v1226 = vpop.f32.mrb[0].mxu0
      %1227 = vmatprep.mubr.f32.mxu0 0.0
      %1228 = vmatmul.mubr.f32.gmra.mrb[0].mxu0 %v1057
      %v1229 = vpop.f32.mrb[0].mxu0
      %v1230 = vadd.f32 0.0, %v1229
      %v1231 = vpop.f32.mrb[0].mxu0
      %1232 = vmatprep.mubr.f32.mxu0 0.0
      %1233 = vmatmul.mubr.f32.gmra.mrb[0].mxu0 %v1059
      %v1234 = vpop.f32.mrb[0].mxu0
      %v1235 = vadd.f32 0.0, %v1234
      %v1236 = vpop.f32.mrb[0].mxu0
      %1237 = vmatprep.mubr.f32.mxu0 0.0
      %1238 = vmatmul.mubr.f32.gmra.mrb[0].mxu0 %v1061
      %v1239 = vpop.f32.mrb[0].mxu0
      %v1240 = vadd.f32 0.0, %v1239
      %v1241 = vpop.f32.mrb[0].mxu0
      %1242 = vmatprep.mubr.f32.mxu0 0.0
      %1243 = vmatmul.mubr.f32.gmra.mrb[0].mxu0 %v1063
      %v1244 = vpop.f32.mrb[0].mxu0
      %v1245 = vadd.f32 0.0, %v1244
      %v1246 = vpop.f32.mrb[0].mxu0
      %1247 = vmatprep.mubr.f32.mxu0 0.0
      %1248 = vmatmul.mubr.f32.gmra.mrb[0].mxu0 %v1065
      %v1249 = vpop.f32.mrb[0].mxu0
      %v1250 = vadd.f32 0.0, %v1249
      %v1251 = vpop.f32.mrb[0].mxu0
      %1252 = vmatprep.mubr.f32.mxu0 0.0
      %1253 = vmatmul.mubr.f32.gmra.mrb[0].mxu0 %v1067
      %v1254 = vpop.f32.mrb[0].mxu0
      %v1255 = vadd.f32 0.0, %v1254
      %v1256 = vpop.f32.mrb[0].mxu0
      %1257 = vmatprep.mubr.f32.mxu0 0.0
      %1258 = vmatmul.mubr.f32.gmra.mrb[0].mxu0 %v1069
      %v1259 = vpop.f32.mrb[0].mxu0
      %v1260 = vadd.f32 0.0, %v1259
      %v1261 = vpop.f32.mrb[0].mxu0
      %1262 = vmatprep.mubr.f32.mxu0 0.0
      %1263 = vmatmul.mubr.f32.gmra.mrb[0].mxu0 %v1071
      %v1264 = vpop.f32.mrb[0].mxu0
      %v1265 = vadd.f32 0.0, %v1264
      %v1266 = vpop.f32.mrb[0].mxu0
      %1267 = vmatprep.mubr.f32.mxu0 0.0
      %1268 = vmatmul.mubr.f32.gmra.mrb[0].mxu0 %v1073
      %v1269 = vpop.f32.mrb[0].mxu0
      %v1270 = vadd.f32 0.0, %v1269
      %v1271 = vpop.f32.mrb[0].mxu0
      %1272 = vmatprep.mubr.f32.mxu0 0.0
      %1273 = vmatmul.mubr.f32.gmra.mrb[0].mxu0 %v1075
      %v1274 = vpop.f32.mrb[0].mxu0
      %v1275 = vadd.f32 0.0, %v1274
      %v1276 = vpop.f32.mrb[0].mxu0
      %1277 = vmatprep.mubr.f32.mxu0 0.0
      %1278 = vmatmul.mubr.f32.gmra.mrb[0].mxu0 %v1077
      %v1279 = vpop.f32.mrb[0].mxu0
      %v1280 = vadd.f32 0.0, %v1279
      %v1281 = vpop.f32.mrb[0].mxu0
      %1282 = vmatprep.mubr.f32.mxu0 0.0
      %1283 = vmatmul.mubr.f32.gmra.mrb[0].mxu0 %v1079
      %v1284 = vpop.f32.mrb[0].mxu0
      %v1285 = vadd.f32 0.0, %v1284
      %v1286 = vpop.f32.mrb[0].mxu0
      %1287 = vmatprep.mubr.f32.mxu0 0.0
      %1288 = vmatmul.mubr.f32.gmra.mrb[0].mxu0 %v1081
      %v1289 = vpop.f32.mrb[0].mxu0
      %v1290 = vadd.f32 0.0, %v1289
      %v1291 = vpop.f32.mrb[0].mxu0
      %1292 = vmatprep.mubr.f32.mxu0 0.0
      %1293 = vmatmul.mubr.f32.gmra.mrb[0].mxu0 %v1083
      %v1294 = vpop.f32.mrb[0].mxu0
      %v1295 = vadd.f32 0.0, %v1294
      %v1296 = vpop.f32.mrb[0].mxu0
      %1297 = vmatprep.mubr.f32.mxu0 0.0
      %1298 = vmatmul.mubr.f32.gmra.mrb[0].mxu0 %v1085
      %v1299 = vpop.f32.mrb[0].mxu0
      %v1300 = vadd.f32 0.0, %v1299
      %v1301 = vpop.f32.mrb[0].mxu0
      %1302 = vmatprep.mubr.f32.mxu0 0.0
      %1303 = vmatmul.mubr.f32.gmra.mrb[0].mxu0 %v1087
      %v1304 = vpop.f32.mrb[0].mxu0
      %v1305 = vadd.f32 0.0, %v1304
      %v1306 = vpop.f32.mrb[0].mxu0
      %1307 = vmatprep.mubr.f32.mxu0 0.0
      %1308 = vmatmul.mubr.f32.gmra.mrb[0].mxu0 %v1089
      %v1309 = vpop.f32.mrb[0].mxu0
      %v1310 = vadd.f32 0.0, %v1309
      %v1311 = vpop.f32.mrb[0].mxu0
      %1312 = vmatprep.mubr.f32.mxu0 0.0
      %1313 = vmatmul.mubr.f32.gmra.mrb[0].mxu0 %v1091
      %v1314 = vpop.f32.mrb[0].mxu0
      %v1315 = vadd.f32 0.0, %v1314
      %v1316 = vpop.f32.mrb[0].mxu0
      %1317 = vmatprep.mubr.f32.mxu0 0.0
      %1318 = vmatmul.mubr.f32.gmra.mrb[0].mxu0 %v1093
      %v1319 = vpop.f32.mrb[0].mxu0
      %v1320 = vadd.f32 0.0, %v1319
      %v1321 = vpop.f32.mrb[0].mxu0
      %1322 = vdwg.mxu0
      %v1323 = vadd.f32 %v792, %v1165
      %v1324 = vadd.f32 %v797, %v1170
      %v1325 = vadd.f32 %v802, %v1175
      %v1326 = vadd.f32 %v807, %v1180
      %v1327 = vadd.f32 %v812, %v1185
      %v1328 = vadd.f32 %v817, %v1190
      %v1329 = vadd.f32 %v822, %v1195
      %v1330 = vadd.f32 %v827, %v1200
      %v1331 = vadd.f32 %v832, %v1205
      %v1332 = vadd.f32 %v837, %v1210
      %v1333 = vadd.f32 %v842, %v1215
      %v1334 = vadd.f32 %v847, %v1220
      %v1335 = vadd.f32 %v852, %v1225
      %v1336 = vadd.f32 %v857, %v1230
      %v1337 = vadd.f32 %v862, %v1235
      %v1338 = vadd.f32 %v867, %v1240
      %v1339 = vadd.f32 %v872, %v1245
      %v1340 = vadd.f32 %v877, %v1250
      %v1341 = vadd.f32 %v882, %v1255
      %v1342 = vadd.f32 %v887, %v1260
      %v1343 = vadd.f32 %v892, %v1265
      %v1344 = vadd.f32 %v897, %v1270
      %v1345 = vadd.f32 %v902, %v1275
      %v1346 = vadd.f32 %v907, %v1280
      %v1347 = vadd.f32 %v912, %v1285
      %v1348 = vadd.f32 %v917, %v1290
      %v1349 = vadd.f32 %v922, %v1295
      %v1350 = vadd.f32 %v927, %v1300
      %v1351 = vadd.f32 %v932, %v1305
      %v1352 = vadd.f32 %v937, %v1310
      %v1353 = vadd.f32 %v942, %v1315
      %v1354 = vadd.f32 %v947, %v1320
      %v1356 = vsel %vm364, %v219, 0
      %v1359 = vsel %vm364, %v220, 0
      %v1362 = vsel %vm429, %v228, 0
      %1364 = vmatprep.subr.mxu0 0.0
      %1365 = vmatpush1.msra.mxu0 %v1362
      %1366 = vmatprep.subr.mxu0 0.0
      %1367 = vmatpush1.msra.mxu0 0.0
      %1368 = vmatprep.subr.mxu0 0.0
      %1369 = vmatpush1.msra.mxu0 0.0
      %1370 = vmatprep.subr.mxu0 0.0
      %1371 = vmatpush1.msra.mxu0 0.0
      %1372 = vmatprep.subr.mxu0 0.0
      %1373 = vmatpush1.msra.mxu0 0.0
      %1374 = vmatprep.subr.mxu0 0.0
      %1375 = vmatpush1.msra.mxu0 0.0
      %1376 = vmatprep.subr.mxu0 0.0
      %1377 = vmatpush1.msra.mxu0 0.0
      %1378 = vmatprep.subr.mxu0 0.0
      %1379 = vmatpush1.msra.mxu0 0.0
      %1380 = vmatprep.subr.mxu0 0.0
      %1381 = vmatpush1.msra.mxu0 0.0
      %1382 = vmatprep.subr.mxu0 0.0
      %1383 = vmatpush1.msra.mxu0 0.0
      %1384 = vmatprep.subr.mxu0 0.0
      %1385 = vmatpush1.msra.mxu0 0.0
      %1386 = vmatprep.subr.mxu0 0.0
      %1387 = vmatpush1.msra.mxu0 0.0
      %1388 = vmatprep.subr.mxu0 0.0
      %1389 = vmatpush1.msra.mxu0 0.0
      %1390 = vmatprep.subr.mxu0 0.0
      %1391 = vmatpush1.msra.mxu0 0.0
      %1392 = vmatprep.subr.mxu0 0.0
      %1393 = vmatpush1.msra.mxu0 0.0
      %1394 = vmatprep.subr.mxu0 0.0
      %1395 = vmatpush1.msra.mxu0 0.0
      %1396 = vmatprep.subr.mxu0 0.0
      %1397 = vmatpush1.msra.mxu0 0.0
      %1398 = vmatprep.subr.mxu0 0.0
      %1399 = vmatpush1.msra.mxu0 0.0
      %1400 = vmatprep.subr.mxu0 0.0
      %1401 = vmatpush1.msra.mxu0 0.0
      %1402 = vmatprep.subr.mxu0 0.0
      %1403 = vmatpush1.msra.mxu0 0.0
      %1404 = vmatprep.subr.mxu0 0.0
      %1405 = vmatpush1.msra.mxu0 0.0
      %1406 = vmatprep.subr.mxu0 0.0
      %1407 = vmatpush1.msra.mxu0 0.0
      %1408 = vmatprep.subr.mxu0 0.0
      %1409 = vmatpush1.msra.mxu0 0.0
      %1410 = vmatprep.subr.mxu0 0.0
      %1411 = vmatpush1.msra.mxu0 0.0
      %1412 = vmatprep.subr.mxu0 0.0
      %1413 = vmatpush1.msra.mxu0 0.0
      %1414 = vmatprep.subr.mxu0 0.0
      %1415 = vmatpush1.msra.mxu0 0.0
      %1416 = vmatprep.subr.mxu0 0.0
      %1417 = vmatpush1.msra.mxu0 0.0
      %1418 = vmatprep.subr.mxu0 0.0
      %1419 = vmatpush1.msra.mxu0 0.0
      %1420 = vmatprep.subr.mxu0 0.0
      %1421 = vmatpush1.msra.mxu0 0.0
      %1422 = vmatprep.subr.mxu0 0.0
      %1423 = vmatpush1.msra.mxu0 0.0
      %1424 = vmatprep.subr.mxu0 0.0
      %1425 = vmatpush1.msra.mxu0 0.0
      %1426 = vmatprep.subr.mxu0 0.0
      %1427 = vmatpush1.msra.mxu0 0.0
      %1428 = vmatprep.mubr.f32.mxu0 0.0
      %1429 = vmatmul.mubr.f32.gmra.mrb[0].mxu0 %v662
      %v1430 = vpop.f32.mrb[0].mxu0
      %v1431 = vadd.f32 0.0, %v1430
      %v1432 = vpop.f32.mrb[0].mxu0
      %1433 = vmatprep.mubr.f32.mxu0 0.0
      %1434 = vmatmul.mubr.f32.gmra.mrb[0].mxu0 %v664
      %v1435 = vpop.f32.mrb[0].mxu0
      %v1436 = vadd.f32 0.0, %v1435
      %v1437 = vpop.f32.mrb[0].mxu0
      %1438 = vmatprep.mubr.f32.mxu0 0.0
      %1439 = vmatmul.mubr.f32.gmra.mrb[0].mxu0 %v666
      %v1440 = vpop.f32.mrb[0].mxu0
      %v1441 = vadd.f32 0.0, %v1440
      %v1442 = vpop.f32.mrb[0].mxu0
      %1443 = vmatprep.mubr.f32.mxu0 0.0
      %1444 = vmatmul.mubr.f32.gmra.mrb[0].mxu0 %v668
      %v1445 = vpop.f32.mrb[0].mxu0
      %v1446 = vadd.f32 0.0, %v1445
      %v1447 = vpop.f32.mrb[0].mxu0
      %1448 = vmatprep.mubr.f32.mxu0 0.0
      %1449 = vmatmul.mubr.f32.gmra.mrb[0].mxu0 %v670
      %v1450 = vpop.f32.mrb[0].mxu0
      %v1451 = vadd.f32 0.0, %v1450
      %v1452 = vpop.f32.mrb[0].mxu0
      %1453 = vmatprep.mubr.f32.mxu0 0.0
      %1454 = vmatmul.mubr.f32.gmra.mrb[0].mxu0 %v672
      %v1455 = vpop.f32.mrb[0].mxu0
      %v1456 = vadd.f32 0.0, %v1455
      %v1457 = vpop.f32.mrb[0].mxu0
      %1458 = vmatprep.mubr.f32.mxu0 0.0
      %1459 = vmatmul.mubr.f32.gmra.mrb[0].mxu0 %v674
      %v1460 = vpop.f32.mrb[0].mxu0
      %v1461 = vadd.f32 0.0, %v1460
      %v1462 = vpop.f32.mrb[0].mxu0
      %1463 = vmatprep.mubr.f32.mxu0 0.0
      %1464 = vmatmul.mubr.f32.gmra.mrb[0].mxu0 %v676
      %v1465 = vpop.f32.mrb[0].mxu0
      %v1466 = vadd.f32 0.0, %v1465
      %v1467 = vpop.f32.mrb[0].mxu0
      %1468 = vmatprep.mubr.f32.mxu0 0.0
      %1469 = vmatmul.mubr.f32.gmra.mrb[0].mxu0 %v678
      %v1470 = vpop.f32.mrb[0].mxu0
      %v1471 = vadd.f32 0.0, %v1470
      %v1472 = vpop.f32.mrb[0].mxu0
      %1473 = vmatprep.mubr.f32.mxu0 0.0
      %1474 = vmatmul.mubr.f32.gmra.mrb[0].mxu0 %v680
      %v1475 = vpop.f32.mrb[0].mxu0
      %v1476 = vadd.f32 0.0, %v1475
      %v1477 = vpop.f32.mrb[0].mxu0
      %1478 = vmatprep.mubr.f32.mxu0 0.0
      %1479 = vmatmul.mubr.f32.gmra.mrb[0].mxu0 %v682
      %v1480 = vpop.f32.mrb[0].mxu0
      %v1481 = vadd.f32 0.0, %v1480
      %v1482 = vpop.f32.mrb[0].mxu0
      %1483 = vmatprep.mubr.f32.mxu0 0.0
      %1484 = vmatmul.mubr.f32.gmra.mrb[0].mxu0 %v684
      %v1485 = vpop.f32.mrb[0].mxu0
      %v1486 = vadd.f32 0.0, %v1485
      %v1487 = vpop.f32.mrb[0].mxu0
      %1488 = vmatprep.mubr.f32.mxu0 0.0
      %1489 = vmatmul.mubr.f32.gmra.mrb[0].mxu0 %v686
      %v1490 = vpop.f32.mrb[0].mxu0
      %v1491 = vadd.f32 0.0, %v1490
      %v1492 = vpop.f32.mrb[0].mxu0
      %1493 = vmatprep.mubr.f32.mxu0 0.0
      %1494 = vmatmul.mubr.f32.gmra.mrb[0].mxu0 %v688
      %v1495 = vpop.f32.mrb[0].mxu0
      %v1496 = vadd.f32 0.0, %v1495
      %v1497 = vpop.f32.mrb[0].mxu0
      %1498 = vmatprep.mubr.f32.mxu0 0.0
      %1499 = vmatmul.mubr.f32.gmra.mrb[0].mxu0 %v690
      %v1500 = vpop.f32.mrb[0].mxu0
      %v1501 = vadd.f32 0.0, %v1500
      %v1502 = vpop.f32.mrb[0].mxu0
      %1503 = vmatprep.mubr.f32.mxu0 0.0
      %1504 = vmatmul.mubr.f32.gmra.mrb[0].mxu0 %v692
      %v1505 = vpop.f32.mrb[0].mxu0
      %v1506 = vadd.f32 0.0, %v1505
      %v1507 = vpop.f32.mrb[0].mxu0
      %1508 = vmatprep.mubr.f32.mxu0 0.0
      %1509 = vmatmul.mubr.f32.gmra.mrb[0].mxu0 %v694
      %v1510 = vpop.f32.mrb[0].mxu0
      %v1511 = vadd.f32 0.0, %v1510
      %v1512 = vpop.f32.mrb[0].mxu0
      %1513 = vmatprep.mubr.f32.mxu0 0.0
      %1514 = vmatmul.mubr.f32.gmra.mrb[0].mxu0 %v696
      %v1515 = vpop.f32.mrb[0].mxu0
      %v1516 = vadd.f32 0.0, %v1515
      %v1517 = vpop.f32.mrb[0].mxu0
      %1518 = vmatprep.mubr.f32.mxu0 0.0
      %1519 = vmatmul.mubr.f32.gmra.mrb[0].mxu0 %v698
      %v1520 = vpop.f32.mrb[0].mxu0
      %v1521 = vadd.f32 0.0, %v1520
      %v1522 = vpop.f32.mrb[0].mxu0
      %1523 = vmatprep.mubr.f32.mxu0 0.0
      %1524 = vmatmul.mubr.f32.gmra.mrb[0].mxu0 %v700
      %v1525 = vpop.f32.mrb[0].mxu0
      %v1526 = vadd.f32 0.0, %v1525
      %v1527 = vpop.f32.mrb[0].mxu0
      %1528 = vmatprep.mubr.f32.mxu0 0.0
      %1529 = vmatmul.mubr.f32.gmra.mrb[0].mxu0 %v702
      %v1530 = vpop.f32.mrb[0].mxu0
      %v1531 = vadd.f32 0.0, %v1530
      %v1532 = vpop.f32.mrb[0].mxu0
      %1533 = vmatprep.mubr.f32.mxu0 0.0
      %1534 = vmatmul.mubr.f32.gmra.mrb[0].mxu0 %v704
      %v1535 = vpop.f32.mrb[0].mxu0
      %v1536 = vadd.f32 0.0, %v1535
      %v1537 = vpop.f32.mrb[0].mxu0
      %1538 = vmatprep.mubr.f32.mxu0 0.0
      %1539 = vmatmul.mubr.f32.gmra.mrb[0].mxu0 %v706
      %v1540 = vpop.f32.mrb[0].mxu0
      %v1541 = vadd.f32 0.0, %v1540
      %v1542 = vpop.f32.mrb[0].mxu0
      %1543 = vmatprep.mubr.f32.mxu0 0.0
      %1544 = vmatmul.mubr.f32.gmra.mrb[0].mxu0 %v708
      %v1545 = vpop.f32.mrb[0].mxu0
      %v1546 = vadd.f32 0.0, %v1545
      %v1547 = vpop.f32.mrb[0].mxu0
      %1548 = vmatprep.mubr.f32.mxu0 0.0
      %1549 = vmatmul.mubr.f32.gmra.mrb[0].mxu0 %v710
      %v1550 = vpop.f32.mrb[0].mxu0
      %v1551 = vadd.f32 0.0, %v1550
      %v1552 = vpop.f32.mrb[0].mxu0
      %1553 = vmatprep.mubr.f32.mxu0 0.0
      %1554 = vmatmul.mubr.f32.gmra.mrb[0].mxu0 %v712
      %v1555 = vpop.f32.mrb[0].mxu0
      %v1556 = vadd.f32 0.0, %v1555
      %v1557 = vpop.f32.mrb[0].mxu0
      %1558 = vmatprep.mubr.f32.mxu0 0.0
      %1559 = vmatmul.mubr.f32.gmra.mrb[0].mxu0 %v714
      %v1560 = vpop.f32.mrb[0].mxu0
      %v1561 = vadd.f32 0.0, %v1560
      %v1562 = vpop.f32.mrb[0].mxu0
      %1563 = vmatprep.mubr.f32.mxu0 0.0
      %1564 = vmatmul.mubr.f32.gmra.mrb[0].mxu0 %v716
      %v1565 = vpop.f32.mrb[0].mxu0
      %v1566 = vadd.f32 0.0, %v1565
      %v1567 = vpop.f32.mrb[0].mxu0
      %1568 = vmatprep.mubr.f32.mxu0 0.0
      %1569 = vmatmul.mubr.f32.gmra.mrb[0].mxu0 %v718
      %v1570 = vpop.f32.mrb[0].mxu0
      %v1571 = vadd.f32 0.0, %v1570
      %v1572 = vpop.f32.mrb[0].mxu0
      %1573 = vmatprep.mubr.f32.mxu0 0.0
      %1574 = vmatmul.mubr.f32.gmra.mrb[0].mxu0 %v720
      %v1575 = vpop.f32.mrb[0].mxu0
      %v1576 = vadd.f32 0.0, %v1575
      %v1577 = vpop.f32.mrb[0].mxu0
      %1578 = vmatprep.mubr.f32.mxu0 0.0
      %1579 = vmatmul.mubr.f32.gmra.mrb[0].mxu0 %v1356
      %v1580 = vpop.f32.mrb[0].mxu0
      %v1581 = vadd.f32 0.0, %v1580
      %v1582 = vpop.f32.mrb[0].mxu0
      %1583 = vmatprep.mubr.f32.mxu0 0.0
      %1584 = vmatmul.mubr.f32.gmra.mrb[0].mxu0 %v1359
      %v1585 = vpop.f32.mrb[0].mxu0
      %v1586 = vadd.f32 0.0, %v1585
      %v1587 = vpop.f32.mrb[0].mxu0
      %1588 = vdwg.mxu0
      %v1589 = vadd.f32 %v1323, %v1431
      %v1590 = vadd.f32 %v1324, %v1436
      %v1591 = vadd.f32 %v1325, %v1441
      %v1592 = vadd.f32 %v1326, %v1446
      %v1593 = vadd.f32 %v1327, %v1451
      %v1594 = vadd.f32 %v1328, %v1456
      %v1595 = vadd.f32 %v1329, %v1461
      %v1596 = vadd.f32 %v1330, %v1466
      %v1597 = vadd.f32 %v1331, %v1471
      %v1598 = vadd.f32 %v1332, %v1476
      %v1599 = vadd.f32 %v1333, %v1481
      %v1600 = vadd.f32 %v1334, %v1486
      %v1601 = vadd.f32 %v1335, %v1491
      %v1602 = vadd.f32 %v1336, %v1496
      %v1603 = vadd.f32 %v1337, %v1501
      %v1604 = vadd.f32 %v1338, %v1506
      %v1605 = vadd.f32 %v1339, %v1511
      %v1606 = vadd.f32 %v1340, %v1516
      %v1607 = vadd.f32 %v1341, %v1521
      %v1608 = vadd.f32 %v1342, %v1526
      %v1609 = vadd.f32 %v1343, %v1531
      %v1610 = vadd.f32 %v1344, %v1536
      %v1611 = vadd.f32 %v1345, %v1541
      %v1612 = vadd.f32 %v1346, %v1546
      %v1613 = vadd.f32 %v1347, %v1551
      %v1614 = vadd.f32 %v1348, %v1556
      %v1615 = vadd.f32 %v1349, %v1561
      %v1616 = vadd.f32 %v1350, %v1566
      %v1617 = vadd.f32 %v1351, %v1571
      %v1618 = vadd.f32 %v1352, %v1576
      %v1619 = vadd.f32 %v1353, %v1581
      %v1620 = vadd.f32 %v1354, %v1586
      %v1622 = vrot.slane %v219, 1
      %v1623 = vrot.slane %v220, 1
      %v1624 = vsel %vm283, %v1622, %v1623
      %v1625 = vrot.slane %v221, 1
      %v1626 = vsel %vm283, %v1623, %v1625
      %v1627 = vsel %vm364, %v1624, 0
      %v1629 = vsel %vm364, %v1626, 0
      %v1632 = vsel %vm429, %v229, 0
      %1634 = vmatprep.subr.mxu0 0.0
      %1635 = vmatpush1.msra.mxu0 %v1632
      %1636 = vmatprep.subr.mxu0 0.0
      %1637 = vmatpush1.msra.mxu0 0.0
      %1638 = vmatprep.subr.mxu0 0.0
      %1639 = vmatpush1.msra.mxu0 0.0
      %1640 = vmatprep.subr.mxu0 0.0
      %1641 = vmatpush1.msra.mxu0 0.0
      %1642 = vmatprep.subr.mxu0 0.0
      %1643 = vmatpush1.msra.mxu0 0.0
      %1644 = vmatprep.subr.mxu0 0.0
      %1645 = vmatpush1.msra.mxu0 0.0
      %1646 = vmatprep.subr.mxu0 0.0
      %1647 = vmatpush1.msra.mxu0 0.0
      %1648 = vmatprep.subr.mxu0 0.0
      %1649 = vmatpush1.msra.mxu0 0.0
      %1650 = vmatprep.subr.mxu0 0.0
      %1651 = vmatpush1.msra.mxu0 0.0
      %1652 = vmatprep.subr.mxu0 0.0
      %1653 = vmatpush1.msra.mxu0 0.0
      %1654 = vmatprep.subr.mxu0 0.0
      %1655 = vmatpush1.msra.mxu0 0.0
      %1656 = vmatprep.subr.mxu0 0.0
      %1657 = vmatpush1.msra.mxu0 0.0
      %1658 = vmatprep.subr.mxu0 0.0
      %1659 = vmatpush1.msra.mxu0 0.0
      %1660 = vmatprep.subr.mxu0 0.0
      %1661 = vmatpush1.msra.mxu0 0.0
      %1662 = vmatprep.subr.mxu0 0.0
      %1663 = vmatpush1.msra.mxu0 0.0
      %1664 = vmatprep.subr.mxu0 0.0
      %1665 = vmatpush1.msra.mxu0 0.0
      %1666 = vmatprep.subr.mxu0 0.0
      %1667 = vmatpush1.msra.mxu0 0.0
      %1668 = vmatprep.subr.mxu0 0.0
      %1669 = vmatpush1.msra.mxu0 0.0
      %1670 = vmatprep.subr.mxu0 0.0
      %1671 = vmatpush1.msra.mxu0 0.0
      %1672 = vmatprep.subr.mxu0 0.0
      %1673 = vmatpush1.msra.mxu0 0.0
      %1674 = vmatprep.subr.mxu0 0.0
      %1675 = vmatpush1.msra.mxu0 0.0
      %1676 = vmatprep.subr.mxu0 0.0
      %1677 = vmatpush1.msra.mxu0 0.0
      %1678 = vmatprep.subr.mxu0 0.0
      %1679 = vmatpush1.msra.mxu0 0.0
      %1680 = vmatprep.subr.mxu0 0.0
      %1681 = vmatpush1.msra.mxu0 0.0
      %1682 = vmatprep.subr.mxu0 0.0
      %1683 = vmatpush1.msra.mxu0 0.0
      %1684 = vmatprep.subr.mxu0 0.0
      %1685 = vmatpush1.msra.mxu0 0.0
      %1686 = vmatprep.subr.mxu0 0.0
      %1687 = vmatpush1.msra.mxu0 0.0
      %1688 = vmatprep.subr.mxu0 0.0
      %1689 = vmatpush1.msra.mxu0 0.0
      %1690 = vmatprep.subr.mxu0 0.0
      %1691 = vmatpush1.msra.mxu0 0.0
      %1692 = vmatprep.subr.mxu0 0.0
      %1693 = vmatpush1.msra.mxu0 0.0
      %1694 = vmatprep.subr.mxu0 0.0
      %1695 = vmatpush1.msra.mxu0 0.0
      %1696 = vmatprep.subr.mxu0 0.0
      %1697 = vmatpush1.msra.mxu0 0.0
      %1698 = vmatprep.mubr.f32.mxu0 0.0
      %1699 = vmatmul.mubr.f32.gmra.mrb[0].mxu0 %v369
      %v1700 = vpop.f32.mrb[0].mxu0
      %v1701 = vadd.f32 0.0, %v1700
      %v1702 = vpop.f32.mrb[0].mxu0
      %1703 = vmatprep.mubr.f32.mxu0 0.0
      %1704 = vmatmul.mubr.f32.gmra.mrb[0].mxu0 %v371
      %v1705 = vpop.f32.mrb[0].mxu0
      %v1706 = vadd.f32 0.0, %v1705
      %v1707 = vpop.f32.mrb[0].mxu0
      %1708 = vmatprep.mubr.f32.mxu0 0.0
      %1709 = vmatmul.mubr.f32.gmra.mrb[0].mxu0 %v373
      %v1710 = vpop.f32.mrb[0].mxu0
      %v1711 = vadd.f32 0.0, %v1710
      %v1712 = vpop.f32.mrb[0].mxu0
      %1713 = vmatprep.mubr.f32.mxu0 0.0
      %1714 = vmatmul.mubr.f32.gmra.mrb[0].mxu0 %v375
      %v1715 = vpop.f32.mrb[0].mxu0
      %v1716 = vadd.f32 0.0, %v1715
      %v1717 = vpop.f32.mrb[0].mxu0
      %1718 = vmatprep.mubr.f32.mxu0 0.0
      %1719 = vmatmul.mubr.f32.gmra.mrb[0].mxu0 %v377
      %v1720 = vpop.f32.mrb[0].mxu0
      %v1721 = vadd.f32 0.0, %v1720
      %v1722 = vpop.f32.mrb[0].mxu0
      %1723 = vmatprep.mubr.f32.mxu0 0.0
      %1724 = vmatmul.mubr.f32.gmra.mrb[0].mxu0 %v379
      %v1725 = vpop.f32.mrb[0].mxu0
      %v1726 = vadd.f32 0.0, %v1725
      %v1727 = vpop.f32.mrb[0].mxu0
      %1728 = vmatprep.mubr.f32.mxu0 0.0
      %1729 = vmatmul.mubr.f32.gmra.mrb[0].mxu0 %v381
      %v1730 = vpop.f32.mrb[0].mxu0
      %v1731 = vadd.f32 0.0, %v1730
      %v1732 = vpop.f32.mrb[0].mxu0
      %1733 = vmatprep.mubr.f32.mxu0 0.0
      %1734 = vmatmul.mubr.f32.gmra.mrb[0].mxu0 %v383
      %v1735 = vpop.f32.mrb[0].mxu0
      %v1736 = vadd.f32 0.0, %v1735
      %v1737 = vpop.f32.mrb[0].mxu0
      %1738 = vmatprep.mubr.f32.mxu0 0.0
      %1739 = vmatmul.mubr.f32.gmra.mrb[0].mxu0 %v385
      %v1740 = vpop.f32.mrb[0].mxu0
      %v1741 = vadd.f32 0.0, %v1740
      %v1742 = vpop.f32.mrb[0].mxu0
      %1743 = vmatprep.mubr.f32.mxu0 0.0
      %1744 = vmatmul.mubr.f32.gmra.mrb[0].mxu0 %v387
      %v1745 = vpop.f32.mrb[0].mxu0
      %v1746 = vadd.f32 0.0, %v1745
      %v1747 = vpop.f32.mrb[0].mxu0
      %1748 = vmatprep.mubr.f32.mxu0 0.0
      %1749 = vmatmul.mubr.f32.gmra.mrb[0].mxu0 %v389
      %v1750 = vpop.f32.mrb[0].mxu0
      %v1751 = vadd.f32 0.0, %v1750
      %v1752 = vpop.f32.mrb[0].mxu0
      %1753 = vmatprep.mubr.f32.mxu0 0.0
      %1754 = vmatmul.mubr.f32.gmra.mrb[0].mxu0 %v391
      %v1755 = vpop.f32.mrb[0].mxu0
      %v1756 = vadd.f32 0.0, %v1755
      %v1757 = vpop.f32.mrb[0].mxu0
      %1758 = vmatprep.mubr.f32.mxu0 0.0
      %1759 = vmatmul.mubr.f32.gmra.mrb[0].mxu0 %v393
      %v1760 = vpop.f32.mrb[0].mxu0
      %v1761 = vadd.f32 0.0, %v1760
      %v1762 = vpop.f32.mrb[0].mxu0
      %1763 = vmatprep.mubr.f32.mxu0 0.0
      %1764 = vmatmul.mubr.f32.gmra.mrb[0].mxu0 %v395
      %v1765 = vpop.f32.mrb[0].mxu0
      %v1766 = vadd.f32 0.0, %v1765
      %v1767 = vpop.f32.mrb[0].mxu0
      %1768 = vmatprep.mubr.f32.mxu0 0.0
      %1769 = vmatmul.mubr.f32.gmra.mrb[0].mxu0 %v397
      %v1770 = vpop.f32.mrb[0].mxu0
      %v1771 = vadd.f32 0.0, %v1770
      %v1772 = vpop.f32.mrb[0].mxu0
      %1773 = vmatprep.mubr.f32.mxu0 0.0
      %1774 = vmatmul.mubr.f32.gmra.mrb[0].mxu0 %v399
      %v1775 = vpop.f32.mrb[0].mxu0
      %v1776 = vadd.f32 0.0, %v1775
      %v1777 = vpop.f32.mrb[0].mxu0
      %1778 = vmatprep.mubr.f32.mxu0 0.0
      %1779 = vmatmul.mubr.f32.gmra.mrb[0].mxu0 %v401
      %v1780 = vpop.f32.mrb[0].mxu0
      %v1781 = vadd.f32 0.0, %v1780
      %v1782 = vpop.f32.mrb[0].mxu0
      %1783 = vmatprep.mubr.f32.mxu0 0.0
      %1784 = vmatmul.mubr.f32.gmra.mrb[0].mxu0 %v403
      %v1785 = vpop.f32.mrb[0].mxu0
      %v1786 = vadd.f32 0.0, %v1785
      %v1787 = vpop.f32.mrb[0].mxu0
      %1788 = vmatprep.mubr.f32.mxu0 0.0
      %1789 = vmatmul.mubr.f32.gmra.mrb[0].mxu0 %v405
      %v1790 = vpop.f32.mrb[0].mxu0
      %v1791 = vadd.f32 0.0, %v1790
      %v1792 = vpop.f32.mrb[0].mxu0
      %1793 = vmatprep.mubr.f32.mxu0 0.0
      %1794 = vmatmul.mubr.f32.gmra.mrb[0].mxu0 %v407
      %v1795 = vpop.f32.mrb[0].mxu0
      %v1796 = vadd.f32 0.0, %v1795
      %v1797 = vpop.f32.mrb[0].mxu0
      %1798 = vmatprep.mubr.f32.mxu0 0.0
      %1799 = vmatmul.mubr.f32.gmra.mrb[0].mxu0 %v409
      %v1800 = vpop.f32.mrb[0].mxu0
      %v1801 = vadd.f32 0.0, %v1800
      %v1802 = vpop.f32.mrb[0].mxu0
      %1803 = vmatprep.mubr.f32.mxu0 0.0
      %1804 = vmatmul.mubr.f32.gmra.mrb[0].mxu0 %v411
      %v1805 = vpop.f32.mrb[0].mxu0
      %v1806 = vadd.f32 0.0, %v1805
      %v1807 = vpop.f32.mrb[0].mxu0
      %1808 = vmatprep.mubr.f32.mxu0 0.0
      %1809 = vmatmul.mubr.f32.gmra.mrb[0].mxu0 %v413
      %v1810 = vpop.f32.mrb[0].mxu0
      %v1811 = vadd.f32 0.0, %v1810
      %v1812 = vpop.f32.mrb[0].mxu0
      %1813 = vmatprep.mubr.f32.mxu0 0.0
      %1814 = vmatmul.mubr.f32.gmra.mrb[0].mxu0 %v415
      %v1815 = vpop.f32.mrb[0].mxu0
      %v1816 = vadd.f32 0.0, %v1815
      %v1817 = vpop.f32.mrb[0].mxu0
      %1818 = vmatprep.mubr.f32.mxu0 0.0
      %1819 = vmatmul.mubr.f32.gmra.mrb[0].mxu0 %v417
      %v1820 = vpop.f32.mrb[0].mxu0
      %v1821 = vadd.f32 0.0, %v1820
      %v1822 = vpop.f32.mrb[0].mxu0
      %1823 = vmatprep.mubr.f32.mxu0 0.0
      %1824 = vmatmul.mubr.f32.gmra.mrb[0].mxu0 %v419
      %v1825 = vpop.f32.mrb[0].mxu0
      %v1826 = vadd.f32 0.0, %v1825
      %v1827 = vpop.f32.mrb[0].mxu0
      %1828 = vmatprep.mubr.f32.mxu0 0.0
      %1829 = vmatmul.mubr.f32.gmra.mrb[0].mxu0 %v421
      %v1830 = vpop.f32.mrb[0].mxu0
      %v1831 = vadd.f32 0.0, %v1830
      %v1832 = vpop.f32.mrb[0].mxu0
      %1833 = vmatprep.mubr.f32.mxu0 0.0
      %1834 = vmatmul.mubr.f32.gmra.mrb[0].mxu0 %v423
      %v1835 = vpop.f32.mrb[0].mxu0
      %v1836 = vadd.f32 0.0, %v1835
      %v1837 = vpop.f32.mrb[0].mxu0
      %1838 = vmatprep.mubr.f32.mxu0 0.0
      %1839 = vmatmul.mubr.f32.gmra.mrb[0].mxu0 %v425
      %v1840 = vpop.f32.mrb[0].mxu0
      %v1841 = vadd.f32 0.0, %v1840
      %v1842 = vpop.f32.mrb[0].mxu0
      %1843 = vmatprep.mubr.f32.mxu0 0.0
      %1844 = vmatmul.mubr.f32.gmra.mrb[0].mxu0 %v427
      %v1845 = vpop.f32.mrb[0].mxu0
      %v1846 = vadd.f32 0.0, %v1845
      %v1847 = vpop.f32.mrb[0].mxu0
      %1848 = vmatprep.mubr.f32.mxu0 0.0
      %1849 = vmatmul.mubr.f32.gmra.mrb[0].mxu0 %v1627
      %v1850 = vpop.f32.mrb[0].mxu0
      %v1851 = vadd.f32 0.0, %v1850
      %v1852 = vpop.f32.mrb[0].mxu0
      %1853 = vmatprep.mubr.f32.mxu0 0.0
      %1854 = vmatmul.mubr.f32.gmra.mrb[0].mxu0 %v1629
      %v1855 = vpop.f32.mrb[0].mxu0
      %v1856 = vadd.f32 0.0, %v1855
      %v1857 = vpop.f32.mrb[0].mxu0
      %1858 = vdwg.mxu0
      %v1859 = vadd.f32 %v1589, %v1701
      %v1860 = vadd.f32 %v1590, %v1706
      %v1861 = vadd.f32 %v1591, %v1711
      %v1862 = vadd.f32 %v1592, %v1716
      %v1863 = vadd.f32 %v1593, %v1721
      %v1864 = vadd.f32 %v1594, %v1726
      %v1865 = vadd.f32 %v1595, %v1731
      %v1866 = vadd.f32 %v1596, %v1736
      %v1867 = vadd.f32 %v1597, %v1741
      %v1868 = vadd.f32 %v1598, %v1746
      %v1869 = vadd.f32 %v1599, %v1751
      %v1870 = vadd.f32 %v1600, %v1756
      %v1871 = vadd.f32 %v1601, %v1761
      %v1872 = vadd.f32 %v1602, %v1766
      %v1873 = vadd.f32 %v1603, %v1771
      %v1874 = vadd.f32 %v1604, %v1776
      %v1875 = vadd.f32 %v1605, %v1781
      %v1876 = vadd.f32 %v1606, %v1786
      %v1877 = vadd.f32 %v1607, %v1791
      %v1878 = vadd.f32 %v1608, %v1796
      %v1879 = vadd.f32 %v1609, %v1801
      %v1880 = vadd.f32 %v1610, %v1806
      %v1881 = vadd.f32 %v1611, %v1811
      %v1882 = vadd.f32 %v1612, %v1816
      %v1883 = vadd.f32 %v1613, %v1821
      %v1884 = vadd.f32 %v1614, %v1826
      %v1885 = vadd.f32 %v1615, %v1831
      %v1886 = vadd.f32 %v1616, %v1836
      %v1887 = vadd.f32 %v1617, %v1841
      %v1888 = vadd.f32 %v1618, %v1846
      %v1889 = vadd.f32 %v1619, %v1851
      %v1890 = vadd.f32 %v1620, %v1856
      %v1891 = vrot.slane %v219, 2
      %v1892 = vrot.slane %v220, 2
      %v1893 = vsel %vm950, %v1891, %v1892
      %v1894 = vrot.slane %v221, 2
      %v1895 = vsel %vm950, %v1892, %v1894
      %v1896 = vsel %vm364, %v1893, 0
      %v1898 = vsel %vm364, %v1895, 0
      %v1901 = vsel %vm429, %v230, 0
      %1903 = vmatprep.subr.mxu0 0.0
      %1904 = vmatpush1.msra.mxu0 %v1901
      %1905 = vmatprep.subr.mxu0 0.0
      %1906 = vmatpush1.msra.mxu0 0.0
      %1907 = vmatprep.subr.mxu0 0.0
      %1908 = vmatpush1.msra.mxu0 0.0
      %1909 = vmatprep.subr.mxu0 0.0
      %1910 = vmatpush1.msra.mxu0 0.0
      %1911 = vmatprep.subr.mxu0 0.0
      %1912 = vmatpush1.msra.mxu0 0.0
      %1913 = vmatprep.subr.mxu0 0.0
      %1914 = vmatpush1.msra.mxu0 0.0
      %1915 = vmatprep.subr.mxu0 0.0
      %1916 = vmatpush1.msra.mxu0 0.0
      %1917 = vmatprep.subr.mxu0 0.0
      %1918 = vmatpush1.msra.mxu0 0.0
      %1919 = vmatprep.subr.mxu0 0.0
      %1920 = vmatpush1.msra.mxu0 0.0
      %1921 = vmatprep.subr.mxu0 0.0
      %1922 = vmatpush1.msra.mxu0 0.0
      %1923 = vmatprep.subr.mxu0 0.0
      %1924 = vmatpush1.msra.mxu0 0.0
      %1925 = vmatprep.subr.mxu0 0.0
      %1926 = vmatpush1.msra.mxu0 0.0
      %1927 = vmatprep.subr.mxu0 0.0
      %1928 = vmatpush1.msra.mxu0 0.0
      %1929 = vmatprep.subr.mxu0 0.0
      %1930 = vmatpush1.msra.mxu0 0.0
      %1931 = vmatprep.subr.mxu0 0.0
      %1932 = vmatpush1.msra.mxu0 0.0
      %1933 = vmatprep.subr.mxu0 0.0
      %1934 = vmatpush1.msra.mxu0 0.0
      %1935 = vmatprep.subr.mxu0 0.0
      %1936 = vmatpush1.msra.mxu0 0.0
      %1937 = vmatprep.subr.mxu0 0.0
      %1938 = vmatpush1.msra.mxu0 0.0
      %1939 = vmatprep.subr.mxu0 0.0
      %1940 = vmatpush1.msra.mxu0 0.0
      %1941 = vmatprep.subr.mxu0 0.0
      %1942 = vmatpush1.msra.mxu0 0.0
      %1943 = vmatprep.subr.mxu0 0.0
      %1944 = vmatpush1.msra.mxu0 0.0
      %1945 = vmatprep.subr.mxu0 0.0
      %1946 = vmatpush1.msra.mxu0 0.0
      %1947 = vmatprep.subr.mxu0 0.0
      %1948 = vmatpush1.msra.mxu0 0.0
      %1949 = vmatprep.subr.mxu0 0.0
      %1950 = vmatpush1.msra.mxu0 0.0
      %1951 = vmatprep.subr.mxu0 0.0
      %1952 = vmatpush1.msra.mxu0 0.0
      %1953 = vmatprep.subr.mxu0 0.0
      %1954 = vmatpush1.msra.mxu0 0.0
      %1955 = vmatprep.subr.mxu0 0.0
      %1956 = vmatpush1.msra.mxu0 0.0
      %1957 = vmatprep.subr.mxu0 0.0
      %1958 = vmatpush1.msra.mxu0 0.0
      %1959 = vmatprep.subr.mxu0 0.0
      %1960 = vmatpush1.msra.mxu0 0.0
      %1961 = vmatprep.subr.mxu0 0.0
      %1962 = vmatpush1.msra.mxu0 0.0
      %1963 = vmatprep.subr.mxu0 0.0
      %1964 = vmatpush1.msra.mxu0 0.0
      %1965 = vmatprep.subr.mxu0 0.0
      %1966 = vmatpush1.msra.mxu0 0.0
      %1967 = vmatprep.mubr.f32.mxu0 0.0
      %1968 = vmatmul.mubr.f32.gmra.mrb[0].mxu0 %v1035
      %v1969 = vpop.f32.mrb[0].mxu0
      %v1970 = vadd.f32 0.0, %v1969
      %v1971 = vpop.f32.mrb[0].mxu0
      %1972 = vmatprep.mubr.f32.mxu0 0.0
      %1973 = vmatmul.mubr.f32.gmra.mrb[0].mxu0 %v1037
      %v1974 = vpop.f32.mrb[0].mxu0
      %v1975 = vadd.f32 0.0, %v1974
      %v1976 = vpop.f32.mrb[0].mxu0
      %1977 = vmatprep.mubr.f32.mxu0 0.0
      %1978 = vmatmul.mubr.f32.gmra.mrb[0].mxu0 %v1039
      %v1979 = vpop.f32.mrb[0].mxu0
      %v1980 = vadd.f32 0.0, %v1979
      %v1981 = vpop.f32.mrb[0].mxu0
      %1982 = vmatprep.mubr.f32.mxu0 0.0
      %1983 = vmatmul.mubr.f32.gmra.mrb[0].mxu0 %v1041
      %v1984 = vpop.f32.mrb[0].mxu0
      %v1985 = vadd.f32 0.0, %v1984
      %v1986 = vpop.f32.mrb[0].mxu0
      %1987 = vmatprep.mubr.f32.mxu0 0.0
      %1988 = vmatmul.mubr.f32.gmra.mrb[0].mxu0 %v1043
      %v1989 = vpop.f32.mrb[0].mxu0
      %v1990 = vadd.f32 0.0, %v1989
      %v1991 = vpop.f32.mrb[0].mxu0
      %1992 = vmatprep.mubr.f32.mxu0 0.0
      %1993 = vmatmul.mubr.f32.gmra.mrb[0].mxu0 %v1045
      %v1994 = vpop.f32.mrb[0].mxu0
      %v1995 = vadd.f32 0.0, %v1994
      %v1996 = vpop.f32.mrb[0].mxu0
      %1997 = vmatprep.mubr.f32.mxu0 0.0
      %1998 = vmatmul.mubr.f32.gmra.mrb[0].mxu0 %v1047
      %v1999 = vpop.f32.mrb[0].mxu0
      %v2000 = vadd.f32 0.0, %v1999
      %v2001 = vpop.f32.mrb[0].mxu0
      %2002 = vmatprep.mubr.f32.mxu0 0.0
      %2003 = vmatmul.mubr.f32.gmra.mrb[0].mxu0 %v1049
      %v2004 = vpop.f32.mrb[0].mxu0
      %v2005 = vadd.f32 0.0, %v2004
      %v2006 = vpop.f32.mrb[0].mxu0
      %2007 = vmatprep.mubr.f32.mxu0 0.0
      %2008 = vmatmul.mubr.f32.gmra.mrb[0].mxu0 %v1051
      %v2009 = vpop.f32.mrb[0].mxu0
      %v2010 = vadd.f32 0.0, %v2009
      %v2011 = vpop.f32.mrb[0].mxu0
      %2012 = vmatprep.mubr.f32.mxu0 0.0
      %2013 = vmatmul.mubr.f32.gmra.mrb[0].mxu0 %v1053
      %v2014 = vpop.f32.mrb[0].mxu0
      %v2015 = vadd.f32 0.0, %v2014
      %v2016 = vpop.f32.mrb[0].mxu0
      %2017 = vmatprep.mubr.f32.mxu0 0.0
      %2018 = vmatmul.mubr.f32.gmra.mrb[0].mxu0 %v1055
      %v2019 = vpop.f32.mrb[0].mxu0
      %v2020 = vadd.f32 0.0, %v2019
      %v2021 = vpop.f32.mrb[0].mxu0
      %2022 = vmatprep.mubr.f32.mxu0 0.0
      %2023 = vmatmul.mubr.f32.gmra.mrb[0].mxu0 %v1057
      %v2024 = vpop.f32.mrb[0].mxu0
      %v2025 = vadd.f32 0.0, %v2024
      %v2026 = vpop.f32.mrb[0].mxu0
      %2027 = vmatprep.mubr.f32.mxu0 0.0
      %2028 = vmatmul.mubr.f32.gmra.mrb[0].mxu0 %v1059
      %v2029 = vpop.f32.mrb[0].mxu0
      %v2030 = vadd.f32 0.0, %v2029
      %v2031 = vpop.f32.mrb[0].mxu0
      %2032 = vmatprep.mubr.f32.mxu0 0.0
      %2033 = vmatmul.mubr.f32.gmra.mrb[0].mxu0 %v1061
      %v2034 = vpop.f32.mrb[0].mxu0
      %v2035 = vadd.f32 0.0, %v2034
      %v2036 = vpop.f32.mrb[0].mxu0
      %2037 = vmatprep.mubr.f32.mxu0 0.0
      %2038 = vmatmul.mubr.f32.gmra.mrb[0].mxu0 %v1063
      %v2039 = vpop.f32.mrb[0].mxu0
      %v2040 = vadd.f32 0.0, %v2039
      %v2041 = vpop.f32.mrb[0].mxu0
      %2042 = vmatprep.mubr.f32.mxu0 0.0
      %2043 = vmatmul.mubr.f32.gmra.mrb[0].mxu0 %v1065
      %v2044 = vpop.f32.mrb[0].mxu0
      %v2045 = vadd.f32 0.0, %v2044
      %v2046 = vpop.f32.mrb[0].mxu0
      %2047 = vmatprep.mubr.f32.mxu0 0.0
      %2048 = vmatmul.mubr.f32.gmra.mrb[0].mxu0 %v1067
      %v2049 = vpop.f32.mrb[0].mxu0
      %v2050 = vadd.f32 0.0, %v2049
      %v2051 = vpop.f32.mrb[0].mxu0
      %2052 = vmatprep.mubr.f32.mxu0 0.0
      %2053 = vmatmul.mubr.f32.gmra.mrb[0].mxu0 %v1069
      %v2054 = vpop.f32.mrb[0].mxu0
      %v2055 = vadd.f32 0.0, %v2054
      %v2056 = vpop.f32.mrb[0].mxu0
      %2057 = vmatprep.mubr.f32.mxu0 0.0
      %2058 = vmatmul.mubr.f32.gmra.mrb[0].mxu0 %v1071
      %v2059 = vpop.f32.mrb[0].mxu0
      %v2060 = vadd.f32 0.0, %v2059
      %v2061 = vpop.f32.mrb[0].mxu0
      %2062 = vmatprep.mubr.f32.mxu0 0.0
      %2063 = vmatmul.mubr.f32.gmra.mrb[0].mxu0 %v1073
      %v2064 = vpop.f32.mrb[0].mxu0
      %v2065 = vadd.f32 0.0, %v2064
      %v2066 = vpop.f32.mrb[0].mxu0
      %2067 = vmatprep.mubr.f32.mxu0 0.0
      %2068 = vmatmul.mubr.f32.gmra.mrb[0].mxu0 %v1075
      %v2069 = vpop.f32.mrb[0].mxu0
      %v2070 = vadd.f32 0.0, %v2069
      %v2071 = vpop.f32.mrb[0].mxu0
      %2072 = vmatprep.mubr.f32.mxu0 0.0
      %2073 = vmatmul.mubr.f32.gmra.mrb[0].mxu0 %v1077
      %v2074 = vpop.f32.mrb[0].mxu0
      %v2075 = vadd.f32 0.0, %v2074
      %v2076 = vpop.f32.mrb[0].mxu0
      %2077 = vmatprep.mubr.f32.mxu0 0.0
      %2078 = vmatmul.mubr.f32.gmra.mrb[0].mxu0 %v1079
      %v2079 = vpop.f32.mrb[0].mxu0
      %v2080 = vadd.f32 0.0, %v2079
      %v2081 = vpop.f32.mrb[0].mxu0
      %2082 = vmatprep.mubr.f32.mxu0 0.0
      %2083 = vmatmul.mubr.f32.gmra.mrb[0].mxu0 %v1081
      %v2084 = vpop.f32.mrb[0].mxu0
      %v2085 = vadd.f32 0.0, %v2084
      %v2086 = vpop.f32.mrb[0].mxu0
      %2087 = vmatprep.mubr.f32.mxu0 0.0
      %2088 = vmatmul.mubr.f32.gmra.mrb[0].mxu0 %v1083
      %v2089 = vpop.f32.mrb[0].mxu0
      %v2090 = vadd.f32 0.0, %v2089
      %v2091 = vpop.f32.mrb[0].mxu0
      %2092 = vmatprep.mubr.f32.mxu0 0.0
      %2093 = vmatmul.mubr.f32.gmra.mrb[0].mxu0 %v1085
      %v2094 = vpop.f32.mrb[0].mxu0
      %v2095 = vadd.f32 0.0, %v2094
      %v2096 = vpop.f32.mrb[0].mxu0
      %2097 = vmatprep.mubr.f32.mxu0 0.0
      %2098 = vmatmul.mubr.f32.gmra.mrb[0].mxu0 %v1087
      %v2099 = vpop.f32.mrb[0].mxu0
      %v2100 = vadd.f32 0.0, %v2099
      %v2101 = vpop.f32.mrb[0].mxu0
      %2102 = vmatprep.mubr.f32.mxu0 0.0
      %2103 = vmatmul.mubr.f32.gmra.mrb[0].mxu0 %v1089
      %v2104 = vpop.f32.mrb[0].mxu0
      %v2105 = vadd.f32 0.0, %v2104
      %v2106 = vpop.f32.mrb[0].mxu0
      %2107 = vmatprep.mubr.f32.mxu0 0.0
      %2108 = vmatmul.mubr.f32.gmra.mrb[0].mxu0 %v1091
      %v2109 = vpop.f32.mrb[0].mxu0
      %v2110 = vadd.f32 0.0, %v2109
      %v2111 = vpop.f32.mrb[0].mxu0
      %2112 = vmatprep.mubr.f32.mxu0 0.0
      %2113 = vmatmul.mubr.f32.gmra.mrb[0].mxu0 %v1093
      %v2114 = vpop.f32.mrb[0].mxu0
      %v2115 = vadd.f32 0.0, %v2114
      %v2116 = vpop.f32.mrb[0].mxu0
      %2117 = vmatprep.mubr.f32.mxu0 0.0
      %2118 = vmatmul.mubr.f32.gmra.mrb[0].mxu0 %v1896
      %v2119 = vpop.f32.mrb[0].mxu0
      %v2120 = vadd.f32 0.0, %v2119
      %v2121 = vpop.f32.mrb[0].mxu0
      %2122 = vmatprep.mubr.f32.mxu0 0.0
      %2123 = vmatmul.mubr.f32.gmra.mrb[0].mxu0 %v1898
      %v2124 = vpop.f32.mrb[0].mxu0
      %v2125 = vadd.f32 0.0, %v2124
      %v2126 = vpop.f32.mrb[0].mxu0
      %2127 = vdwg.mxu0
      %v2128 = vadd.f32 %v1859, %v1970
      %v2129 = vadd.f32 %v1860, %v1975
      %v2130 = vadd.f32 %v1861, %v1980
      %v2131 = vadd.f32 %v1862, %v1985
      %v2132 = vadd.f32 %v1863, %v1990
      %v2133 = vadd.f32 %v1864, %v1995
      %v2134 = vadd.f32 %v1865, %v2000
      %v2135 = vadd.f32 %v1866, %v2005
      %v2136 = vadd.f32 %v1867, %v2010
      %v2137 = vadd.f32 %v1868, %v2015
      %v2138 = vadd.f32 %v1869, %v2020
      %v2139 = vadd.f32 %v1870, %v2025
      %v2140 = vadd.f32 %v1871, %v2030
      %v2141 = vadd.f32 %v1872, %v2035
      %v2142 = vadd.f32 %v1873, %v2040
      %v2143 = vadd.f32 %v1874, %v2045
      %v2144 = vadd.f32 %v1875, %v2050
      %v2145 = vadd.f32 %v1876, %v2055
      %v2146 = vadd.f32 %v1877, %v2060
      %v2147 = vadd.f32 %v1878, %v2065
      %v2148 = vadd.f32 %v1879, %v2070
      %v2149 = vadd.f32 %v1880, %v2075
      %v2150 = vadd.f32 %v1881, %v2080
      %v2151 = vadd.f32 %v1882, %v2085
      %v2152 = vadd.f32 %v1883, %v2090
      %v2153 = vadd.f32 %v1884, %v2095
      %v2154 = vadd.f32 %v1885, %v2100
      %v2155 = vadd.f32 %v1886, %v2105
      %v2156 = vadd.f32 %v1887, %v2110
      %v2157 = vadd.f32 %v1888, %v2115
      %v2158 = vadd.f32 %v1889, %v2120
      %v2159 = vadd.f32 %v1890, %v2125
      %v2161 = vsel %vm364, %v222, 0
      %v2164 = vsel %vm364, %v223, 0
      %v2167 = vsel %vm429, %v231, 0
      %2169 = vmatprep.subr.mxu0 0.0
      %2170 = vmatpush1.msra.mxu0 %v2167
      %2171 = vmatprep.subr.mxu0 0.0
      %2172 = vmatpush1.msra.mxu0 0.0
      %2173 = vmatprep.subr.mxu0 0.0
      %2174 = vmatpush1.msra.mxu0 0.0
      %2175 = vmatprep.subr.mxu0 0.0
      %2176 = vmatpush1.msra.mxu0 0.0
      %2177 = vmatprep.subr.mxu0 0.0
      %2178 = vmatpush1.msra.mxu0 0.0
      %2179 = vmatprep.subr.mxu0 0.0
      %2180 = vmatpush1.msra.mxu0 0.0
      %2181 = vmatprep.subr.mxu0 0.0
      %2182 = vmatpush1.msra.mxu0 0.0
      %2183 = vmatprep.subr.mxu0 0.0
      %2184 = vmatpush1.msra.mxu0 0.0
      %2185 = vmatprep.subr.mxu0 0.0
      %2186 = vmatpush1.msra.mxu0 0.0
      %2187 = vmatprep.subr.mxu0 0.0
      %2188 = vmatpush1.msra.mxu0 0.0
      %2189 = vmatprep.subr.mxu0 0.0
      %2190 = vmatpush1.msra.mxu0 0.0
      %2191 = vmatprep.subr.mxu0 0.0
      %2192 = vmatpush1.msra.mxu0 0.0
      %2193 = vmatprep.subr.mxu0 0.0
      %2194 = vmatpush1.msra.mxu0 0.0
      %2195 = vmatprep.subr.mxu0 0.0
      %2196 = vmatpush1.msra.mxu0 0.0
      %2197 = vmatprep.subr.mxu0 0.0
      %2198 = vmatpush1.msra.mxu0 0.0
      %2199 = vmatprep.subr.mxu0 0.0
      %2200 = vmatpush1.msra.mxu0 0.0
      %2201 = vmatprep.subr.mxu0 0.0
      %2202 = vmatpush1.msra.mxu0 0.0
      %2203 = vmatprep.subr.mxu0 0.0
      %2204 = vmatpush1.msra.mxu0 0.0
      %2205 = vmatprep.subr.mxu0 0.0
      %2206 = vmatpush1.msra.mxu0 0.0
      %2207 = vmatprep.subr.mxu0 0.0
      %2208 = vmatpush1.msra.mxu0 0.0
      %2209 = vmatprep.subr.mxu0 0.0
      %2210 = vmatpush1.msra.mxu0 0.0
      %2211 = vmatprep.subr.mxu0 0.0
      %2212 = vmatpush1.msra.mxu0 0.0
      %2213 = vmatprep.subr.mxu0 0.0
      %2214 = vmatpush1.msra.mxu0 0.0
      %2215 = vmatprep.subr.mxu0 0.0
      %2216 = vmatpush1.msra.mxu0 0.0
      %2217 = vmatprep.subr.mxu0 0.0
      %2218 = vmatpush1.msra.mxu0 0.0
      %2219 = vmatprep.subr.mxu0 0.0
      %2220 = vmatpush1.msra.mxu0 0.0
      %2221 = vmatprep.subr.mxu0 0.0
      %2222 = vmatpush1.msra.mxu0 0.0
      %2223 = vmatprep.subr.mxu0 0.0
      %2224 = vmatpush1.msra.mxu0 0.0
      %2225 = vmatprep.subr.mxu0 0.0
      %2226 = vmatpush1.msra.mxu0 0.0
      %2227 = vmatprep.subr.mxu0 0.0
      %2228 = vmatpush1.msra.mxu0 0.0
      %2229 = vmatprep.subr.mxu0 0.0
      %2230 = vmatpush1.msra.mxu0 0.0
      %2231 = vmatprep.subr.mxu0 0.0
      %2232 = vmatpush1.msra.mxu0 0.0
      %2233 = vmatprep.mubr.f32.mxu0 0.0
      %2234 = vmatmul.mubr.f32.gmra.mrb[0].mxu0 %v666
      %v2235 = vpop.f32.mrb[0].mxu0
      %v2236 = vadd.f32 0.0, %v2235
      %v2237 = vpop.f32.mrb[0].mxu0
      %2238 = vmatprep.mubr.f32.mxu0 0.0
      %2239 = vmatmul.mubr.f32.gmra.mrb[0].mxu0 %v668
      %v2240 = vpop.f32.mrb[0].mxu0
      %v2241 = vadd.f32 0.0, %v2240
      %v2242 = vpop.f32.mrb[0].mxu0
      %2243 = vmatprep.mubr.f32.mxu0 0.0
      %2244 = vmatmul.mubr.f32.gmra.mrb[0].mxu0 %v670
      %v2245 = vpop.f32.mrb[0].mxu0
      %v2246 = vadd.f32 0.0, %v2245
      %v2247 = vpop.f32.mrb[0].mxu0
      %2248 = vmatprep.mubr.f32.mxu0 0.0
      %2249 = vmatmul.mubr.f32.gmra.mrb[0].mxu0 %v672
      %v2250 = vpop.f32.mrb[0].mxu0
      %v2251 = vadd.f32 0.0, %v2250
      %v2252 = vpop.f32.mrb[0].mxu0
      %2253 = vmatprep.mubr.f32.mxu0 0.0
      %2254 = vmatmul.mubr.f32.gmra.mrb[0].mxu0 %v674
      %v2255 = vpop.f32.mrb[0].mxu0
      %v2256 = vadd.f32 0.0, %v2255
      %v2257 = vpop.f32.mrb[0].mxu0
      %2258 = vmatprep.mubr.f32.mxu0 0.0
      %2259 = vmatmul.mubr.f32.gmra.mrb[0].mxu0 %v676
      %v2260 = vpop.f32.mrb[0].mxu0
      %v2261 = vadd.f32 0.0, %v2260
      %v2262 = vpop.f32.mrb[0].mxu0
      %2263 = vmatprep.mubr.f32.mxu0 0.0
      %2264 = vmatmul.mubr.f32.gmra.mrb[0].mxu0 %v678
      %v2265 = vpop.f32.mrb[0].mxu0
      %v2266 = vadd.f32 0.0, %v2265
      %v2267 = vpop.f32.mrb[0].mxu0
      %2268 = vmatprep.mubr.f32.mxu0 0.0
      %2269 = vmatmul.mubr.f32.gmra.mrb[0].mxu0 %v680
      %v2270 = vpop.f32.mrb[0].mxu0
      %v2271 = vadd.f32 0.0, %v2270
      %v2272 = vpop.f32.mrb[0].mxu0
      %2273 = vmatprep.mubr.f32.mxu0 0.0
      %2274 = vmatmul.mubr.f32.gmra.mrb[0].mxu0 %v682
      %v2275 = vpop.f32.mrb[0].mxu0
      %v2276 = vadd.f32 0.0, %v2275
      %v2277 = vpop.f32.mrb[0].mxu0
      %2278 = vmatprep.mubr.f32.mxu0 0.0
      %2279 = vmatmul.mubr.f32.gmra.mrb[0].mxu0 %v684
      %v2280 = vpop.f32.mrb[0].mxu0
      %v2281 = vadd.f32 0.0, %v2280
      %v2282 = vpop.f32.mrb[0].mxu0
      %2283 = vmatprep.mubr.f32.mxu0 0.0
      %2284 = vmatmul.mubr.f32.gmra.mrb[0].mxu0 %v686
      %v2285 = vpop.f32.mrb[0].mxu0
      %v2286 = vadd.f32 0.0, %v2285
      %v2287 = vpop.f32.mrb[0].mxu0
      %2288 = vmatprep.mubr.f32.mxu0 0.0
      %2289 = vmatmul.mubr.f32.gmra.mrb[0].mxu0 %v688
      %v2290 = vpop.f32.mrb[0].mxu0
      %v2291 = vadd.f32 0.0, %v2290
      %v2292 = vpop.f32.mrb[0].mxu0
      %2293 = vmatprep.mubr.f32.mxu0 0.0
      %2294 = vmatmul.mubr.f32.gmra.mrb[0].mxu0 %v690
      %v2295 = vpop.f32.mrb[0].mxu0
      %v2296 = vadd.f32 0.0, %v2295
      %v2297 = vpop.f32.mrb[0].mxu0
      %2298 = vmatprep.mubr.f32.mxu0 0.0
      %2299 = vmatmul.mubr.f32.gmra.mrb[0].mxu0 %v692
      %v2300 = vpop.f32.mrb[0].mxu0
      %v2301 = vadd.f32 0.0, %v2300
      %v2302 = vpop.f32.mrb[0].mxu0
      %2303 = vmatprep.mubr.f32.mxu0 0.0
      %2304 = vmatmul.mubr.f32.gmra.mrb[0].mxu0 %v694
      %v2305 = vpop.f32.mrb[0].mxu0
      %v2306 = vadd.f32 0.0, %v2305
      %v2307 = vpop.f32.mrb[0].mxu0
      %2308 = vmatprep.mubr.f32.mxu0 0.0
      %2309 = vmatmul.mubr.f32.gmra.mrb[0].mxu0 %v696
      %v2310 = vpop.f32.mrb[0].mxu0
      %v2311 = vadd.f32 0.0, %v2310
      %v2312 = vpop.f32.mrb[0].mxu0
      %2313 = vmatprep.mubr.f32.mxu0 0.0
      %2314 = vmatmul.mubr.f32.gmra.mrb[0].mxu0 %v698
      %v2315 = vpop.f32.mrb[0].mxu0
      %v2316 = vadd.f32 0.0, %v2315
      %v2317 = vpop.f32.mrb[0].mxu0
      %2318 = vmatprep.mubr.f32.mxu0 0.0
      %2319 = vmatmul.mubr.f32.gmra.mrb[0].mxu0 %v700
      %v2320 = vpop.f32.mrb[0].mxu0
      %v2321 = vadd.f32 0.0, %v2320
      %v2322 = vpop.f32.mrb[0].mxu0
      %2323 = vmatprep.mubr.f32.mxu0 0.0
      %2324 = vmatmul.mubr.f32.gmra.mrb[0].mxu0 %v702
      %v2325 = vpop.f32.mrb[0].mxu0
      %v2326 = vadd.f32 0.0, %v2325
      %v2327 = vpop.f32.mrb[0].mxu0
      %2328 = vmatprep.mubr.f32.mxu0 0.0
      %2329 = vmatmul.mubr.f32.gmra.mrb[0].mxu0 %v704
      %v2330 = vpop.f32.mrb[0].mxu0
      %v2331 = vadd.f32 0.0, %v2330
      %v2332 = vpop.f32.mrb[0].mxu0
      %2333 = vmatprep.mubr.f32.mxu0 0.0
      %2334 = vmatmul.mubr.f32.gmra.mrb[0].mxu0 %v706
      %v2335 = vpop.f32.mrb[0].mxu0
      %v2336 = vadd.f32 0.0, %v2335
      %v2337 = vpop.f32.mrb[0].mxu0
      %2338 = vmatprep.mubr.f32.mxu0 0.0
      %2339 = vmatmul.mubr.f32.gmra.mrb[0].mxu0 %v708
      %v2340 = vpop.f32.mrb[0].mxu0
      %v2341 = vadd.f32 0.0, %v2340
      %v2342 = vpop.f32.mrb[0].mxu0
      %2343 = vmatprep.mubr.f32.mxu0 0.0
      %2344 = vmatmul.mubr.f32.gmra.mrb[0].mxu0 %v710
      %v2345 = vpop.f32.mrb[0].mxu0
      %v2346 = vadd.f32 0.0, %v2345
      %v2347 = vpop.f32.mrb[0].mxu0
      %2348 = vmatprep.mubr.f32.mxu0 0.0
      %2349 = vmatmul.mubr.f32.gmra.mrb[0].mxu0 %v712
      %v2350 = vpop.f32.mrb[0].mxu0
      %v2351 = vadd.f32 0.0, %v2350
      %v2352 = vpop.f32.mrb[0].mxu0
      %2353 = vmatprep.mubr.f32.mxu0 0.0
      %2354 = vmatmul.mubr.f32.gmra.mrb[0].mxu0 %v714
      %v2355 = vpop.f32.mrb[0].mxu0
      %v2356 = vadd.f32 0.0, %v2355
      %v2357 = vpop.f32.mrb[0].mxu0
      %2358 = vmatprep.mubr.f32.mxu0 0.0
      %2359 = vmatmul.mubr.f32.gmra.mrb[0].mxu0 %v716
      %v2360 = vpop.f32.mrb[0].mxu0
      %v2361 = vadd.f32 0.0, %v2360
      %v2362 = vpop.f32.mrb[0].mxu0
      %2363 = vmatprep.mubr.f32.mxu0 0.0
      %2364 = vmatmul.mubr.f32.gmra.mrb[0].mxu0 %v718
      %v2365 = vpop.f32.mrb[0].mxu0
      %v2366 = vadd.f32 0.0, %v2365
      %v2367 = vpop.f32.mrb[0].mxu0
      %2368 = vmatprep.mubr.f32.mxu0 0.0
      %2369 = vmatmul.mubr.f32.gmra.mrb[0].mxu0 %v720
      %v2370 = vpop.f32.mrb[0].mxu0
      %v2371 = vadd.f32 0.0, %v2370
      %v2372 = vpop.f32.mrb[0].mxu0
      %2373 = vmatprep.mubr.f32.mxu0 0.0
      %2374 = vmatmul.mubr.f32.gmra.mrb[0].mxu0 %v1356
      %v2375 = vpop.f32.mrb[0].mxu0
      %v2376 = vadd.f32 0.0, %v2375
      %v2377 = vpop.f32.mrb[0].mxu0
      %2378 = vmatprep.mubr.f32.mxu0 0.0
      %2379 = vmatmul.mubr.f32.gmra.mrb[0].mxu0 %v1359
      %v2380 = vpop.f32.mrb[0].mxu0
      %v2381 = vadd.f32 0.0, %v2380
      %v2382 = vpop.f32.mrb[0].mxu0
      %2383 = vmatprep.mubr.f32.mxu0 0.0
      %2384 = vmatmul.mubr.f32.gmra.mrb[0].mxu0 %v2161
      %v2385 = vpop.f32.mrb[0].mxu0
      %v2386 = vadd.f32 0.0, %v2385
      %v2387 = vpop.f32.mrb[0].mxu0
      %2388 = vmatprep.mubr.f32.mxu0 0.0
      %2389 = vmatmul.mubr.f32.gmra.mrb[0].mxu0 %v2164
      %v2390 = vpop.f32.mrb[0].mxu0
      %v2391 = vadd.f32 0.0, %v2390
      %v2392 = vpop.f32.mrb[0].mxu0
      %2393 = vdwg.mxu0
      %v2394 = vadd.f32 %v2128, %v2236
      %v2395 = vadd.f32 %v2129, %v2241
      %v2396 = vadd.f32 %v2130, %v2246
      %v2397 = vadd.f32 %v2131, %v2251
      %v2398 = vadd.f32 %v2132, %v2256
      %v2399 = vadd.f32 %v2133, %v2261
      %v2400 = vadd.f32 %v2134, %v2266
      %v2401 = vadd.f32 %v2135, %v2271
      %v2402 = vadd.f32 %v2136, %v2276
      %v2403 = vadd.f32 %v2137, %v2281
      %v2404 = vadd.f32 %v2138, %v2286
      %v2405 = vadd.f32 %v2139, %v2291
      %v2406 = vadd.f32 %v2140, %v2296
      %v2407 = vadd.f32 %v2141, %v2301
      %v2408 = vadd.f32 %v2142, %v2306
      %v2409 = vadd.f32 %v2143, %v2311
      %v2410 = vadd.f32 %v2144, %v2316
      %v2411 = vadd.f32 %v2145, %v2321
      %v2412 = vadd.f32 %v2146, %v2326
      %v2413 = vadd.f32 %v2147, %v2331
      %v2414 = vadd.f32 %v2148, %v2336
      %v2415 = vadd.f32 %v2149, %v2341
      %v2416 = vadd.f32 %v2150, %v2346
      %v2417 = vadd.f32 %v2151, %v2351
      %v2418 = vadd.f32 %v2152, %v2356
      %v2419 = vadd.f32 %v2153, %v2361
      %v2420 = vadd.f32 %v2154, %v2366
      %v2421 = vadd.f32 %v2155, %v2371
      %v2422 = vadd.f32 %v2156, %v2376
      %v2423 = vadd.f32 %v2157, %v2381
      %v2424 = vadd.f32 %v2158, %v2386
      %v2425 = vadd.f32 %v2159, %v2391
      %v2427 = vrot.slane %v222, 1
      %v2428 = vrot.slane %v223, 1
      %v2429 = vsel %vm283, %v2427, %v2428
      %v2430 = vrot.slane %v224, 1
      %v2431 = vsel %vm283, %v2428, %v2430
      %v2432 = vsel %vm364, %v2429, 0
      %v2434 = vsel %vm364, %v2431, 0
      %v2437 = vsel %vm429, %v232, 0
      %2439 = vmatprep.subr.mxu0 0.0
      %2440 = vmatpush1.msra.mxu0 %v2437
      %2441 = vmatprep.subr.mxu0 0.0
      %2442 = vmatpush1.msra.mxu0 0.0
      %2443 = vmatprep.subr.mxu0 0.0
      %2444 = vmatpush1.msra.mxu0 0.0
      %2445 = vmatprep.subr.mxu0 0.0
      %2446 = vmatpush1.msra.mxu0 0.0
      %2447 = vmatprep.subr.mxu0 0.0
      %2448 = vmatpush1.msra.mxu0 0.0
      %2449 = vmatprep.subr.mxu0 0.0
      %2450 = vmatpush1.msra.mxu0 0.0
      %2451 = vmatprep.subr.mxu0 0.0
      %2452 = vmatpush1.msra.mxu0 0.0
      %2453 = vmatprep.subr.mxu0 0.0
      %2454 = vmatpush1.msra.mxu0 0.0
      %2455 = vmatprep.subr.mxu0 0.0
      %2456 = vmatpush1.msra.mxu0 0.0
      %2457 = vmatprep.subr.mxu0 0.0
      %2458 = vmatpush1.msra.mxu0 0.0
      %2459 = vmatprep.subr.mxu0 0.0
      %2460 = vmatpush1.msra.mxu0 0.0
      %2461 = vmatprep.subr.mxu0 0.0
      %2462 = vmatpush1.msra.mxu0 0.0
      %2463 = vmatprep.subr.mxu0 0.0
      %2464 = vmatpush1.msra.mxu0 0.0
      %2465 = vmatprep.subr.mxu0 0.0
      %2466 = vmatpush1.msra.mxu0 0.0
      %2467 = vmatprep.subr.mxu0 0.0
      %2468 = vmatpush1.msra.mxu0 0.0
      %2469 = vmatprep.subr.mxu0 0.0
      %2470 = vmatpush1.msra.mxu0 0.0
      %2471 = vmatprep.subr.mxu0 0.0
      %2472 = vmatpush1.msra.mxu0 0.0
      %2473 = vmatprep.subr.mxu0 0.0
      %2474 = vmatpush1.msra.mxu0 0.0
      %2475 = vmatprep.subr.mxu0 0.0
      %2476 = vmatpush1.msra.mxu0 0.0
      %2477 = vmatprep.subr.mxu0 0.0
      %2478 = vmatpush1.msra.mxu0 0.0
      %2479 = vmatprep.subr.mxu0 0.0
      %2480 = vmatpush1.msra.mxu0 0.0
      %2481 = vmatprep.subr.mxu0 0.0
      %2482 = vmatpush1.msra.mxu0 0.0
      %2483 = vmatprep.subr.mxu0 0.0
      %2484 = vmatpush1.msra.mxu0 0.0
      %2485 = vmatprep.subr.mxu0 0.0
      %2486 = vmatpush1.msra.mxu0 0.0
      %2487 = vmatprep.subr.mxu0 0.0
      %2488 = vmatpush1.msra.mxu0 0.0
      %2489 = vmatprep.subr.mxu0 0.0
      %2490 = vmatpush1.msra.mxu0 0.0
      %2491 = vmatprep.subr.mxu0 0.0
      %2492 = vmatpush1.msra.mxu0 0.0
      %2493 = vmatprep.subr.mxu0 0.0
      %2494 = vmatpush1.msra.mxu0 0.0
      %2495 = vmatprep.subr.mxu0 0.0
      %2496 = vmatpush1.msra.mxu0 0.0
      %2497 = vmatprep.subr.mxu0 0.0
      %2498 = vmatpush1.msra.mxu0 0.0
      %2499 = vmatprep.subr.mxu0 0.0
      %2500 = vmatpush1.msra.mxu0 0.0
      %2501 = vmatprep.subr.mxu0 0.0
      %2502 = vmatpush1.msra.mxu0 0.0
      %2503 = vmatprep.mubr.f32.mxu0 0.0
      %2504 = vmatmul.mubr.f32.gmra.mrb[0].mxu0 %v373
      %v2505 = vpop.f32.mrb[0].mxu0
      %v2506 = vadd.f32 0.0, %v2505
      %v2507 = vpop.f32.mrb[0].mxu0
      %2508 = vmatprep.mubr.f32.mxu0 0.0
      %2509 = vmatmul.mubr.f32.gmra.mrb[0].mxu0 %v375
      %v2510 = vpop.f32.mrb[0].mxu0
      %v2511 = vadd.f32 0.0, %v2510
      %v2512 = vpop.f32.mrb[0].mxu0
      %2513 = vmatprep.mubr.f32.mxu0 0.0
      %2514 = vmatmul.mubr.f32.gmra.mrb[0].mxu0 %v377
      %v2515 = vpop.f32.mrb[0].mxu0
      %v2516 = vadd.f32 0.0, %v2515
      %v2517 = vpop.f32.mrb[0].mxu0
      %2518 = vmatprep.mubr.f32.mxu0 0.0
      %2519 = vmatmul.mubr.f32.gmra.mrb[0].mxu0 %v379
      %v2520 = vpop.f32.mrb[0].mxu0
      %v2521 = vadd.f32 0.0, %v2520
      %v2522 = vpop.f32.mrb[0].mxu0
      %2523 = vmatprep.mubr.f32.mxu0 0.0
      %2524 = vmatmul.mubr.f32.gmra.mrb[0].mxu0 %v381
      %v2525 = vpop.f32.mrb[0].mxu0
      %v2526 = vadd.f32 0.0, %v2525
      %v2527 = vpop.f32.mrb[0].mxu0
      %2528 = vmatprep.mubr.f32.mxu0 0.0
      %2529 = vmatmul.mubr.f32.gmra.mrb[0].mxu0 %v383
      %v2530 = vpop.f32.mrb[0].mxu0
      %v2531 = vadd.f32 0.0, %v2530
      %v2532 = vpop.f32.mrb[0].mxu0
      %2533 = vmatprep.mubr.f32.mxu0 0.0
      %2534 = vmatmul.mubr.f32.gmra.mrb[0].mxu0 %v385
      %v2535 = vpop.f32.mrb[0].mxu0
      %v2536 = vadd.f32 0.0, %v2535
      %v2537 = vpop.f32.mrb[0].mxu0
      %2538 = vmatprep.mubr.f32.mxu0 0.0
      %2539 = vmatmul.mubr.f32.gmra.mrb[0].mxu0 %v387
      %v2540 = vpop.f32.mrb[0].mxu0
      %v2541 = vadd.f32 0.0, %v2540
      %v2542 = vpop.f32.mrb[0].mxu0
      %2543 = vmatprep.mubr.f32.mxu0 0.0
      %2544 = vmatmul.mubr.f32.gmra.mrb[0].mxu0 %v389
      %v2545 = vpop.f32.mrb[0].mxu0
      %v2546 = vadd.f32 0.0, %v2545
      %v2547 = vpop.f32.mrb[0].mxu0
      %2548 = vmatprep.mubr.f32.mxu0 0.0
      %2549 = vmatmul.mubr.f32.gmra.mrb[0].mxu0 %v391
      %v2550 = vpop.f32.mrb[0].mxu0
      %v2551 = vadd.f32 0.0, %v2550
      %v2552 = vpop.f32.mrb[0].mxu0
      %2553 = vmatprep.mubr.f32.mxu0 0.0
      %2554 = vmatmul.mubr.f32.gmra.mrb[0].mxu0 %v393
      %v2555 = vpop.f32.mrb[0].mxu0
      %v2556 = vadd.f32 0.0, %v2555
      %v2557 = vpop.f32.mrb[0].mxu0
      %2558 = vmatprep.mubr.f32.mxu0 0.0
      %2559 = vmatmul.mubr.f32.gmra.mrb[0].mxu0 %v395
      %v2560 = vpop.f32.mrb[0].mxu0
      %v2561 = vadd.f32 0.0, %v2560
      %v2562 = vpop.f32.mrb[0].mxu0
      %2563 = vmatprep.mubr.f32.mxu0 0.0
      %2564 = vmatmul.mubr.f32.gmra.mrb[0].mxu0 %v397
      %v2565 = vpop.f32.mrb[0].mxu0
      %v2566 = vadd.f32 0.0, %v2565
      %v2567 = vpop.f32.mrb[0].mxu0
      %2568 = vmatprep.mubr.f32.mxu0 0.0
      %2569 = vmatmul.mubr.f32.gmra.mrb[0].mxu0 %v399
      %v2570 = vpop.f32.mrb[0].mxu0
      %v2571 = vadd.f32 0.0, %v2570
      %v2572 = vpop.f32.mrb[0].mxu0
      %2573 = vmatprep.mubr.f32.mxu0 0.0
      %2574 = vmatmul.mubr.f32.gmra.mrb[0].mxu0 %v401
      %v2575 = vpop.f32.mrb[0].mxu0
      %v2576 = vadd.f32 0.0, %v2575
      %v2577 = vpop.f32.mrb[0].mxu0
      %2578 = vmatprep.mubr.f32.mxu0 0.0
      %2579 = vmatmul.mubr.f32.gmra.mrb[0].mxu0 %v403
      %v2580 = vpop.f32.mrb[0].mxu0
      %v2581 = vadd.f32 0.0, %v2580
      %v2582 = vpop.f32.mrb[0].mxu0
      %2583 = vmatprep.mubr.f32.mxu0 0.0
      %2584 = vmatmul.mubr.f32.gmra.mrb[0].mxu0 %v405
      %v2585 = vpop.f32.mrb[0].mxu0
      %v2586 = vadd.f32 0.0, %v2585
      %v2587 = vpop.f32.mrb[0].mxu0
      %2588 = vmatprep.mubr.f32.mxu0 0.0
      %2589 = vmatmul.mubr.f32.gmra.mrb[0].mxu0 %v407
      %v2590 = vpop.f32.mrb[0].mxu0
      %v2591 = vadd.f32 0.0, %v2590
      %v2592 = vpop.f32.mrb[0].mxu0
      %2593 = vmatprep.mubr.f32.mxu0 0.0
      %2594 = vmatmul.mubr.f32.gmra.mrb[0].mxu0 %v409
      %v2595 = vpop.f32.mrb[0].mxu0
      %v2596 = vadd.f32 0.0, %v2595
      %v2597 = vpop.f32.mrb[0].mxu0
      %2598 = vmatprep.mubr.f32.mxu0 0.0
      %2599 = vmatmul.mubr.f32.gmra.mrb[0].mxu0 %v411
      %v2600 = vpop.f32.mrb[0].mxu0
      %v2601 = vadd.f32 0.0, %v2600
      %v2602 = vpop.f32.mrb[0].mxu0
      %2603 = vmatprep.mubr.f32.mxu0 0.0
      %2604 = vmatmul.mubr.f32.gmra.mrb[0].mxu0 %v413
      %v2605 = vpop.f32.mrb[0].mxu0
      %v2606 = vadd.f32 0.0, %v2605
      %v2607 = vpop.f32.mrb[0].mxu0
      %2608 = vmatprep.mubr.f32.mxu0 0.0
      %2609 = vmatmul.mubr.f32.gmra.mrb[0].mxu0 %v415
      %v2610 = vpop.f32.mrb[0].mxu0
      %v2611 = vadd.f32 0.0, %v2610
      %v2612 = vpop.f32.mrb[0].mxu0
      %2613 = vmatprep.mubr.f32.mxu0 0.0
      %2614 = vmatmul.mubr.f32.gmra.mrb[0].mxu0 %v417
      %v2615 = vpop.f32.mrb[0].mxu0
      %v2616 = vadd.f32 0.0, %v2615
      %v2617 = vpop.f32.mrb[0].mxu0
      %2618 = vmatprep.mubr.f32.mxu0 0.0
      %2619 = vmatmul.mubr.f32.gmra.mrb[0].mxu0 %v419
      %v2620 = vpop.f32.mrb[0].mxu0
      %v2621 = vadd.f32 0.0, %v2620
      %v2622 = vpop.f32.mrb[0].mxu0
      %2623 = vmatprep.mubr.f32.mxu0 0.0
      %2624 = vmatmul.mubr.f32.gmra.mrb[0].mxu0 %v421
      %v2625 = vpop.f32.mrb[0].mxu0
      %v2626 = vadd.f32 0.0, %v2625
      %v2627 = vpop.f32.mrb[0].mxu0
      %2628 = vmatprep.mubr.f32.mxu0 0.0
      %2629 = vmatmul.mubr.f32.gmra.mrb[0].mxu0 %v423
      %v2630 = vpop.f32.mrb[0].mxu0
      %v2631 = vadd.f32 0.0, %v2630
      %v2632 = vpop.f32.mrb[0].mxu0
      %2633 = vmatprep.mubr.f32.mxu0 0.0
      %2634 = vmatmul.mubr.f32.gmra.mrb[0].mxu0 %v425
      %v2635 = vpop.f32.mrb[0].mxu0
      %v2636 = vadd.f32 0.0, %v2635
      %v2637 = vpop.f32.mrb[0].mxu0
      %2638 = vmatprep.mubr.f32.mxu0 0.0
      %2639 = vmatmul.mubr.f32.gmra.mrb[0].mxu0 %v427
      %v2640 = vpop.f32.mrb[0].mxu0
      %v2641 = vadd.f32 0.0, %v2640
      %v2642 = vpop.f32.mrb[0].mxu0
      %2643 = vmatprep.mubr.f32.mxu0 0.0
      %2644 = vmatmul.mubr.f32.gmra.mrb[0].mxu0 %v1627
      %v2645 = vpop.f32.mrb[0].mxu0
      %v2646 = vadd.f32 0.0, %v2645
      %v2647 = vpop.f32.mrb[0].mxu0
      %2648 = vmatprep.mubr.f32.mxu0 0.0
      %2649 = vmatmul.mubr.f32.gmra.mrb[0].mxu0 %v1629
      %v2650 = vpop.f32.mrb[0].mxu0
      %v2651 = vadd.f32 0.0, %v2650
      %v2652 = vpop.f32.mrb[0].mxu0
      %2653 = vmatprep.mubr.f32.mxu0 0.0
      %2654 = vmatmul.mubr.f32.gmra.mrb[0].mxu0 %v2432
      %v2655 = vpop.f32.mrb[0].mxu0
      %v2656 = vadd.f32 0.0, %v2655
      %v2657 = vpop.f32.mrb[0].mxu0
      %2658 = vmatprep.mubr.f32.mxu0 0.0
      %2659 = vmatmul.mubr.f32.gmra.mrb[0].mxu0 %v2434
      %v2660 = vpop.f32.mrb[0].mxu0
      %v2661 = vadd.f32 0.0, %v2660
      %v2662 = vpop.f32.mrb[0].mxu0
      %2663 = vdwg.mxu0
      %v2664 = vadd.f32 %v2394, %v2506
      %v2665 = vadd.f32 %v2395, %v2511
      %v2666 = vadd.f32 %v2396, %v2516
      %v2667 = vadd.f32 %v2397, %v2521
      %v2668 = vadd.f32 %v2398, %v2526
      %v2669 = vadd.f32 %v2399, %v2531
      %v2670 = vadd.f32 %v2400, %v2536
      %v2671 = vadd.f32 %v2401, %v2541
      %v2672 = vadd.f32 %v2402, %v2546
      %v2673 = vadd.f32 %v2403, %v2551
      %v2674 = vadd.f32 %v2404, %v2556
      %v2675 = vadd.f32 %v2405, %v2561
      %v2676 = vadd.f32 %v2406, %v2566
      %v2677 = vadd.f32 %v2407, %v2571
      %v2678 = vadd.f32 %v2408, %v2576
      %v2679 = vadd.f32 %v2409, %v2581
      %v2680 = vadd.f32 %v2410, %v2586
      %v2681 = vadd.f32 %v2411, %v2591
      %v2682 = vadd.f32 %v2412, %v2596
      %v2683 = vadd.f32 %v2413, %v2601
      %v2684 = vadd.f32 %v2414, %v2606
      %v2685 = vadd.f32 %v2415, %v2611
      %v2686 = vadd.f32 %v2416, %v2616
      %v2687 = vadd.f32 %v2417, %v2621
      %v2688 = vadd.f32 %v2418, %v2626
      %v2689 = vadd.f32 %v2419, %v2631
      %v2690 = vadd.f32 %v2420, %v2636
      %v2691 = vadd.f32 %v2421, %v2641
      %v2692 = vadd.f32 %v2422, %v2646
      %v2693 = vadd.f32 %v2423, %v2651
      %v2694 = vadd.f32 %v2424, %v2656
      %v2695 = vadd.f32 %v2425, %v2661
      %v2696 = vrot.slane %v222, 2
      %v2697 = vrot.slane %v223, 2
      %v2698 = vsel %vm950, %v2696, %v2697
      %v2699 = vrot.slane %v224, 2
      %v2700 = vsel %vm950, %v2697, %v2699
      %v2701 = vsel %vm364, %v2698, 0
      %v2703 = vsel %vm364, %v2700, 0
      %v2706 = vsel %vm429, %v233, 0
      %2708 = vmatprep.subr.mxu0 0.0
      %2709 = vmatpush1.msra.mxu0 %v2706
      %2710 = vmatprep.subr.mxu0 0.0
      %2711 = vmatpush1.msra.mxu0 0.0
      %2712 = vmatprep.subr.mxu0 0.0
      %2713 = vmatpush1.msra.mxu0 0.0
      %2714 = vmatprep.subr.mxu0 0.0
      %2715 = vmatpush1.msra.mxu0 0.0
      %2716 = vmatprep.subr.mxu0 0.0
      %2717 = vmatpush1.msra.mxu0 0.0
      %2718 = vmatprep.subr.mxu0 0.0
      %2719 = vmatpush1.msra.mxu0 0.0
      %2720 = vmatprep.subr.mxu0 0.0
      %2721 = vmatpush1.msra.mxu0 0.0
      %2722 = vmatprep.subr.mxu0 0.0
      %2723 = vmatpush1.msra.mxu0 0.0
      %2724 = vmatprep.subr.mxu0 0.0
      %2725 = vmatpush1.msra.mxu0 0.0
      %2726 = vmatprep.subr.mxu0 0.0
      %2727 = vmatpush1.msra.mxu0 0.0
      %2728 = vmatprep.subr.mxu0 0.0
      %2729 = vmatpush1.msra.mxu0 0.0
      %2730 = vmatprep.subr.mxu0 0.0
      %2731 = vmatpush1.msra.mxu0 0.0
      %2732 = vmatprep.subr.mxu0 0.0
      %2733 = vmatpush1.msra.mxu0 0.0
      %2734 = vmatprep.subr.mxu0 0.0
      %2735 = vmatpush1.msra.mxu0 0.0
      %2736 = vmatprep.subr.mxu0 0.0
      %2737 = vmatpush1.msra.mxu0 0.0
      %2738 = vmatprep.subr.mxu0 0.0
      %2739 = vmatpush1.msra.mxu0 0.0
      %2740 = vmatprep.subr.mxu0 0.0
      %2741 = vmatpush1.msra.mxu0 0.0
      %2742 = vmatprep.subr.mxu0 0.0
      %2743 = vmatpush1.msra.mxu0 0.0
      %2744 = vmatprep.subr.mxu0 0.0
      %2745 = vmatpush1.msra.mxu0 0.0
      %2746 = vmatprep.subr.mxu0 0.0
      %2747 = vmatpush1.msra.mxu0 0.0
      %2748 = vmatprep.subr.mxu0 0.0
      %2749 = vmatpush1.msra.mxu0 0.0
      %2750 = vmatprep.subr.mxu0 0.0
      %2751 = vmatpush1.msra.mxu0 0.0
      %2752 = vmatprep.subr.mxu0 0.0
      %2753 = vmatpush1.msra.mxu0 0.0
      %2754 = vmatprep.subr.mxu0 0.0
      %2755 = vmatpush1.msra.mxu0 0.0
      %2756 = vmatprep.subr.mxu0 0.0
      %2757 = vmatpush1.msra.mxu0 0.0
      %2758 = vmatprep.subr.mxu0 0.0
      %2759 = vmatpush1.msra.mxu0 0.0
      %2760 = vmatprep.subr.mxu0 0.0
      %2761 = vmatpush1.msra.mxu0 0.0
      %2762 = vmatprep.subr.mxu0 0.0
      %2763 = vmatpush1.msra.mxu0 0.0
      %2764 = vmatprep.subr.mxu0 0.0
      %2765 = vmatpush1.msra.mxu0 0.0
      %2766 = vmatprep.subr.mxu0 0.0
      %2767 = vmatpush1.msra.mxu0 0.0
      %2768 = vmatprep.subr.mxu0 0.0
      %2769 = vmatpush1.msra.mxu0 0.0
      %2770 = vmatprep.subr.mxu0 0.0
      %2771 = vmatpush1.msra.mxu0 0.0
      %2772 = vmatprep.mubr.f32.mxu0 0.0
      %2773 = vmatmul.mubr.f32.gmra.mrb[0].mxu0 %v1039
      %v2774 = vpop.f32.mrb[0].mxu0
      %v2775 = vadd.f32 0.0, %v2774
      %v2776 = vpop.f32.mrb[0].mxu0
      %2777 = vmatprep.mubr.f32.mxu0 0.0
      %2778 = vmatmul.mubr.f32.gmra.mrb[0].mxu0 %v1041
      %v2779 = vpop.f32.mrb[0].mxu0
      %v2780 = vadd.f32 0.0, %v2779
      %v2781 = vpop.f32.mrb[0].mxu0
      %2782 = vmatprep.mubr.f32.mxu0 0.0
      %2783 = vmatmul.mubr.f32.gmra.mrb[0].mxu0 %v1043
      %v2784 = vpop.f32.mrb[0].mxu0
      %v2785 = vadd.f32 0.0, %v2784
      %v2786 = vpop.f32.mrb[0].mxu0
      %2787 = vmatprep.mubr.f32.mxu0 0.0
      %2788 = vmatmul.mubr.f32.gmra.mrb[0].mxu0 %v1045
      %v2789 = vpop.f32.mrb[0].mxu0
      %v2790 = vadd.f32 0.0, %v2789
      %v2791 = vpop.f32.mrb[0].mxu0
      %2792 = vmatprep.mubr.f32.mxu0 0.0
      %2793 = vmatmul.mubr.f32.gmra.mrb[0].mxu0 %v1047
      %v2794 = vpop.f32.mrb[0].mxu0
      %v2795 = vadd.f32 0.0, %v2794
      %v2796 = vpop.f32.mrb[0].mxu0
      %2797 = vmatprep.mubr.f32.mxu0 0.0
      %2798 = vmatmul.mubr.f32.gmra.mrb[0].mxu0 %v1049
      %v2799 = vpop.f32.mrb[0].mxu0
      %v2800 = vadd.f32 0.0, %v2799
      %v2801 = vpop.f32.mrb[0].mxu0
      %2802 = vmatprep.mubr.f32.mxu0 0.0
      %2803 = vmatmul.mubr.f32.gmra.mrb[0].mxu0 %v1051
      %v2804 = vpop.f32.mrb[0].mxu0
      %v2805 = vadd.f32 0.0, %v2804
      %v2806 = vpop.f32.mrb[0].mxu0
      %2807 = vmatprep.mubr.f32.mxu0 0.0
      %2808 = vmatmul.mubr.f32.gmra.mrb[0].mxu0 %v1053
      %v2809 = vpop.f32.mrb[0].mxu0
      %v2810 = vadd.f32 0.0, %v2809
      %v2811 = vpop.f32.mrb[0].mxu0
      %2812 = vmatprep.mubr.f32.mxu0 0.0
      %2813 = vmatmul.mubr.f32.gmra.mrb[0].mxu0 %v1055
      %v2814 = vpop.f32.mrb[0].mxu0
      %v2815 = vadd.f32 0.0, %v2814
      %v2816 = vpop.f32.mrb[0].mxu0
      %2817 = vmatprep.mubr.f32.mxu0 0.0
      %2818 = vmatmul.mubr.f32.gmra.mrb[0].mxu0 %v1057
      %v2819 = vpop.f32.mrb[0].mxu0
      %v2820 = vadd.f32 0.0, %v2819
      %v2821 = vpop.f32.mrb[0].mxu0
      %2822 = vmatprep.mubr.f32.mxu0 0.0
      %2823 = vmatmul.mubr.f32.gmra.mrb[0].mxu0 %v1059
      %v2824 = vpop.f32.mrb[0].mxu0
      %v2825 = vadd.f32 0.0, %v2824
      %v2826 = vpop.f32.mrb[0].mxu0
      %2827 = vmatprep.mubr.f32.mxu0 0.0
      %2828 = vmatmul.mubr.f32.gmra.mrb[0].mxu0 %v1061
      %v2829 = vpop.f32.mrb[0].mxu0
      %v2830 = vadd.f32 0.0, %v2829
      %v2831 = vpop.f32.mrb[0].mxu0
      %2832 = vmatprep.mubr.f32.mxu0 0.0
      %2833 = vmatmul.mubr.f32.gmra.mrb[0].mxu0 %v1063
      %v2834 = vpop.f32.mrb[0].mxu0
      %v2835 = vadd.f32 0.0, %v2834
      %v2836 = vpop.f32.mrb[0].mxu0
      %2837 = vmatprep.mubr.f32.mxu0 0.0
      %2838 = vmatmul.mubr.f32.gmra.mrb[0].mxu0 %v1065
      %v2839 = vpop.f32.mrb[0].mxu0
      %v2840 = vadd.f32 0.0, %v2839
      %v2841 = vpop.f32.mrb[0].mxu0
      %2842 = vmatprep.mubr.f32.mxu0 0.0
      %2843 = vmatmul.mubr.f32.gmra.mrb[0].mxu0 %v1067
      %v2844 = vpop.f32.mrb[0].mxu0
      %v2845 = vadd.f32 0.0, %v2844
      %v2846 = vpop.f32.mrb[0].mxu0
      %2847 = vmatprep.mubr.f32.mxu0 0.0
      %2848 = vmatmul.mubr.f32.gmra.mrb[0].mxu0 %v1069
      %v2849 = vpop.f32.mrb[0].mxu0
      %v2850 = vadd.f32 0.0, %v2849
      %v2851 = vpop.f32.mrb[0].mxu0
      %2852 = vmatprep.mubr.f32.mxu0 0.0
      %2853 = vmatmul.mubr.f32.gmra.mrb[0].mxu0 %v1071
      %v2854 = vpop.f32.mrb[0].mxu0
      %v2855 = vadd.f32 0.0, %v2854
      %v2856 = vpop.f32.mrb[0].mxu0
      %2857 = vmatprep.mubr.f32.mxu0 0.0
      %2858 = vmatmul.mubr.f32.gmra.mrb[0].mxu0 %v1073
      %v2859 = vpop.f32.mrb[0].mxu0
      %v2860 = vadd.f32 0.0, %v2859
      %v2861 = vpop.f32.mrb[0].mxu0
      %2862 = vmatprep.mubr.f32.mxu0 0.0
      %2863 = vmatmul.mubr.f32.gmra.mrb[0].mxu0 %v1075
      %v2864 = vpop.f32.mrb[0].mxu0
      %v2865 = vadd.f32 0.0, %v2864
      %v2866 = vpop.f32.mrb[0].mxu0
      %2867 = vmatprep.mubr.f32.mxu0 0.0
      %2868 = vmatmul.mubr.f32.gmra.mrb[0].mxu0 %v1077
      %v2869 = vpop.f32.mrb[0].mxu0
      %v2870 = vadd.f32 0.0, %v2869
      %v2871 = vpop.f32.mrb[0].mxu0
      %2872 = vmatprep.mubr.f32.mxu0 0.0
      %2873 = vmatmul.mubr.f32.gmra.mrb[0].mxu0 %v1079
      %v2874 = vpop.f32.mrb[0].mxu0
      %v2875 = vadd.f32 0.0, %v2874
      %v2876 = vpop.f32.mrb[0].mxu0
      %2877 = vmatprep.mubr.f32.mxu0 0.0
      %2878 = vmatmul.mubr.f32.gmra.mrb[0].mxu0 %v1081
      %v2879 = vpop.f32.mrb[0].mxu0
      %v2880 = vadd.f32 0.0, %v2879
      %v2881 = vpop.f32.mrb[0].mxu0
      %2882 = vmatprep.mubr.f32.mxu0 0.0
      %2883 = vmatmul.mubr.f32.gmra.mrb[0].mxu0 %v1083
      %v2884 = vpop.f32.mrb[0].mxu0
      %v2885 = vadd.f32 0.0, %v2884
      %v2886 = vpop.f32.mrb[0].mxu0
      %2887 = vmatprep.mubr.f32.mxu0 0.0
      %2888 = vmatmul.mubr.f32.gmra.mrb[0].mxu0 %v1085
      %v2889 = vpop.f32.mrb[0].mxu0
      %v2890 = vadd.f32 0.0, %v2889
      %v2891 = vpop.f32.mrb[0].mxu0
      %2892 = vmatprep.mubr.f32.mxu0 0.0
      %2893 = vmatmul.mubr.f32.gmra.mrb[0].mxu0 %v1087
      %v2894 = vpop.f32.mrb[0].mxu0
      %v2895 = vadd.f32 0.0, %v2894
      %v2896 = vpop.f32.mrb[0].mxu0
      %2897 = vmatprep.mubr.f32.mxu0 0.0
      %2898 = vmatmul.mubr.f32.gmra.mrb[0].mxu0 %v1089
      %v2899 = vpop.f32.mrb[0].mxu0
      %v2900 = vadd.f32 0.0, %v2899
      %v2901 = vpop.f32.mrb[0].mxu0
      %2902 = vmatprep.mubr.f32.mxu0 0.0
      %2903 = vmatmul.mubr.f32.gmra.mrb[0].mxu0 %v1091
      %v2904 = vpop.f32.mrb[0].mxu0
      %v2905 = vadd.f32 0.0, %v2904
      %v2906 = vpop.f32.mrb[0].mxu0
      %2907 = vmatprep.mubr.f32.mxu0 0.0
      %2908 = vmatmul.mubr.f32.gmra.mrb[0].mxu0 %v1093
      %v2909 = vpop.f32.mrb[0].mxu0
      %v2910 = vadd.f32 0.0, %v2909
      %v2911 = vpop.f32.mrb[0].mxu0
      %2912 = vmatprep.mubr.f32.mxu0 0.0
      %2913 = vmatmul.mubr.f32.gmra.mrb[0].mxu0 %v1896
      %v2914 = vpop.f32.mrb[0].mxu0
      %v2915 = vadd.f32 0.0, %v2914
      %v2916 = vpop.f32.mrb[0].mxu0
      %2917 = vmatprep.mubr.f32.mxu0 0.0
      %2918 = vmatmul.mubr.f32.gmra.mrb[0].mxu0 %v1898
      %v2919 = vpop.f32.mrb[0].mxu0
      %v2920 = vadd.f32 0.0, %v2919
      %v2921 = vpop.f32.mrb[0].mxu0
      %2922 = vmatprep.mubr.f32.mxu0 0.0
      %2923 = vmatmul.mubr.f32.gmra.mrb[0].mxu0 %v2701
      %v2924 = vpop.f32.mrb[0].mxu0
      %v2925 = vadd.f32 0.0, %v2924
      %v2926 = vpop.f32.mrb[0].mxu0
      %2927 = vmatprep.mubr.f32.mxu0 0.0
      %2928 = vmatmul.mubr.f32.gmra.mrb[0].mxu0 %v2703
      %v2929 = vpop.f32.mrb[0].mxu0
      %v2930 = vadd.f32 0.0, %v2929
      %v2931 = vpop.f32.mrb[0].mxu0
      %2932 = vdwg.mxu0
      %v2933 = vadd.f32 %v2664, %v2775
      %v2934 = vadd.f32 %v2665, %v2780
      %v2935 = vadd.f32 %v2666, %v2785
      %v2936 = vadd.f32 %v2667, %v2790
      %v2937 = vadd.f32 %v2668, %v2795
      %v2938 = vadd.f32 %v2669, %v2800
      %v2939 = vadd.f32 %v2670, %v2805
      %v2940 = vadd.f32 %v2671, %v2810
      %v2941 = vadd.f32 %v2672, %v2815
      %v2942 = vadd.f32 %v2673, %v2820
      %v2943 = vadd.f32 %v2674, %v2825
      %v2944 = vadd.f32 %v2675, %v2830
      %v2945 = vadd.f32 %v2676, %v2835
      %v2946 = vadd.f32 %v2677, %v2840
      %v2947 = vadd.f32 %v2678, %v2845
      %v2948 = vadd.f32 %v2679, %v2850
      %v2949 = vadd.f32 %v2680, %v2855
      %v2950 = vadd.f32 %v2681, %v2860
      %v2951 = vadd.f32 %v2682, %v2865
      %v2952 = vadd.f32 %v2683, %v2870
      %v2953 = vadd.f32 %v2684, %v2875
      %v2954 = vadd.f32 %v2685, %v2880
      %v2955 = vadd.f32 %v2686, %v2885
      %v2956 = vadd.f32 %v2687, %v2890
      %v2957 = vadd.f32 %v2688, %v2895
      %v2958 = vadd.f32 %v2689, %v2900
      %v2959 = vadd.f32 %v2690, %v2905
      %v2960 = vadd.f32 %v2691, %v2910
      %v2961 = vadd.f32 %v2692, %v2915
      %v2962 = vadd.f32 %v2693, %v2920
      %v2963 = vadd.f32 %v2694, %v2925
      %v2964 = vadd.f32 %v2695, %v2930
      %v2966 = vlaneseq
      %v2967 = vshrl.u32 %v2966, 7
      %v2968 = vsub.s32 0, %v2967
      %v2969 = vrot.slane %v234, %v2968
      %v2971 = vadd.f32 %v2933, %v2969
      %v2972 = vadd.f32 %v2934, %v2969
      %v2973 = vadd.f32 %v2935, %v2969
      %v2974 = vadd.f32 %v2936, %v2969
      %v2975 = vadd.f32 %v2937, %v2969
      %v2976 = vadd.f32 %v2938, %v2969
      %v2977 = vadd.f32 %v2939, %v2969
      %v2978 = vadd.f32 %v2940, %v2969
      %v2979 = vadd.f32 %v2941, %v2969
      %v2980 = vadd.f32 %v2942, %v2969
      %v2981 = vadd.f32 %v2943, %v2969
      %v2982 = vadd.f32 %v2944, %v2969
      %v2983 = vadd.f32 %v2945, %v2969
      %v2984 = vadd.f32 %v2946, %v2969
      %v2985 = vadd.f32 %v2947, %v2969
      %v2986 = vadd.f32 %v2948, %v2969
      %v2987 = vadd.f32 %v2949, %v2969
      %v2988 = vadd.f32 %v2950, %v2969
      %v2989 = vadd.f32 %v2951, %v2969
      %v2990 = vadd.f32 %v2952, %v2969
      %v2991 = vadd.f32 %v2953, %v2969
      %v2992 = vadd.f32 %v2954, %v2969
      %v2993 = vadd.f32 %v2955, %v2969
      %v2994 = vadd.f32 %v2956, %v2969
      %v2995 = vadd.f32 %v2957, %v2969
      %v2996 = vadd.f32 %v2958, %v2969
      %v2997 = vadd.f32 %v2959, %v2969
      %v2998 = vadd.f32 %v2960, %v2969
      %v2999 = vadd.f32 %v2961, %v2969
      %v3000 = vadd.f32 %v2962, %v2969
      %v3001 = vadd.f32 %v2963, %v2969
      %v3002 = vadd.f32 %v2964, %v2969
      %v3003 = vxor.u32 %v2971, 2147483648
      %v3004 = vxor.u32 %v2972, 2147483648
      %v3005 = vxor.u32 %v2973, 2147483648
      %v3006 = vxor.u32 %v2974, 2147483648
      %v3007 = vxor.u32 %v2975, 2147483648
      %v3008 = vxor.u32 %v2976, 2147483648
      %v3009 = vxor.u32 %v2977, 2147483648
      %v3010 = vxor.u32 %v2978, 2147483648
      %v3011 = vxor.u32 %v2979, 2147483648
      %v3012 = vxor.u32 %v2980, 2147483648
      %v3013 = vxor.u32 %v2981, 2147483648
      %v3014 = vxor.u32 %v2982, 2147483648
      %v3015 = vxor.u32 %v2983, 2147483648
      %v3016 = vxor.u32 %v2984, 2147483648
      %v3017 = vxor.u32 %v2985, 2147483648
      %v3018 = vxor.u32 %v2986, 2147483648
      %v3019 = vxor.u32 %v2987, 2147483648
      %v3020 = vxor.u32 %v2988, 2147483648
      %v3021 = vxor.u32 %v2989, 2147483648
      %v3022 = vxor.u32 %v2990, 2147483648
      %v3023 = vxor.u32 %v2991, 2147483648
      %v3024 = vxor.u32 %v2992, 2147483648
      %v3025 = vxor.u32 %v2993, 2147483648
      %v3026 = vxor.u32 %v2994, 2147483648
      %v3027 = vxor.u32 %v2995, 2147483648
      %v3028 = vxor.u32 %v2996, 2147483648
      %v3029 = vxor.u32 %v2997, 2147483648
      %v3030 = vxor.u32 %v2998, 2147483648
      %v3031 = vxor.u32 %v2999, 2147483648
      %v3032 = vxor.u32 %v3000, 2147483648
      %v3033 = vxor.u32 %v3001, 2147483648
      %v3034 = vxor.u32 %v3002, 2147483648
      %v3035 = vmul.f32 %v3003, 1.442695
      %v3036 = vpow.pop %v3035
      %v3037 = vmul.f32 %v3004, 1.442695
      %v3038 = vpow.pop %v3037
      %v3039 = vmul.f32 %v3005, 1.442695
      %v3040 = vpow.pop %v3039
      %v3041 = vmul.f32 %v3006, 1.442695
      %v3042 = vpow.pop %v3041
      %v3043 = vmul.f32 %v3007, 1.442695
      %v3044 = vpow.pop %v3043
      %v3045 = vmul.f32 %v3008, 1.442695
      %v3046 = vpow.pop %v3045
      %v3047 = vmul.f32 %v3009, 1.442695
      %v3048 = vpow.pop %v3047
      %v3049 = vmul.f32 %v3010, 1.442695
      %v3050 = vpow.pop %v3049
      %v3051 = vmul.f32 %v3011, 1.442695
      %v3052 = vpow.pop %v3051
      %v3053 = vmul.f32 %v3012, 1.442695
      %v3054 = vpow.pop %v3053
      %v3055 = vmul.f32 %v3013, 1.442695
      %v3056 = vpow.pop %v3055
      %v3057 = vmul.f32 %v3014, 1.442695
      %v3058 = vpow.pop %v3057
      %v3059 = vmul.f32 %v3015, 1.442695
      %v3060 = vpow.pop %v3059
      %v3061 = vmul.f32 %v3016, 1.442695
      %v3062 = vpow.pop %v3061
      %v3063 = vmul.f32 %v3017, 1.442695
      %v3064 = vpow.pop %v3063
      %v3065 = vmul.f32 %v3018, 1.442695
      %v3066 = vpow.pop %v3065
      %v3067 = vmul.f32 %v3019, 1.442695
      %v3068 = vpow.pop %v3067
      %v3069 = vmul.f32 %v3020, 1.442695
      %v3070 = vpow.pop %v3069
      %v3071 = vmul.f32 %v3021, 1.442695
      %v3072 = vpow.pop %v3071
      %v3073 = vmul.f32 %v3022, 1.442695
      %v3074 = vpow.pop %v3073
      %v3075 = vmul.f32 %v3023, 1.442695
      %v3076 = vpow.pop %v3075
      %v3077 = vmul.f32 %v3024, 1.442695
      %v3078 = vpow.pop %v3077
      %v3079 = vmul.f32 %v3025, 1.442695
      %v3080 = vpow.pop %v3079
      %v3081 = vmul.f32 %v3026, 1.442695
      %v3082 = vpow.pop %v3081
      %v3083 = vmul.f32 %v3027, 1.442695
      %v3084 = vpow.pop %v3083
      %v3085 = vmul.f32 %v3028, 1.442695
      %v3086 = vpow.pop %v3085
      %v3087 = vmul.f32 %v3029, 1.442695
      %v3088 = vpow.pop %v3087
      %v3089 = vmul.f32 %v3030, 1.442695
      %v3090 = vpow.pop %v3089
      %v3091 = vmul.f32 %v3031, 1.442695
      %v3092 = vpow.pop %v3091
      %v3093 = vmul.f32 %v3032, 1.442695
      %v3094 = vpow.pop %v3093
      %v3095 = vmul.f32 %v3033, 1.442695
      %v3096 = vpow.pop %v3095
      %v3097 = vmul.f32 %v3034, 1.442695
      %v3098 = vpow.pop %v3097
      %v3099 = vadd.f32 %v3036, 1.0
      %v3100 = vadd.f32 %v3038, 1.0
      %v3101 = vadd.f32 %v3040, 1.0
      %v3102 = vadd.f32 %v3042, 1.0
      %v3103 = vadd.f32 %v3044, 1.0
      %v3104 = vadd.f32 %v3046, 1.0
      %v3105 = vadd.f32 %v3048, 1.0
      %v3106 = vadd.f32 %v3050, 1.0
      %v3107 = vadd.f32 %v3052, 1.0
      %v3108 = vadd.f32 %v3054, 1.0
      %v3109 = vadd.f32 %v3056, 1.0
      %v3110 = vadd.f32 %v3058, 1.0
      %v3111 = vadd.f32 %v3060, 1.0
      %v3112 = vadd.f32 %v3062, 1.0
      %v3113 = vadd.f32 %v3064, 1.0
      %v3114 = vadd.f32 %v3066, 1.0
      %v3115 = vadd.f32 %v3068, 1.0
      %v3116 = vadd.f32 %v3070, 1.0
      %v3117 = vadd.f32 %v3072, 1.0
      %v3118 = vadd.f32 %v3074, 1.0
      %v3119 = vadd.f32 %v3076, 1.0
      %v3120 = vadd.f32 %v3078, 1.0
      %v3121 = vadd.f32 %v3080, 1.0
      %v3122 = vadd.f32 %v3082, 1.0
      %v3123 = vadd.f32 %v3084, 1.0
      %v3124 = vadd.f32 %v3086, 1.0
      %v3125 = vadd.f32 %v3088, 1.0
      %v3126 = vadd.f32 %v3090, 1.0
      %v3127 = vadd.f32 %v3092, 1.0
      %v3128 = vadd.f32 %v3094, 1.0
      %v3129 = vadd.f32 %v3096, 1.0
      %v3130 = vadd.f32 %v3098, 1.0
      %v3131 = vrcp.pop %v3099
      %v3132 = vmul.f32 1.0, %v3131
      %v3133 = vrcp.pop %v3100
      %v3134 = vmul.f32 1.0, %v3133
      %v3135 = vrcp.pop %v3101
      %v3136 = vmul.f32 1.0, %v3135
      %v3137 = vrcp.pop %v3102
      %v3138 = vmul.f32 1.0, %v3137
      %v3139 = vrcp.pop %v3103
      %v3140 = vmul.f32 1.0, %v3139
      %v3141 = vrcp.pop %v3104
      %v3142 = vmul.f32 1.0, %v3141
      %v3143 = vrcp.pop %v3105
      %v3144 = vmul.f32 1.0, %v3143
      %v3145 = vrcp.pop %v3106
      %v3146 = vmul.f32 1.0, %v3145
      %v3147 = vrcp.pop %v3107
      %v3148 = vmul.f32 1.0, %v3147
      %v3149 = vrcp.pop %v3108
      %v3150 = vmul.f32 1.0, %v3149
      %v3151 = vrcp.pop %v3109
      %v3152 = vmul.f32 1.0, %v3151
      %v3153 = vrcp.pop %v3110
      %v3154 = vmul.f32 1.0, %v3153
      %v3155 = vrcp.pop %v3111
      %v3156 = vmul.f32 1.0, %v3155
      %v3157 = vrcp.pop %v3112
      %v3158 = vmul.f32 1.0, %v3157
      %v3159 = vrcp.pop %v3113
      %v3160 = vmul.f32 1.0, %v3159
      %v3161 = vrcp.pop %v3114
      %v3162 = vmul.f32 1.0, %v3161
      %v3163 = vrcp.pop %v3115
      %v3164 = vmul.f32 1.0, %v3163
      %v3165 = vrcp.pop %v3116
      %v3166 = vmul.f32 1.0, %v3165
      %v3167 = vrcp.pop %v3117
      %v3168 = vmul.f32 1.0, %v3167
      %v3169 = vrcp.pop %v3118
      %v3170 = vmul.f32 1.0, %v3169
      %v3171 = vrcp.pop %v3119
      %v3172 = vmul.f32 1.0, %v3171
      %v3173 = vrcp.pop %v3120
      %v3174 = vmul.f32 1.0, %v3173
      %v3175 = vrcp.pop %v3121
      %v3176 = vmul.f32 1.0, %v3175
      %v3177 = vrcp.pop %v3122
      %v3178 = vmul.f32 1.0, %v3177
      %v3179 = vrcp.pop %v3123
      %v3180 = vmul.f32 1.0, %v3179
      %v3181 = vrcp.pop %v3124
      %v3182 = vmul.f32 1.0, %v3181
      %v3183 = vrcp.pop %v3125
      %v3184 = vmul.f32 1.0, %v3183
      %v3185 = vrcp.pop %v3126
      %v3186 = vmul.f32 1.0, %v3185
      %v3187 = vrcp.pop %v3127
      %v3188 = vmul.f32 1.0, %v3187
      %v3189 = vrcp.pop %v3128
      %v3190 = vmul.f32 1.0, %v3189
      %v3191 = vrcp.pop %v3129
      %v3192 = vmul.f32 1.0, %v3191
      %v3193 = vrcp.pop %v3130
      %v3194 = vmul.f32 1.0, %v3193
      %v3227 = vmul.f32 %v3132, %v291
      %v3228 = vmul.f32 %v3134, %v293
      %v3229 = vmul.f32 %v3136, %v296
      %v3230 = vmul.f32 %v3138, %v298
      %v3231 = vmul.f32 %v3140, %v301
      %v3232 = vmul.f32 %v3142, %v303
      %v3233 = vmul.f32 %v3144, %v306
      %v3234 = vmul.f32 %v3146, %v308
      %v3235 = vmul.f32 %v3148, %v311
      %v3236 = vmul.f32 %v3150, %v313
      %v3237 = vmul.f32 %v3152, %v316
      %v3238 = vmul.f32 %v3154, %v318
      %v3239 = vmul.f32 %v3156, %v321
      %v3240 = vmul.f32 %v3158, %v323
      %v3241 = vmul.f32 %v3160, %v326
      %v3242 = vmul.f32 %v3162, %v328
      %v3243 = vmul.f32 %v3164, %v331
      %v3244 = vmul.f32 %v3166, %v333
      %v3245 = vmul.f32 %v3168, %v336
      %v3246 = vmul.f32 %v3170, %v338
      %v3247 = vmul.f32 %v3172, %v341
      %v3248 = vmul.f32 %v3174, %v343
      %v3249 = vmul.f32 %v3176, %v346
      %v3250 = vmul.f32 %v3178, %v348
      %v3251 = vmul.f32 %v3180, %v351
      %v3252 = vmul.f32 %v3182, %v353
      %v3253 = vmul.f32 %v3184, %v356
      %v3254 = vmul.f32 %v3186, %v358
      %v3255 = vmul.f32 %v3188, %v361
      %v3256 = vmul.f32 %v3190, %v363
      %v3257 = vmul.f32 %v3192, %v1624
      %v3258 = vmul.f32 %v3194, %v1626
      %3259 = vst.msk [vmem:[%s170] sm:$0xff] %vm364, %v3227
      %3260 = vst.msk [vmem:[%s170 + $0x8] sm:$0xff] %vm364, %v3228
      %3261 = vst.msk [vmem:[%s170 + $0x10] sm:$0xff] %vm364, %v3229
      %3262 = vst.msk [vmem:[%s170 + $0x18] sm:$0xff] %vm364, %v3230
      %3263 = vst.msk [vmem:[%s170 + $0x20] sm:$0xff] %vm364, %v3231
      %3264 = vst.msk [vmem:[%s170 + $0x28] sm:$0xff] %vm364, %v3232
      %3265 = vst.msk [vmem:[%s170 + $0x30] sm:$0xff] %vm364, %v3233
      %3266 = vst.msk [vmem:[%s170 + $0x38] sm:$0xff] %vm364, %v3234
      %3267 = vst.msk [vmem:[%s170 + $0x40] sm:$0xff] %vm364, %v3235
      %3268 = vst.msk [vmem:[%s170 + $0x48] sm:$0xff] %vm364, %v3236
      %3269 = vst.msk [vmem:[%s170 + $0x50] sm:$0xff] %vm364, %v3237
      %3270 = vst.msk [vmem:[%s170 + $0x58] sm:$0xff] %vm364, %v3238
      %3271 = vst.msk [vmem:[%s170 + $0x60] sm:$0xff] %vm364, %v3239
      %3272 = vst.msk [vmem:[%s170 + $0x68] sm:$0xff] %vm364, %v3240
      %3273 = vst.msk [vmem:[%s170 + $0x70] sm:$0xff] %vm364, %v3241
      %3274 = vst.msk [vmem:[%s170 + $0x78] sm:$0xff] %vm364, %v3242
      %3275 = vst.msk [vmem:[%s170 + $0x80] sm:$0xff] %vm364, %v3243
      %3276 = vst.msk [vmem:[%s170 + $0x88] sm:$0xff] %vm364, %v3244
      %3277 = vst.msk [vmem:[%s170 + $0x90] sm:$0xff] %vm364, %v3245
      %3278 = vst.msk [vmem:[%s170 + $0x98] sm:$0xff] %vm364, %v3246
      %3279 = vst.msk [vmem:[%s170 + $0xa0] sm:$0xff] %vm364, %v3247
      %3280 = vst.msk [vmem:[%s170 + $0xa8] sm:$0xff] %vm364, %v3248
      %3281 = vst.msk [vmem:[%s170 + $0xb0] sm:$0xff] %vm364, %v3249
      %3282 = vst.msk [vmem:[%s170 + $0xb8] sm:$0xff] %vm364, %v3250
      %3283 = vst.msk [vmem:[%s170 + $0xc0] sm:$0xff] %vm364, %v3251
      %3284 = vst.msk [vmem:[%s170 + $0xc8] sm:$0xff] %vm364, %v3252
      %3285 = vst.msk [vmem:[%s170 + $0xd0] sm:$0xff] %vm364, %v3253
      %3286 = vst.msk [vmem:[%s170 + $0xd8] sm:$0xff] %vm364, %v3254
      %3287 = vst.msk [vmem:[%s170 + $0xe0] sm:$0xff] %vm364, %v3255
      %3288 = vst.msk [vmem:[%s170 + $0xe8] sm:$0xff] %vm364, %v3256
      %3289 = vst.msk [vmem:[%s170 + $0xf0] sm:$0xff] %vm364, %v3257
      %3290 = vst.msk [vmem:[%s170 + $0xf8] sm:$0xff] %vm364, %v3258
      %p3291 = scmp.lt.s32.totalorder %s14, 1
      %s3292 = scalar_select %p3291, %s14, 1
      %s3293 = smul.addr %s3292, 32
      %s3294 = smul.addr %s3293, 8
      %s3295 = scalar_lea.vmem %s3, %s3294
      // Predicated region
      $region33: #{tpu_custom_call.1} parent=31 // pred_check
        %p3296 = pneg %p100
      $region34: #{tpu_custom_call.1} parent=31 // pred_check_branch
        %3298 = sbr.rel (%p3296) target = $region36
      $region35: #{tpu_custom_call.1} parent=31 // pred_region
        _
      $region36: #{tpu_custom_call.1} parent=31 // pred_fallthru
        _
    $region32: #{tpu_custom_call.1} parent=5 // pred_fallthru
      _
    %p3299 = scmp.le.s32.totalorder 2, %s9
    // Predicated region
    $region37: #{tpu_custom_call.1} parent=5 // pred_check
      %p3300 = pneg %p3299
    $region38: #{tpu_custom_call.1} parent=5 // pred_check_branch
      %3302 = sbr.rel (%p3300) target = $region40
    $region39: #{tpu_custom_call.1} parent=5 // pred_region
      %s3303 = ssub.s32 %s9, 2
      // Predicated region
      $region41: #{tpu_custom_call.1} parent=39 // pred_check
        %p3304 = pneg %p106
      $region42: #{tpu_custom_call.1} parent=39 // pred_check_branch
        %3306 = sbr.rel (%p3304) target = $region44
      $region43: #{tpu_custom_call.1} parent=39 // pred_region
        %p3307 = scmp.lt.s32.totalorder %s15, 1
        %s3308 = scalar_select %p3307, %s15, 1
        %s3309 = smul.addr %s3308, 32
        %s3310 = smul.addr %s3309, 8
        %s3311 = scalar_lea.vmem %s3, %s3310
      $region44: #{tpu_custom_call.1} parent=39 // pred_fallthru
        _
    $region40: #{tpu_custom_call.1} parent=5 // pred_fallthru
      _
  $region6: #{tpu_custom_call.1} parent=0 // loop_footer
    %s13 = sadd.s32 1, %s9
  $region7: #{tpu_custom_call.1} parent=0 // loop_footer_branch
    %8 = sbr.rel target = $region3
  $region8: #{tpu_custom_call.1} parent=0 // loop_exit
    _

</llo_original>
